<compile_context>
chip_gen: v6e
topology: v6e:2x2x1
jax: 0.10.0
libtpu: 0.0.40
codegen_flags: <defaults>
</compile_context>

<pallas_src>
import jax
import jax.numpy as jnp
from jax import lax
from jax.experimental import pallas as pl
from jax.experimental.pallas import tpu as pltpu

# Static network geometry (from the PyTorch module).
H0, W0, C0 = 13, 13, 2            # input board: 2 planes, 13x13
K1, C1 = 5, 6                     # conv1: Conv2d(2, 6, 5)   -> 9x9x6
H1, W1 = H0 - K1 + 1, W0 - K1 + 1
K2, C2 = 3, 16                    # conv2: Conv2d(6, 16, 3)  -> 7x7x16
H2, W2 = H1 - K2 + 1, W1 - K2 + 1
NF = 169                          # fc1: Linear(16*7*7, 169)
NF_PAD = 256                      # lane-dense padded fc1 output width

IN_FLAT = H0 * W0 * C0            # 338
H1_FLAT = H1 * W1 * C1            # 486
H2_FLAT = H2 * W2 * C2            # 784


def _round_up(n, m):
    return ((n + m - 1) // m) * m


def _fused_kernel(x_ref, m1_ref, b1_ref, m2_ref, b2_ref, wf_ref, bf_ref, o_ref):
    # x_ref: [B_BLK, 338] bf16, per image flattened as (h, w, c) with c fastest.
    x = x_ref[...]

    # conv1 (+bias, ReLU) as one dense dot against the banded matmul weight.
    h1 = jnp.dot(x, m1_ref[...], preferred_element_type=jnp.float32)   # [B, 486]
    h1 = jnp.maximum(h1 + b1_ref[...], 0.0).astype(jnp.bfloat16)

    # conv2 (+bias, ReLU) the same way.
    h2 = jnp.dot(h1, m2_ref[...], preferred_element_type=jnp.float32)  # [B, 784]
    h2 = jnp.maximum(h2 + b2_ref[...], 0.0).astype(jnp.bfloat16)

    # fc1 (NCHW flatten folded into wf row order) + ReLU + Sigmoid, one dot.
    z = jnp.dot(h2, wf_ref[...], preferred_element_type=jnp.float32)   # [B, 256]
    z = jnp.maximum(z + bf_ref[...], 0.0)
    # sigmoid(a) = 1 / (1 + exp(-a)): exp + approx reciprocal both hit the EUP.
    o_ref[...] = pl.reciprocal(1.0 + jnp.exp(-z), approx=True)


def _conv_as_matmul_weight(w, in_h, in_w):
    """PyTorch conv weight [co, ci, kh, kw] -> dense banded matmul weight that maps
    a flattened (h, w, ci) image (ci fastest) to a flattened (y, x, co) valid-conv
    output (co fastest).  Shape: [in_h*in_w*ci, out_h*out_w*co]."""
    out_c, in_c, kh, kw = w.shape
    oh, ow = in_h - kh + 1, in_w - kw + 1
    di = jnp.arange(in_h)[:, None] - jnp.arange(oh)[None, :]      # [in_h, oh]
    dj = jnp.arange(in_w)[:, None] - jnp.arange(ow)[None, :]      # [in_w, ow]
    vi = (di >= 0) & (di < kh)
    vj = (dj >= 0) & (dj < kw)
    wt = jnp.transpose(w, (2, 3, 1, 0))                           # [kh, kw, ci, co]
    g = wt[jnp.clip(di, 0, kh - 1)[:, :, None, None],
           jnp.clip(dj, 0, kw - 1)[None, None, :, :]]             # [in_h,oh,in_w,ow,ci,co]
    mask = (vi[:, :, None, None] & vj[None, None, :, :])[..., None, None]
    g = jnp.where(mask, g, jnp.zeros((), w.dtype))
    g = jnp.transpose(g, (0, 2, 4, 1, 3, 5))                      # [in_h,in_w,ci,oh,ow,co]
    return g.reshape(in_h * in_w * in_c, oh * ow * out_c)


def init_params(key):
    """Deterministic init matching PyTorch layer shapes (uniform +/- 1/sqrt(fan_in))."""
    ks = jax.random.split(key, 6)

    def u(k, shape, fan_in):
        bound = 1.0 / jnp.sqrt(jnp.float32(fan_in))
        return jax.random.uniform(k, shape, jnp.float32, -bound, bound)

    return dict(
        conv1_w=u(ks[0], (6, 2, 5, 5), 2 * 5 * 5),     # Conv2d(2, 6, 5)
        conv1_b=u(ks[1], (6,), 2 * 5 * 5),
        conv2_w=u(ks[2], (16, 6, 3, 3), 6 * 3 * 3),    # Conv2d(6, 16, 3)
        conv2_b=u(ks[3], (16,), 6 * 3 * 3),
        fc1_w=u(ks[4], (169, 784), 784),               # Linear(16*7*7, 169)
        fc1_b=u(ks[5], (169,), 784),
    )


def smallnet_forward(params, x_nchw, b_blk=128):
    B = x_nchw.shape[0]

    # Batch blocking: B_BLK images per grid step (sublane-aligned), batch padded
    # up to a multiple of B_BLK.  Default 128 -> M~128-256 per MXU dot; large
    # batches still get >=2 grid steps so v7x's two TCs can split the work.
    b_blk = max(8, min(int(b_blk), _round_up(B, 8)))
    b_blk = _round_up(b_blk, 8)
    B_pad = _round_up(B, b_blk)
    n_steps = B_pad // b_blk

    # Input prep (tiny XLA op): NCHW -> flattened (h, w, c), cast to bf16 once.
    x_flat = jnp.transpose(x_nchw, (0, 2, 3, 1)).reshape(B, IN_FLAT)
    x_flat = x_flat.astype(jnp.bfloat16)
    if B_pad != B:
        x_flat = jnp.pad(x_flat, ((0, B_pad - B), (0, 0)))

    # Weight repacks (once per call, cheap).  MXU operands -> bf16, biases f32.
    m1 = _conv_as_matmul_weight(params["conv1_w"], H0, W0).astype(jnp.bfloat16)  # [338, 486]
    m2 = _conv_as_matmul_weight(params["conv2_w"], H1, W1).astype(jnp.bfloat16)  # [486, 784]
    b1 = jnp.tile(params["conv1_b"], H1 * W1).reshape(1, H1_FLAT).astype(jnp.float32)
    b2 = jnp.tile(params["conv2_b"], H2 * W2).reshape(1, H2_FLAT).astype(jnp.float32)
    # fc1 weight: PyTorch's view(-1, 784) flattens (c, y, x); reorder rows to
    # (y, x, c) so it consumes the kernel's conv2 output layout directly, and pad
    # the output dim 169 -> 256 for lane-dense stores.
    wf = params["fc1_w"].reshape(NF, C2, H2, W2)
    wf = jnp.transpose(wf, (2, 3, 1, 0)).reshape(H2_FLAT, NF)
    wf = jnp.pad(wf, ((0, 0), (0, NF_PAD - NF))).astype(jnp.bfloat16)            # [784, 256]
    bf = jnp.pad(params["fc1_b"], (0, NF_PAD - NF)).reshape(1, NF_PAD).astype(jnp.float32)

    out = pl.pallas_call(
        _fused_kernel,
        out_shape=jax.ShapeDtypeStruct((B_pad, NF_PAD), jnp.float32),
        grid=(n_steps,),
        in_specs=[
            pl.BlockSpec((b_blk, IN_FLAT), lambda i: (i, 0)),   # batch block of inputs
            pl.BlockSpec(m1.shape, lambda i: (0, 0)),           # weights: constant block
            pl.BlockSpec(b1.shape, lambda i: (0, 0)),           #  index -> fetched once,
            pl.BlockSpec(m2.shape, lambda i: (0, 0)),           #  VMEM-resident across
            pl.BlockSpec(b2.shape, lambda i: (0, 0)),           #  grid steps
            pl.BlockSpec(wf.shape, lambda i: (0, 0)),
            pl.BlockSpec(bf.shape, lambda i: (0, 0)),
        ],
        out_specs=pl.BlockSpec((b_blk, NF_PAD), lambda i: (i, 0)),
        compiler_params=pltpu.CompilerParams(
            dimension_semantics=("parallel",)),                 # v7x: 2 TCs split steps
    )(x_flat, m1, b1, m2, b2, wf, bf)

    return out[:B, :NF]


def smallnet_reference(params, x):
    """Pure-JAX f32 reference mirroring the PyTorch module exactly."""
    dn = ("NCHW", "OIHW", "NCHW")
    h = lax.conv_general_dilated(x, params["conv1_w"], (1, 1), "VALID",
                                 dimension_numbers=dn)
    h = jax.nn.relu(h + params["conv1_b"][None, :, None, None])
    h = lax.conv_general_dilated(h, params["conv2_w"], (1, 1), "VALID",
                                 dimension_numbers=dn)
    h = jax.nn.relu(h + params["conv2_b"][None, :, None, None])
    h = h.reshape(x.shape[0], -1)                       # NCHW flatten (c, y, x)
    h = jax.nn.relu(h @ params["fc1_w"].T + params["fc1_b"])
    return jax.nn.sigmoid(h)


if __name__ == "__main__":
    key = jax.random.PRNGKey(0)
    pkey, xkey = jax.random.split(key)
    params = init_params(pkey)
    # Input implied by the module: 13x13 board, 2 planes (NCHW like PyTorch).
    x = jax.random.normal(xkey, (2, 2, 13, 13), jnp.float32)

    out = jax.jit(smallnet_forward)(params, x)
    jax.block_until_ready(out)
    assert out.shape == (2, 169) and out.dtype == jnp.float32

    ref = jax.jit(smallnet_reference)(params, x)
    jax.block_until_ready(ref)
    err = float(jnp.max(jnp.abs(out - ref)))
    assert err < 5e-2, f"max abs error vs f32 reference too large: {err}"
    print("KERNEL_OK")
</pallas_src>

<mosaic_0001>
module attributes {stable_mosaic.version = 11 : i64} {
  func.func @_fused_kernel(%arg0: i32, %arg1: memref<8x338xbf16, #tpu.memory_space<vmem>>, %arg2: memref<338x486xbf16, #tpu.memory_space<vmem>>, %arg3: memref<1x486xf32, #tpu.memory_space<vmem>>, %arg4: memref<486x784xbf16, #tpu.memory_space<vmem>>, %arg5: memref<1x784xf32, #tpu.memory_space<vmem>>, %arg6: memref<784x256xbf16, #tpu.memory_space<vmem>>, %arg7: memref<1x256xf32, #tpu.memory_space<vmem>>, %arg8: memref<8x256xf32, #tpu.memory_space<vmem>>) attributes {dimension_semantics = [#tpu.dimension_semantics<parallel>], iteration_bounds = array<i64: 1>, scalar_prefetch = 0 : i64, scratch_operands = 0 : i64, tpu.core_type = #tpu.core_type<tc>, window_params = [{transform_indices = @transform_0, window_bounds = array<i64: 8, 338>}, {pipeline_mode = #tpu.pipeline_mode<synchronous>, transform_indices = @transform_1, window_bounds = array<i64: 338, 486>}, {pipeline_mode = #tpu.pipeline_mode<synchronous>, transform_indices = @transform_2, window_bounds = array<i64: 1, 486>}, {pipeline_mode = #tpu.pipeline_mode<synchronous>, transform_indices = @transform_3, window_bounds = array<i64: 486, 784>}, {pipeline_mode = #tpu.pipeline_mode<synchronous>, transform_indices = @transform_4, window_bounds = array<i64: 1, 784>}, {pipeline_mode = #tpu.pipeline_mode<synchronous>, transform_indices = @transform_5, window_bounds = array<i64: 784, 256>}, {pipeline_mode = #tpu.pipeline_mode<synchronous>, transform_indices = @transform_6, window_bounds = array<i64: 1, 256>}, {transform_indices = @transform_7, window_bounds = array<i64: 8, 256>}]} {
    %c0 = arith.constant 0 : index
    %c0_0 = arith.constant 0 : index
    %0 = vector.load %arg1[%c0, %c0_0] : memref<8x338xbf16, #tpu.memory_space<vmem>>, vector<8x338xbf16>
    %c0_1 = arith.constant 0 : index
    %c0_2 = arith.constant 0 : index
    %1 = vector.load %arg2[%c0_1, %c0_2] : memref<338x486xbf16, #tpu.memory_space<vmem>>, vector<338x486xbf16>
    %cst = arith.constant dense<0.000000e+00> : vector<8x486xf32>
    %2 = tpu.matmul %0, %1, %cst {dimension_numbers = #tpu.dot_dimension_numbers<[1], [0], [0], [1], [0, 0, 1, 1], [], []>} : vector<8x338xbf16>, vector<338x486xbf16>, vector<8x486xf32> -> vector<8x486xf32>
    %c0_3 = arith.constant 0 : index
    %c0_4 = arith.constant 0 : index
    %3 = vector.load %arg3[%c0_3, %c0_4] : memref<1x486xf32, #tpu.memory_space<vmem>>, vector<1x486xf32>
    %4 = vector.broadcast %3 : vector<1x486xf32> to vector<8x486xf32>
    %5 = arith.addf %2, %4 : vector<8x486xf32>
    %cst_5 = arith.constant 0.000000e+00 : f32
    %6 = vector.broadcast %cst_5 : f32 to vector<8x486xf32>
    %7 = arith.maximumf %5, %6 : vector<8x486xf32>
    %8 = arith.truncf %7 : vector<8x486xf32> to vector<8x486xbf16>
    %c0_6 = arith.constant 0 : index
    %c0_7 = arith.constant 0 : index
    %9 = vector.load %arg4[%c0_6, %c0_7] : memref<486x784xbf16, #tpu.memory_space<vmem>>, vector<486x784xbf16>
    %cst_8 = arith.constant dense<0.000000e+00> : vector<8x784xf32>
    %10 = tpu.matmul %8, %9, %cst_8 {dimension_numbers = #tpu.dot_dimension_numbers<[1], [0], [0], [1], [0, 0, 1, 1], [], []>} : vector<8x486xbf16>, vector<486x784xbf16>, vector<8x784xf32> -> vector<8x784xf32>
    %c0_9 = arith.constant 0 : index
    %c0_10 = arith.constant 0 : index
    %11 = vector.load %arg5[%c0_9, %c0_10] : memref<1x784xf32, #tpu.memory_space<vmem>>, vector<1x784xf32>
    %12 = vector.broadcast %11 : vector<1x784xf32> to vector<8x784xf32>
    %13 = arith.addf %10, %12 : vector<8x784xf32>
    %cst_11 = arith.constant 0.000000e+00 : f32
    %14 = vector.broadcast %cst_11 : f32 to vector<8x784xf32>
    %15 = arith.maximumf %13, %14 : vector<8x784xf32>
    %16 = arith.truncf %15 : vector<8x784xf32> to vector<8x784xbf16>
    %c0_12 = arith.constant 0 : index
    %c0_13 = arith.constant 0 : index
    %17 = vector.load %arg6[%c0_12, %c0_13] : memref<784x256xbf16, #tpu.memory_space<vmem>>, vector<784x256xbf16>
    %cst_14 = arith.constant dense<0.000000e+00> : vector<8x256xf32>
    %18 = tpu.matmul %16, %17, %cst_14 {dimension_numbers = #tpu.dot_dimension_numbers<[1], [0], [0], [1], [0, 0, 1, 1], [], []>} : vector<8x784xbf16>, vector<784x256xbf16>, vector<8x256xf32> -> vector<8x256xf32>
    %c0_15 = arith.constant 0 : index
    %c0_16 = arith.constant 0 : index
    %19 = vector.load %arg7[%c0_15, %c0_16] : memref<1x256xf32, #tpu.memory_space<vmem>>, vector<1x256xf32>
    %20 = vector.broadcast %19 : vector<1x256xf32> to vector<8x256xf32>
    %21 = arith.addf %18, %20 : vector<8x256xf32>
    %cst_17 = arith.constant 0.000000e+00 : f32
    %22 = vector.broadcast %cst_17 : f32 to vector<8x256xf32>
    %23 = arith.maximumf %21, %22 : vector<8x256xf32>
    %cst_18 = arith.constant 0.000000e+00 : f32
    %24 = vector.broadcast %cst_18 : f32 to vector<8x256xf32>
    %25 = arith.subf %24, %23 : vector<8x256xf32>
    %26 = math.exp %25 : vector<8x256xf32>
    %cst_19 = arith.constant 1.000000e+00 : f32
    %27 = vector.broadcast %cst_19 : f32 to vector<8x256xf32>
    %28 = arith.addf %27, %26 : vector<8x256xf32>
    %29 = tpu.reciprocal %28 {approx = true} : vector<8x256xf32> -> vector<8x256xf32>
    %c0_20 = arith.constant 0 : index
    %c0_21 = arith.constant 0 : index
    %30 = vector.load %arg8[%c0_20, %c0_21] : memref<8x256xf32, #tpu.memory_space<vmem>>, vector<8x256xf32>
    tpu.vector_store %arg8[%c0_20, %c0_21], %29 {strides = array<i32>} : memref<8x256xf32, #tpu.memory_space<vmem>>, vector<8x256xf32>,
    return
  }
  func.func @transform_0(%arg0: i32) -> (i32, i32) {
    %c0_i32 = arith.constant 0 : i32
    %c0_i32_0 = arith.constant 0 : i32
    return %arg0, %c0_i32 : i32, i32
  }
  func.func @transform_1(%arg0: i32) -> (i32, i32) {
    %c0_i32 = arith.constant 0 : i32
    %c0_i32_0 = arith.constant 0 : i32
    %c0_i32_1 = arith.constant 0 : i32
    return %c0_i32, %c0_i32_0 : i32, i32
  }
  func.func @transform_2(%arg0: i32) -> (i32, i32) {
    %c0_i32 = arith.constant 0 : i32
    %c0_i32_0 = arith.constant 0 : i32
    %c0_i32_1 = arith.constant 0 : i32
    return %c0_i32, %c0_i32_0 : i32, i32
  }
  func.func @transform_3(%arg0: i32) -> (i32, i32) {
    %c0_i32 = arith.constant 0 : i32
    %c0_i32_0 = arith.constant 0 : i32
    %c0_i32_1 = arith.constant 0 : i32
    return %c0_i32, %c0_i32_0 : i32, i32
  }
  func.func @transform_4(%arg0: i32) -> (i32, i32) {
    %c0_i32 = arith.constant 0 : i32
    %c0_i32_0 = arith.constant 0 : i32
    %c0_i32_1 = arith.constant 0 : i32
    return %c0_i32, %c0_i32_0 : i32, i32
  }
  func.func @transform_5(%arg0: i32) -> (i32, i32) {
    %c0_i32 = arith.constant 0 : i32
    %c0_i32_0 = arith.constant 0 : i32
    %c0_i32_1 = arith.constant 0 : i32
    return %c0_i32, %c0_i32_0 : i32, i32
  }
  func.func @transform_6(%arg0: i32) -> (i32, i32) {
    %c0_i32 = arith.constant 0 : i32
    %c0_i32_0 = arith.constant 0 : i32
    %c0_i32_1 = arith.constant 0 : i32
    return %c0_i32, %c0_i32_0 : i32, i32
  }
  func.func @transform_7(%arg0: i32) -> (i32, i32) {
    %c0_i32 = arith.constant 0 : i32
    %c0_i32_0 = arith.constant 0 : i32
    return %arg0, %c0_i32 : i32, i32
  }
}

</mosaic_0001>

<llo_original>
// kernel: tile.13
$region0: #{tile.13}
  #allocation0 [shape = 's32[1]{0}', space=sflag, size = 0x4, scoped, tag = 'scoped memory for tile.13']
  %s0 = inlined_call_operand.vmem [shape: f32[6], index: 0, kind: input, shape index: {}]
  %s1 = inlined_call_operand.vmem [shape: f32[81,6], index: 1, kind: output, shape index: {}]
  // Predicated region
  $region2: #{tile.13} parent=0 // pred_check
    _
  $region3: #{tile.13} parent=0 // pred_check_branch
    %3 = sbr.rel (0) target = $region5
  $region4: #{tile.13} parent=0 // pred_region
    _
  $region5: #{tile.13} parent=0 // pred_fallthru
    _
  %v4 = vld [vmem:[%s0] ss:$0 sm:$0xff]
  %5 = vst [vmem:[%s1] sm:$0xff] %v4
  %s6 = scalar_lea.vmem %s1, 8
  %7 = vst [vmem:[%s6] sm:$0xff] %v4
  %s8 = scalar_lea.vmem %s1, 16
  %9 = vst [vmem:[%s8] sm:$0xff] %v4
  %s10 = scalar_lea.vmem %s1, 24
  %11 = vst [vmem:[%s10] sm:$0xff] %v4
  %s12 = scalar_lea.vmem %s1, 32
  %13 = vst [vmem:[%s12] sm:$0xff] %v4
  %s14 = scalar_lea.vmem %s1, 40
  %15 = vst [vmem:[%s14] sm:$0xff] %v4
  %s16 = scalar_lea.vmem %s1, 48
  %17 = vst [vmem:[%s16] sm:$0xff] %v4
  %s18 = scalar_lea.vmem %s1, 56
  %19 = vst [vmem:[%s18] sm:$0xff] %v4
  %s20 = scalar_lea.vmem %s1, 64
  %21 = vst [vmem:[%s20] sm:$0xff] %v4
  %s22 = scalar_lea.vmem %s1, 72
  %23 = vst [vmem:[%s22] sm:$0xff] %v4
  %s24 = scalar_lea.vmem %s1, 80
  %25 = vst [vmem:[%s24] sm:$0xff] %v4

// kernel: tile.14
$region0: #{tile.14}
  %s0 = inlined_call_operand.vmem [shape: f32[81,6], index: 0, kind: input, shape index: {}]
  %s1 = inlined_call_operand.vmem [shape: f32[1,486], index: 1, kind: output, shape index: {}]
  $region1: #{tile.14} parent=0
    #allocation0 [shape = 'u8[16384]{0}', space=vmem, size = 0x4000, scoped, tag = 'scoped mem for output reshape']
    %v2 = vld [vmem:[%s0] sm:$0x1]
    %s3 = scalar_lea.vmem %s0, 63
    %v4 = vld [vmem:[%s3] sm:$0x2]
    %vm5 = vcmask 1041409
    %v6 = vsel %vm5, %v4, %v2
    %vm7 = vcmask 48128
    %8 = vst.msk [vmem:[#allocation0] ss:$24 sm:$0x3] %vm7, %v6
    %s9 = scalar_lea.vmem %s0, 21
    %v10 = vld [vmem:[%s9] sm:$0x1]
    %s11 = scalar_lea.vmem %s0, 21
    %v12 = vld [vmem:[%s11] sm:$0x1]
    %vm13 = vcmask 15360
    %v14 = vsel %vm13, %v12, %v10
    %15 = vrot.lane.b32.xlu0 %v14, 126
    %v16 = vpop.permute.xlu0 %15
    %vm17 = vcmask 31744
    %s18 = scalar_lea.vmem [#allocation0], 8
    %19 = vst.msk [vmem:[%s18] sm:$0x1] %vm17, %v16
    %vm20 = vcmask 1048560
    %21 = vst.msk [vmem:[#allocation0] sm:$0x1] %vm20, %v16
    %s22 = scalar_lea.vmem %s0, 42
    %v23 = vld [vmem:[%s22] sm:$0x1]
    %s24 = scalar_lea.vmem %s0, 42
    %v25 = vld [vmem:[%s24] sm:$0x1]
    %vm26 = vcmask 31744
    %v27 = vsel %vm26, %v25, %v23
    %28 = vrot.lane.b32.xlu0 %v27, 124
    %v29 = vpop.permute.xlu0 %28
    %vm30 = vcmask 15360
    %s31 = scalar_lea.vmem [#allocation0], 16
    %32 = vst.msk [vmem:[%s31] sm:$0x1] %vm30, %v29
    %vm33 = vcmask 1048544
    %s34 = scalar_lea.vmem [#allocation0], 8
    %35 = vst.msk [vmem:[%s34] sm:$0x1] %vm33, %v29
    %s36 = scalar_lea.vmem %s0, 63
    %v37 = vld [vmem:[%s36] sm:$0x1]
    %38 = vrot.lane.b32.xlu0 %v37, 122
    %v39 = vpop.permute.xlu0 %38
    %vm40 = vcmask 1048528
    %s41 = scalar_lea.vmem [#allocation0], 16
    %42 = vst.msk [vmem:[%s41] sm:$0x1] %vm40, %v39
    %s43 = scalar_lea.vmem %s0, 20
    %v44 = vld [vmem:[%s43] sm:$0x1]
    %45 = vrot.lane.b32.xlu0 %v44, 120
    %v46 = vpop.permute.xlu0 %45
    %vm47 = vcmask 1032128
    %48 = vst.msk [vmem:[#allocation0] sm:$0x1] %vm47, %v46
    %s49 = scalar_lea.vmem %s0, 41
    %v50 = vld [vmem:[%s49] sm:$0x1]
    %51 = vrot.lane.b32.xlu0 %v50, 118
    %v52 = vpop.permute.xlu0 %51
    %vm53 = vcmask 1015728
    %s54 = scalar_lea.vmem [#allocation0], 8
    %55 = vst.msk [vmem:[%s54] sm:$0x1] %vm53, %v52
    %s56 = scalar_lea.vmem %s0, 62
    %v57 = vld [vmem:[%s56] sm:$0x1]
    %58 = vrot.lane.b32.xlu0 %v57, 116
    %v59 = vpop.permute.xlu0 %58
    %vm60 = vcmask 999328
    %s61 = scalar_lea.vmem [#allocation0], 16
    %62 = vst.msk [vmem:[%s61] sm:$0x1] %vm60, %v59
    %s63 = scalar_lea.vmem %s0, 19
    %v64 = vld [vmem:[%s63] sm:$0x1]
    %65 = vrot.lane.b32.xlu0 %v64, 114
    %v66 = vpop.permute.xlu0 %65
    %vm67 = vcmask 982928
    %68 = vst.msk [vmem:[#allocation0] sm:$0x1] %vm67, %v66
    %s69 = scalar_lea.vmem %s0, 40
    %v70 = vld [vmem:[%s69] sm:$0x1]
    %71 = vrot.lane.b32.xlu0 %v70, 112
    %v72 = vpop.permute.xlu0 %71
    %vm73 = vcmask 966528
    %s74 = scalar_lea.vmem [#allocation0], 8
    %75 = vst.msk [vmem:[%s74] sm:$0x1] %vm73, %v72
    %s76 = scalar_lea.vmem %s0, 61
    %v77 = vld [vmem:[%s76] sm:$0x1]
    %78 = vrot.lane.b32.xlu0 %v77, 110
    %v79 = vpop.permute.xlu0 %78
    %vm80 = vcmask 950128
    %s81 = scalar_lea.vmem [#allocation0], 16
    %82 = vst.msk [vmem:[%s81] sm:$0x1] %vm80, %v79
    %s83 = scalar_lea.vmem %s0, 18
    %v84 = vld [vmem:[%s83] sm:$0x1]
    %85 = vrot.lane.b32.xlu0 %v84, 108
    %v86 = vpop.permute.xlu0 %85
    %vm87 = vcmask 933728
    %88 = vst.msk [vmem:[#allocation0] sm:$0x1] %vm87, %v86
    %s89 = scalar_lea.vmem %s0, 39
    %v90 = vld [vmem:[%s89] sm:$0x1]
    %91 = vrot.lane.b32.xlu0 %v90, 106
    %v92 = vpop.permute.xlu0 %91
    %vm93 = vcmask 917328
    %s94 = scalar_lea.vmem [#allocation0], 8
    %95 = vst.msk [vmem:[%s94] sm:$0x1] %vm93, %v92
    %s96 = scalar_lea.vmem %s0, 60
    %v97 = vld [vmem:[%s96] sm:$0x1]
    %98 = vrot.lane.b32.xlu0 %v97, 104
    %v99 = vpop.permute.xlu0 %98
    %vm100 = vcmask 900928
    %s101 = scalar_lea.vmem [#allocation0], 16
    %102 = vst.msk [vmem:[%s101] sm:$0x1] %vm100, %v99
    %s103 = scalar_lea.vmem %s0, 17
    %v104 = vld [vmem:[%s103] sm:$0x1]
    %105 = vrot.lane.b32.xlu0 %v104, 102
    %v106 = vpop.permute.xlu0 %105
    %vm107 = vcmask 884528
    %108 = vst.msk [vmem:[#allocation0] sm:$0x1] %vm107, %v106
    %s109 = scalar_lea.vmem %s0, 38
    %v110 = vld [vmem:[%s109] sm:$0x1]
    %111 = vrot.lane.b32.xlu0 %v110, 100
    %v112 = vpop.permute.xlu0 %111
    %vm113 = vcmask 868128
    %s114 = scalar_lea.vmem [#allocation0], 8
    %115 = vst.msk [vmem:[%s114] sm:$0x1] %vm113, %v112
    %s116 = scalar_lea.vmem %s0, 59
    %v117 = vld [vmem:[%s116] sm:$0x1]
    %118 = vrot.lane.b32.xlu0 %v117, 98
    %v119 = vpop.permute.xlu0 %118
    %vm120 = vcmask 851728
    %s121 = scalar_lea.vmem [#allocation0], 16
    %122 = vst.msk [vmem:[%s121] sm:$0x1] %vm120, %v119
    %s123 = scalar_lea.vmem %s0, 16
    %v124 = vld [vmem:[%s123] sm:$0x1]
    %s125 = scalar_lea.vmem %s0, 79
    %v126 = vld [vmem:[%s125] sm:$0x2]
    %vm127 = vcmask 1041409
    %v128 = vsel %vm127, %v126, %v124
    %129 = vrot.lane.b32.xlu0 %v128, 96
    %v130 = vpop.permute.xlu0 %129
    %vm131 = vcmask 835328
    %132 = vst.msk [vmem:[#allocation0] ss:$24 sm:$0x3] %vm131, %v130
    %s133 = scalar_lea.vmem %s0, 37
    %v134 = vld [vmem:[%s133] sm:$0x1]
    %135 = vrot.lane.b32.xlu0 %v134, 94
    %v136 = vpop.permute.xlu0 %135
    %vm137 = vcmask 818928
    %s138 = scalar_lea.vmem [#allocation0], 8
    %139 = vst.msk [vmem:[%s138] sm:$0x1] %vm137, %v136
    %s140 = scalar_lea.vmem %s0, 58
    %v141 = vld [vmem:[%s140] sm:$0x1]
    %142 = vrot.lane.b32.xlu0 %v141, 92
    %v143 = vpop.permute.xlu0 %142
    %vm144 = vcmask 802528
    %s145 = scalar_lea.vmem [#allocation0], 16
    %146 = vst.msk [vmem:[%s145] sm:$0x1] %vm144, %v143
    %s147 = scalar_lea.vmem %s0, 15
    %v148 = vld [vmem:[%s147] sm:$0x1]
    %s149 = scalar_lea.vmem %s0, 78
    %v150 = vld [vmem:[%s149] sm:$0x2]
    %vm151 = vcmask 1041409
    %v152 = vsel %vm151, %v150, %v148
    %153 = vrot.lane.b32.xlu0 %v152, 90
    %v154 = vpop.permute.xlu0 %153
    %vm155 = vcmask 786128
    %156 = vst.msk [vmem:[#allocation0] ss:$24 sm:$0x3] %vm155, %v154
    %s157 = scalar_lea.vmem %s0, 36
    %v158 = vld [vmem:[%s157] sm:$0x1]
    %159 = vrot.lane.b32.xlu0 %v158, 88
    %v160 = vpop.permute.xlu0 %159
    %vm161 = vcmask 769728
    %s162 = scalar_lea.vmem [#allocation0], 8
    %163 = vst.msk [vmem:[%s162] sm:$0x1] %vm161, %v160
    %s164 = scalar_lea.vmem %s0, 57
    %v165 = vld [vmem:[%s164] sm:$0x1]
    %166 = vrot.lane.b32.xlu0 %v165, 86
    %v167 = vpop.permute.xlu0 %166
    %vm168 = vcmask 753328
    %s169 = scalar_lea.vmem [#allocation0], 16
    %170 = vst.msk [vmem:[%s169] sm:$0x1] %vm168, %v167
    %s171 = scalar_lea.vmem %s0, 14
    %v172 = vld [vmem:[%s171] sm:$0x1]
    %s173 = scalar_lea.vmem %s0, 77
    %v174 = vld [vmem:[%s173] sm:$0x2]
    %vm175 = vcmask 1041409
    %v176 = vsel %vm175, %v174, %v172
    %177 = vrot.lane.b32.xlu0 %v176, 84
    %v178 = vpop.permute.xlu0 %177
    %vm179 = vcmask 736928
    %180 = vst.msk [vmem:[#allocation0] ss:$24 sm:$0x3] %vm179, %v178
    %s181 = scalar_lea.vmem %s0, 35
    %v182 = vld [vmem:[%s181] sm:$0x1]
    %183 = vrot.lane.b32.xlu0 %v182, 82
    %v184 = vpop.permute.xlu0 %183
    %vm185 = vcmask 720528
    %s186 = scalar_lea.vmem [#allocation0], 8
    %187 = vst.msk [vmem:[%s186] sm:$0x1] %vm185, %v184
    %s188 = scalar_lea.vmem %s0, 56
    %v189 = vld [vmem:[%s188] sm:$0x1]
    %190 = vrot.lane.b32.xlu0 %v189, 80
    %v191 = vpop.permute.xlu0 %190
    %vm192 = vcmask 704128
    %s193 = scalar_lea.vmem [#allocation0], 16
    %194 = vst.msk [vmem:[%s193] sm:$0x1] %vm192, %v191
    %s195 = scalar_lea.vmem %s0, 13
    %v196 = vld [vmem:[%s195] sm:$0x1]
    %s197 = scalar_lea.vmem %s0, 76
    %v198 = vld [vmem:[%s197] sm:$0x2]
    %vm199 = vcmask 1041409
    %v200 = vsel %vm199, %v198, %v196
    %201 = vrot.lane.b32.xlu0 %v200, 78
    %v202 = vpop.permute.xlu0 %201
    %vm203 = vcmask 687728
    %204 = vst.msk [vmem:[#allocation0] ss:$24 sm:$0x3] %vm203, %v202
    %s205 = scalar_lea.vmem %s0, 34
    %v206 = vld [vmem:[%s205] sm:$0x1]
    %207 = vrot.lane.b32.xlu0 %v206, 76
    %v208 = vpop.permute.xlu0 %207
    %vm209 = vcmask 671328
    %s210 = scalar_lea.vmem [#allocation0], 8
    %211 = vst.msk [vmem:[%s210] sm:$0x1] %vm209, %v208
    %s212 = scalar_lea.vmem %s0, 55
    %v213 = vld [vmem:[%s212] sm:$0x1]
    %214 = vrot.lane.b32.xlu0 %v213, 74
    %v215 = vpop.permute.xlu0 %214
    %vm216 = vcmask 654928
    %s217 = scalar_lea.vmem [#allocation0], 16
    %218 = vst.msk [vmem:[%s217] sm:$0x1] %vm216, %v215
    %s219 = scalar_lea.vmem %s0, 12
    %v220 = vld [vmem:[%s219] sm:$0x1]
    %s221 = scalar_lea.vmem %s0, 75
    %v222 = vld [vmem:[%s221] sm:$0x2]
    %vm223 = vcmask 1041409
    %v224 = vsel %vm223, %v222, %v220
    %225 = vrot.lane.b32.xlu0 %v224, 72
    %v226 = vpop.permute.xlu0 %225
    %vm227 = vcmask 638528
    %228 = vst.msk [vmem:[#allocation0] ss:$24 sm:$0x3] %vm227, %v226
    %s229 = scalar_lea.vmem %s0, 33
    %v230 = vld [vmem:[%s229] sm:$0x1]
    %231 = vrot.lane.b32.xlu0 %v230, 70
    %v232 = vpop.permute.xlu0 %231
    %vm233 = vcmask 622128
    %s234 = scalar_lea.vmem [#allocation0], 8
    %235 = vst.msk [vmem:[%s234] sm:$0x1] %vm233, %v232
    %s236 = scalar_lea.vmem %s0, 54
    %v237 = vld [vmem:[%s236] sm:$0x1]
    %238 = vrot.lane.b32.xlu0 %v237, 68
    %v239 = vpop.permute.xlu0 %238
    %vm240 = vcmask 605728
    %s241 = scalar_lea.vmem [#allocation0], 16
    %242 = vst.msk [vmem:[%s241] sm:$0x1] %vm240, %v239
    %s243 = scalar_lea.vmem %s0, 11
    %v244 = vld [vmem:[%s243] sm:$0x1]
    %s245 = scalar_lea.vmem %s0, 74
    %v246 = vld [vmem:[%s245] sm:$0x2]
    %vm247 = vcmask 1041409
    %v248 = vsel %vm247, %v246, %v244
    %249 = vrot.lane.b32.xlu0 %v248, 66
    %v250 = vpop.permute.xlu0 %249
    %vm251 = vcmask 589328
    %252 = vst.msk [vmem:[#allocation0] ss:$24 sm:$0x3] %vm251, %v250
    %s253 = scalar_lea.vmem %s0, 32
    %v254 = vld [vmem:[%s253] sm:$0x1]
    %255 = vrot.lane.b32.xlu0 %v254, 64
    %v256 = vpop.permute.xlu0 %255
    %vm257 = vcmask 572928
    %s258 = scalar_lea.vmem [#allocation0], 8
    %259 = vst.msk [vmem:[%s258] sm:$0x1] %vm257, %v256
    %s260 = scalar_lea.vmem %s0, 53
    %v261 = vld [vmem:[%s260] sm:$0x1]
    %262 = vrot.lane.b32.xlu0 %v261, 62
    %v263 = vpop.permute.xlu0 %262
    %vm264 = vcmask 556528
    %s265 = scalar_lea.vmem [#allocation0], 16
    %266 = vst.msk [vmem:[%s265] sm:$0x1] %vm264, %v263
    %s267 = scalar_lea.vmem %s0, 10
    %v268 = vld [vmem:[%s267] sm:$0x1]
    %s269 = scalar_lea.vmem %s0, 73
    %v270 = vld [vmem:[%s269] sm:$0x2]
    %vm271 = vcmask 1041409
    %v272 = vsel %vm271, %v270, %v268
    %273 = vrot.lane.b32.xlu0 %v272, 60
    %v274 = vpop.permute.xlu0 %273
    %vm275 = vcmask 540128
    %276 = vst.msk [vmem:[#allocation0] ss:$24 sm:$0x3] %vm275, %v274
    %s277 = scalar_lea.vmem %s0, 31
    %v278 = vld [vmem:[%s277] sm:$0x1]
    %279 = vrot.lane.b32.xlu0 %v278, 58
    %v280 = vpop.permute.xlu0 %279
    %vm281 = vcmask 523728
    %s282 = scalar_lea.vmem [#allocation0], 8
    %283 = vst.msk [vmem:[%s282] sm:$0x1] %vm281, %v280
    %s284 = scalar_lea.vmem %s0, 52
    %v285 = vld [vmem:[%s284] sm:$0x1]
    %286 = vrot.lane.b32.xlu0 %v285, 56
    %v287 = vpop.permute.xlu0 %286
    %vm288 = vcmask 507328
    %s289 = scalar_lea.vmem [#allocation0], 16
    %290 = vst.msk [vmem:[%s289] sm:$0x1] %vm288, %v287
    %s291 = scalar_lea.vmem %s0, 9
    %v292 = vld [vmem:[%s291] sm:$0x1]
    %s293 = scalar_lea.vmem %s0, 72
    %v294 = vld [vmem:[%s293] sm:$0x2]
    %vm295 = vcmask 1041409
    %v296 = vsel %vm295, %v294, %v292
    %297 = vrot.lane.b32.xlu0 %v296, 54
    %v298 = vpop.permute.xlu0 %297
    %vm299 = vcmask 490928
    %300 = vst.msk [vmem:[#allocation0] ss:$24 sm:$0x3] %vm299, %v298
    %s301 = scalar_lea.vmem %s0, 30
    %v302 = vld [vmem:[%s301] sm:$0x1]
    %303 = vrot.lane.b32.xlu0 %v302, 52
    %v304 = vpop.permute.xlu0 %303
    %vm305 = vcmask 474528
    %s306 = scalar_lea.vmem [#allocation0], 8
    %307 = vst.msk [vmem:[%s306] sm:$0x1] %vm305, %v304
    %s308 = scalar_lea.vmem %s0, 51
    %v309 = vld [vmem:[%s308] sm:$0x1]
    %310 = vrot.lane.b32.xlu0 %v309, 50
    %v311 = vpop.permute.xlu0 %310
    %vm312 = vcmask 458128
    %s313 = scalar_lea.vmem [#allocation0], 16
    %314 = vst.msk [vmem:[%s313] sm:$0x1] %vm312, %v311
    %s315 = scalar_lea.vmem %s0, 8
    %v316 = vld [vmem:[%s315] sm:$0x1]
    %s317 = scalar_lea.vmem %s0, 71
    %v318 = vld [vmem:[%s317] sm:$0x2]
    %vm319 = vcmask 1041409
    %v320 = vsel %vm319, %v318, %v316
    %321 = vrot.lane.b32.xlu0 %v320, 48
    %v322 = vpop.permute.xlu0 %321
    %vm323 = vcmask 441728
    %324 = vst.msk [vmem:[#allocation0] ss:$24 sm:$0x3] %vm323, %v322
    %s325 = scalar_lea.vmem %s0, 29
    %v326 = vld [vmem:[%s325] sm:$0x1]
    %327 = vrot.lane.b32.xlu0 %v326, 46
    %v328 = vpop.permute.xlu0 %327
    %vm329 = vcmask 425328
    %s330 = scalar_lea.vmem [#allocation0], 8
    %331 = vst.msk [vmem:[%s330] sm:$0x1] %vm329, %v328
    %s332 = scalar_lea.vmem %s0, 50
    %v333 = vld [vmem:[%s332] sm:$0x1]
    %334 = vrot.lane.b32.xlu0 %v333, 44
    %v335 = vpop.permute.xlu0 %334
    %vm336 = vcmask 408928
    %s337 = scalar_lea.vmem [#allocation0], 16
    %338 = vst.msk [vmem:[%s337] sm:$0x1] %vm336, %v335
    %s339 = scalar_lea.vmem %s0, 7
    %v340 = vld [vmem:[%s339] sm:$0x1]
    %s341 = scalar_lea.vmem %s0, 70
    %v342 = vld [vmem:[%s341] sm:$0x2]
    %vm343 = vcmask 1041409
    %v344 = vsel %vm343, %v342, %v340
    %345 = vrot.lane.b32.xlu0 %v344, 42
    %v346 = vpop.permute.xlu0 %345
    %vm347 = vcmask 392528
    %348 = vst.msk [vmem:[#allocation0] ss:$24 sm:$0x3] %vm347, %v346
    %s349 = scalar_lea.vmem %s0, 28
    %v350 = vld [vmem:[%s349] sm:$0x1]
    %351 = vrot.lane.b32.xlu0 %v350, 40
    %v352 = vpop.permute.xlu0 %351
    %vm353 = vcmask 376128
    %s354 = scalar_lea.vmem [#allocation0], 8
    %355 = vst.msk [vmem:[%s354] sm:$0x1] %vm353, %v352
    %s356 = scalar_lea.vmem %s0, 49
    %v357 = vld [vmem:[%s356] sm:$0x1]
    %358 = vrot.lane.b32.xlu0 %v357, 38
    %v359 = vpop.permute.xlu0 %358
    %vm360 = vcmask 359728
    %s361 = scalar_lea.vmem [#allocation0], 16
    %362 = vst.msk [vmem:[%s361] sm:$0x1] %vm360, %v359
    %s363 = scalar_lea.vmem %s0, 6
    %v364 = vld [vmem:[%s363] sm:$0x1]
    %s365 = scalar_lea.vmem %s0, 69
    %v366 = vld [vmem:[%s365] sm:$0x2]
    %vm367 = vcmask 1041409
    %v368 = vsel %vm367, %v366, %v364
    %369 = vrot.lane.b32.xlu0 %v368, 36
    %v370 = vpop.permute.xlu0 %369
    %vm371 = vcmask 343328
    %372 = vst.msk [vmem:[#allocation0] ss:$24 sm:$0x3] %vm371, %v370
    %s373 = scalar_lea.vmem %s0, 27
    %v374 = vld [vmem:[%s373] sm:$0x1]
    %375 = vrot.lane.b32.xlu0 %v374, 34
    %v376 = vpop.permute.xlu0 %375
    %vm377 = vcmask 326928
    %s378 = scalar_lea.vmem [#allocation0], 8
    %379 = vst.msk [vmem:[%s378] sm:$0x1] %vm377, %v376
    %s380 = scalar_lea.vmem %s0, 48
    %v381 = vld [vmem:[%s380] sm:$0x1]
    %382 = vrot.lane.b32.xlu0 %v381, 32
    %v383 = vpop.permute.xlu0 %382
    %vm384 = vcmask 310528
    %s385 = scalar_lea.vmem [#allocation0], 16
    %386 = vst.msk [vmem:[%s385] sm:$0x1] %vm384, %v383
    %s387 = scalar_lea.vmem %s0, 5
    %v388 = vld [vmem:[%s387] sm:$0x1]
    %s389 = scalar_lea.vmem %s0, 68
    %v390 = vld [vmem:[%s389] sm:$0x2]
    %vm391 = vcmask 1041409
    %v392 = vsel %vm391, %v390, %v388
    %393 = vrot.lane.b32.xlu0 %v392, 30
    %v394 = vpop.permute.xlu0 %393
    %vm395 = vcmask 294128
    %396 = vst.msk [vmem:[#allocation0] ss:$24 sm:$0x3] %vm395, %v394
    %s397 = scalar_lea.vmem %s0, 26
    %v398 = vld [vmem:[%s397] sm:$0x1]
    %399 = vrot.lane.b32.xlu0 %v398, 28
    %v400 = vpop.permute.xlu0 %399
    %vm401 = vcmask 277728
    %s402 = scalar_lea.vmem [#allocation0], 8
    %403 = vst.msk [vmem:[%s402] sm:$0x1] %vm401, %v400
    %s404 = scalar_lea.vmem %s0, 47
    %v405 = vld [vmem:[%s404] sm:$0x1]
    %406 = vrot.lane.b32.xlu0 %v405, 26
    %v407 = vpop.permute.xlu0 %406
    %vm408 = vcmask 261328
    %s409 = scalar_lea.vmem [#allocation0], 16
    %410 = vst.msk [vmem:[%s409] sm:$0x1] %vm408, %v407
    %s411 = scalar_lea.vmem %s0, 4
    %v412 = vld [vmem:[%s411] sm:$0x1]
    %s413 = scalar_lea.vmem %s0, 67
    %v414 = vld [vmem:[%s413] sm:$0x2]
    %vm415 = vcmask 1041409
    %v416 = vsel %vm415, %v414, %v412
    %417 = vrot.lane.b32.xlu0 %v416, 24
    %v418 = vpop.permute.xlu0 %417
    %vm419 = vcmask 244928
    %420 = vst.msk [vmem:[#allocation0] ss:$24 sm:$0x3] %vm419, %v418
    %s421 = scalar_lea.vmem %s0, 25
    %v422 = vld [vmem:[%s421] sm:$0x1]
    %423 = vrot.lane.b32.xlu0 %v422, 22
    %v424 = vpop.permute.xlu0 %423
    %vm425 = vcmask 228528
    %s426 = scalar_lea.vmem [#allocation0], 8
    %427 = vst.msk [vmem:[%s426] sm:$0x1] %vm425, %v424
    %s428 = scalar_lea.vmem %s0, 46
    %v429 = vld [vmem:[%s428] sm:$0x1]
    %430 = vrot.lane.b32.xlu0 %v429, 20
    %v431 = vpop.permute.xlu0 %430
    %vm432 = vcmask 212128
    %s433 = scalar_lea.vmem [#allocation0], 16
    %434 = vst.msk [vmem:[%s433] sm:$0x1] %vm432, %v431
    %s435 = scalar_lea.vmem %s0, 3
    %v436 = vld [vmem:[%s435] sm:$0x1]
    %s437 = scalar_lea.vmem %s0, 66
    %v438 = vld [vmem:[%s437] sm:$0x2]
    %vm439 = vcmask 1041409
    %v440 = vsel %vm439, %v438, %v436
    %441 = vrot.lane.b32.xlu0 %v440, 18
    %v442 = vpop.permute.xlu0 %441
    %vm443 = vcmask 195728
    %444 = vst.msk [vmem:[#allocation0] ss:$24 sm:$0x3] %vm443, %v442
    %s445 = scalar_lea.vmem %s0, 24
    %v446 = vld [vmem:[%s445] sm:$0x1]
    %447 = vrot.lane.b32.xlu0 %v446, 16
    %v448 = vpop.permute.xlu0 %447
    %vm449 = vcmask 179328
    %s450 = scalar_lea.vmem [#allocation0], 8
    %451 = vst.msk [vmem:[%s450] sm:$0x1] %vm449, %v448
    %s452 = scalar_lea.vmem %s0, 45
    %v453 = vld [vmem:[%s452] sm:$0x1]
    %454 = vrot.lane.b32.xlu0 %v453, 14
    %v455 = vpop.permute.xlu0 %454
    %vm456 = vcmask 162928
    %s457 = scalar_lea.vmem [#allocation0], 16
    %458 = vst.msk [vmem:[%s457] sm:$0x1] %vm456, %v455
    %s459 = scalar_lea.vmem %s0, 2
    %v460 = vld [vmem:[%s459] sm:$0x1]
    %s461 = scalar_lea.vmem %s0, 65
    %v462 = vld [vmem:[%s461] sm:$0x2]
    %vm463 = vcmask 1041409
    %v464 = vsel %vm463, %v462, %v460
    %465 = vrot.lane.b32.xlu0 %v464, 12
    %v466 = vpop.permute.xlu0 %465
    %vm467 = vcmask 146528
    %468 = vst.msk [vmem:[#allocation0] ss:$24 sm:$0x3] %vm467, %v466
    %s469 = scalar_lea.vmem %s0, 23
    %v470 = vld [vmem:[%s469] sm:$0x1]
    %471 = vrot.lane.b32.xlu0 %v470, 10
    %v472 = vpop.permute.xlu0 %471
    %vm473 = vcmask 130128
    %s474 = scalar_lea.vmem [#allocation0], 8
    %475 = vst.msk [vmem:[%s474] sm:$0x1] %vm473, %v472
    %s476 = scalar_lea.vmem %s0, 44
    %v477 = vld [vmem:[%s476] sm:$0x1]
    %478 = vrot.lane.b32.xlu0 %v477, 8
    %v479 = vpop.permute.xlu0 %478
    %vm480 = vcmask 113728
    %s481 = scalar_lea.vmem [#allocation0], 16
    %482 = vst.msk [vmem:[%s481] sm:$0x1] %vm480, %v479
    %s483 = scalar_lea.vmem %s0, 1
    %v484 = vld [vmem:[%s483] sm:$0x1]
    %s485 = scalar_lea.vmem %s0, 64
    %v486 = vld [vmem:[%s485] sm:$0x2]
    %vm487 = vcmask 1041409
    %v488 = vsel %vm487, %v486, %v484
    %489 = vrot.lane.b32.xlu0 %v488, 6
    %v490 = vpop.permute.xlu0 %489
    %vm491 = vcmask 97328
    %492 = vst.msk [vmem:[#allocation0] ss:$24 sm:$0x3] %vm491, %v490
    %s493 = scalar_lea.vmem %s0, 22
    %v494 = vld [vmem:[%s493] sm:$0x1]
    %495 = vrot.lane.b32.xlu0 %v494, 4
    %v496 = vpop.permute.xlu0 %495
    %vm497 = vcmask 80928
    %s498 = scalar_lea.vmem [#allocation0], 8
    %499 = vst.msk [vmem:[%s498] sm:$0x1] %vm497, %v496
    %s500 = scalar_lea.vmem %s0, 43
    %v501 = vld [vmem:[%s500] sm:$0x1]
    %502 = vrot.lane.b32.xlu0 %v501, 2
    %v503 = vpop.permute.xlu0 %502
    %vm504 = vcmask 64528
    %s505 = scalar_lea.vmem [#allocation0], 16
    %506 = vst.msk [vmem:[%s505] sm:$0x1] %vm504, %v503
    %s508 = sshll.u32 1, 1
    %s509 = ssub.s32 %s508, 1
    %v511 = vld [vmem:[#allocation0] sm:%s509]
    %s512 = sshll.u32 1, 1
    %s513 = ssub.s32 %s512, 1
    %514 = vst [vmem:[%s1] sm:%s513] %v511
    %s515 = scalar_lea.vmem [#allocation0], 8
    %v516 = vld [vmem:[%s515] sm:%s509]
    %s517 = sshll.u32 1, 1
    %s518 = ssub.s32 %s517, 1
    %s519 = scalar_lea.vmem %s1, 1
    %520 = vst [vmem:[%s519] sm:%s518] %v516
    %s521 = scalar_lea.vmem [#allocation0], 16
    %v522 = vld [vmem:[%s521] sm:%s509]
    %s523 = sshll.u32 1, 1
    %s524 = ssub.s32 %s523, 1
    %s525 = smul.addr 1, 2
    %s526 = scalar_lea.vmem %s1, %s525
    %527 = vst [vmem:[%s526] sm:%s524] %v522
    %s528 = scalar_lea.vmem [#allocation0], 24
    %v529 = vld [vmem:[%s528] sm:%s509]
    %s530 = sshll.u32 1, 1
    %s531 = ssub.s32 %s530, 1
    %s532 = smul.addr 1, 3
    %s533 = scalar_lea.vmem %s1, %s532
    %534 = vst [vmem:[%s533] sm:%s531] %v529

// kernel: tile.18
$region0: #{tile.18}
  #allocation0 [shape = 's32[1]{0}', space=sflag, size = 0x4, scoped, tag = 'scoped memory for tile.18']
  %s0 = inlined_call_operand.vmem [shape: f32[16], index: 0, kind: input, shape index: {}]
  %s1 = inlined_call_operand.vmem [shape: f32[49,16], index: 1, kind: output, shape index: {}]
  // Predicated region
  $region2: #{tile.18} parent=0 // pred_check
    _
  $region3: #{tile.18} parent=0 // pred_check_branch
    %3 = sbr.rel (0) target = $region5
  $region4: #{tile.18} parent=0 // pred_region
    _
  $region5: #{tile.18} parent=0 // pred_fallthru
    _
  %v4 = vld [vmem:[%s0] ss:$0 sm:$0xff]
  %5 = vst [vmem:[%s1] sm:$0xff] %v4
  %s6 = scalar_lea.vmem %s1, 8
  %7 = vst [vmem:[%s6] sm:$0xff] %v4
  %s8 = scalar_lea.vmem %s1, 16
  %9 = vst [vmem:[%s8] sm:$0xff] %v4
  %s10 = scalar_lea.vmem %s1, 24
  %11 = vst [vmem:[%s10] sm:$0xff] %v4
  %s12 = scalar_lea.vmem %s1, 32
  %13 = vst [vmem:[%s12] sm:$0xff] %v4
  %s14 = scalar_lea.vmem %s1, 40
  %15 = vst [vmem:[%s14] sm:$0xff] %v4
  %s16 = scalar_lea.vmem %s1, 48
  %17 = vst [vmem:[%s16] sm:$0xff] %v4

// kernel: tile.19
$region0: #{tile.19}
  %s0 = inlined_call_operand.vmem [shape: f32[49,16], index: 0, kind: input, shape index: {}]
  %s1 = inlined_call_operand.vmem [shape: f32[1,784], index: 1, kind: output, shape index: {}]
  $region1: #{tile.19} parent=0
    #allocation0 [shape = 'u8[28672]{0}', space=vmem, size = 0x7000, scoped, tag = 'scoped mem for output reshape']
    %v2 = vld [vmem:[%s0] ss:$8 sm:$0xf]
    %v3 = vld [vmem:[%s0] ss:$8 sm:$0x70]
    %vm4 = vcmask 1046532
    %v5 = vsel %vm4, %v3, %v2
    %vm6 = vcmask 130048
    %7 = vst.msk [vmem:[#allocation0] ss:$8 sm:$0xf] %vm6, %v5
    %8 = vst.msk [vmem:[#allocation0] ss:$8 sm:$0x70] %vm6, %v5
    %s9 = scalar_lea.vmem %s0, 7
    %v10 = vld [vmem:[%s9] ss:$8 sm:$0xf]
    %s11 = scalar_lea.vmem %s0, 7
    %s12 = smov 48
    %v13 = vld [vmem:[%s11] ss:$8 sm:%s12]
    %vm14 = vcmask 1045508
    %v15 = vsel %vm14, %v13, %v10
    %16 = vrot.lane.b32.xlu0 %v15, 112
    %v17 = vpop.permute.xlu0 %16
    %vm18 = vcmask 1048448
    %19 = vst.msk [vmem:[#allocation0] ss:$8 sm:$0xf] %vm18, %v17
    %20 = vst.msk [vmem:[#allocation0] ss:$8 sm:$0x30] %vm18, %v17
    %s21 = scalar_lea.vmem %s0, 6
    %v22 = vld [vmem:[%s21] ss:$8 sm:$0xf]
    %s23 = scalar_lea.vmem %s0, 6
    %s24 = smov 48
    %v25 = vld [vmem:[%s23] ss:$8 sm:%s24]
    %vm26 = vcmask 1045508
    %v27 = vsel %vm26, %v25, %v22
    %28 = vrot.lane.b32.xlu0 %v27, 96
    %v29 = vpop.permute.xlu0 %28
    %vm30 = vcmask 917248
    %31 = vst.msk [vmem:[#allocation0] ss:$8 sm:$0xf] %vm30, %v29
    %32 = vst.msk [vmem:[#allocation0] ss:$8 sm:$0x30] %vm30, %v29
    %s33 = scalar_lea.vmem %s0, 5
    %v34 = vld [vmem:[%s33] ss:$8 sm:$0xf]
    %s35 = scalar_lea.vmem %s0, 5
    %s36 = smov 48
    %v37 = vld [vmem:[%s35] ss:$8 sm:%s36]
    %vm38 = vcmask 1045508
    %v39 = vsel %vm38, %v37, %v34
    %40 = vrot.lane.b32.xlu0 %v39, 80
    %v41 = vpop.permute.xlu0 %40
    %vm42 = vcmask 786048
    %43 = vst.msk [vmem:[#allocation0] ss:$8 sm:$0xf] %vm42, %v41
    %44 = vst.msk [vmem:[#allocation0] ss:$8 sm:$0x30] %vm42, %v41
    %s45 = scalar_lea.vmem %s0, 4
    %v46 = vld [vmem:[%s45] ss:$8 sm:$0xf]
    %s47 = scalar_lea.vmem %s0, 4
    %s48 = smov 48
    %v49 = vld [vmem:[%s47] ss:$8 sm:%s48]
    %vm50 = vcmask 1045508
    %v51 = vsel %vm50, %v49, %v46
    %52 = vrot.lane.b32.xlu0 %v51, 64
    %v53 = vpop.permute.xlu0 %52
    %vm54 = vcmask 654848
    %55 = vst.msk [vmem:[#allocation0] ss:$8 sm:$0xf] %vm54, %v53
    %56 = vst.msk [vmem:[#allocation0] ss:$8 sm:$0x30] %vm54, %v53
    %s57 = scalar_lea.vmem %s0, 3
    %v58 = vld [vmem:[%s57] ss:$8 sm:$0xf]
    %s59 = scalar_lea.vmem %s0, 3
    %s60 = smov 48
    %v61 = vld [vmem:[%s59] ss:$8 sm:%s60]
    %vm62 = vcmask 1045508
    %v63 = vsel %vm62, %v61, %v58
    %64 = vrot.lane.b32.xlu0 %v63, 48
    %v65 = vpop.permute.xlu0 %64
    %vm66 = vcmask 523648
    %67 = vst.msk [vmem:[#allocation0] ss:$8 sm:$0xf] %vm66, %v65
    %68 = vst.msk [vmem:[#allocation0] ss:$8 sm:$0x30] %vm66, %v65
    %s69 = scalar_lea.vmem %s0, 2
    %v70 = vld [vmem:[%s69] ss:$8 sm:$0xf]
    %s71 = scalar_lea.vmem %s0, 2
    %s72 = smov 48
    %v73 = vld [vmem:[%s71] ss:$8 sm:%s72]
    %vm74 = vcmask 1045508
    %v75 = vsel %vm74, %v73, %v70
    %76 = vrot.lane.b32.xlu0 %v75, 32
    %v77 = vpop.permute.xlu0 %76
    %vm78 = vcmask 392448
    %79 = vst.msk [vmem:[#allocation0] ss:$8 sm:$0xf] %vm78, %v77
    %80 = vst.msk [vmem:[#allocation0] ss:$8 sm:$0x30] %vm78, %v77
    %s81 = scalar_lea.vmem %s0, 1
    %v82 = vld [vmem:[%s81] ss:$8 sm:$0xf]
    %s83 = scalar_lea.vmem %s0, 1
    %s84 = smov 48
    %v85 = vld [vmem:[%s83] ss:$8 sm:%s84]
    %vm86 = vcmask 1045508
    %v87 = vsel %vm86, %v85, %v82
    %88 = vrot.lane.b32.xlu0 %v87, 16
    %v89 = vpop.permute.xlu0 %88
    %vm90 = vcmask 261248
    %91 = vst.msk [vmem:[#allocation0] ss:$8 sm:$0xf] %vm90, %v89
    %92 = vst.msk [vmem:[#allocation0] ss:$8 sm:$0x30] %vm90, %v89
    %s94 = sshll.u32 1, 1
    %s95 = ssub.s32 %s94, 1
    %v97 = vld [vmem:[#allocation0] sm:%s95]
    %s98 = sshll.u32 1, 1
    %s99 = ssub.s32 %s98, 1
    %100 = vst [vmem:[%s1] sm:%s99] %v97
    %s101 = scalar_lea.vmem [#allocation0], 8
    %v102 = vld [vmem:[%s101] sm:%s95]
    %s103 = sshll.u32 1, 1
    %s104 = ssub.s32 %s103, 1
    %s105 = scalar_lea.vmem %s1, 1
    %106 = vst [vmem:[%s105] sm:%s104] %v102
    %s107 = scalar_lea.vmem [#allocation0], 16
    %v108 = vld [vmem:[%s107] sm:%s95]
    %s109 = sshll.u32 1, 1
    %s110 = ssub.s32 %s109, 1
    %s111 = smul.addr 1, 2
    %s112 = scalar_lea.vmem %s1, %s111
    %113 = vst [vmem:[%s112] sm:%s110] %v108
    %s114 = scalar_lea.vmem [#allocation0], 24
    %v115 = vld [vmem:[%s114] sm:%s95]
    %s116 = sshll.u32 1, 1
    %s117 = ssub.s32 %s116, 1
    %s118 = smul.addr 1, 3
    %s119 = scalar_lea.vmem %s1, %s118
    %120 = vst [vmem:[%s119] sm:%s117] %v115
    %s121 = scalar_lea.vmem [#allocation0], 32
    %v122 = vld [vmem:[%s121] sm:%s95]
    %s123 = sshll.u32 1, 1
    %s124 = ssub.s32 %s123, 1
    %s125 = smul.addr 1, 4
    %s126 = scalar_lea.vmem %s1, %s125
    %127 = vst [vmem:[%s126] sm:%s124] %v122
    %s128 = scalar_lea.vmem [#allocation0], 40
    %v129 = vld [vmem:[%s128] sm:%s95]
    %s130 = sshll.u32 1, 1
    %s131 = ssub.s32 %s130, 1
    %s132 = smul.addr 1, 5
    %s133 = scalar_lea.vmem %s1, %s132
    %134 = vst [vmem:[%s133] sm:%s131] %v129
    %s135 = scalar_lea.vmem [#allocation0], 48
    %v136 = vld [vmem:[%s135] sm:%s95]
    %s137 = sshll.u32 1, 1
    %s138 = ssub.s32 %s137, 1
    %s139 = smul.addr 1, 6
    %s140 = scalar_lea.vmem %s1, %s139
    %141 = vst [vmem:[%s140] sm:%s138] %v136

// kernel: smallnet_forward.1
$region0: #{smallnet_forward.1}
  #allocation0 [shape = 'u32[]', space=smem, size = 0x4, offset = 0x4, fixed_abs, tag = 'smem constant byte address 0x4 - core index']
  #allocation1 [shape = 'u32[144,128]{1,0:T(1,128)}', space=vmem, size = 0x12000, scoped, tag = 'internal scratch']
  %s0 = inlined_call_operand.vmem [shape: bf16[8,338], index: 0, kind: input, shape index: {}]
  %s1 = inlined_call_operand.vmem [shape: bf16[338,486], index: 1, kind: input, shape index: {}]
  %s2 = inlined_call_operand.vmem [shape: f32[1,486], index: 2, kind: input, shape index: {}]
  %s3 = inlined_call_operand.vmem [shape: bf16[486,784], index: 3, kind: input, shape index: {}]
  %s4 = inlined_call_operand.vmem [shape: f32[1,784], index: 4, kind: input, shape index: {}]
  %s5 = inlined_call_operand.vmem [shape: bf16[784,256], index: 5, kind: input, shape index: {}]
  %s6 = inlined_call_operand.vmem [shape: f32[1,256], index: 6, kind: input, shape index: {}]
  %s7 = inlined_call_operand.vmem [shape: f32[8,256], index: 7, kind: output, shape index: {}]
  %s8 = sld [smem:[#allocation0]]
  $region38: #{smallnet_forward.1} parent=0
    _
  %s10 = ssub.s32 1, %s8
  %s11 = scalar_select 0, %s10, %s8
  // Predicated region
  $region2: #{smallnet_forward.1} parent=0 // pred_check
    _
  $region3: #{smallnet_forward.1} parent=0 // pred_check_branch
    %13 = sbr.rel (0) target = $region5
  $region4: #{smallnet_forward.1} parent=0 // pred_region
    _
  $region5: #{smallnet_forward.1} parent=0 // pred_fallthru
    _
  // Predicated region
  $region6: #{smallnet_forward.1} parent=0 // pred_check
    _
  $region7: #{smallnet_forward.1} parent=0 // pred_check_branch
    %15 = sbr.rel (0) target = $region9
  $region8: #{smallnet_forward.1} parent=0 // pred_region
    _
  $region9: #{smallnet_forward.1} parent=0 // pred_fallthru
    _
  // Predicated region
  $region10: #{smallnet_forward.1} parent=0 // pred_check
    _
  $region11: #{smallnet_forward.1} parent=0 // pred_check_branch
    %17 = sbr.rel (0) target = $region13
  $region12: #{smallnet_forward.1} parent=0 // pred_region
    _
  $region13: #{smallnet_forward.1} parent=0 // pred_fallthru
    _
  // Predicated region
  $region14: #{smallnet_forward.1} parent=0 // pred_check
    _
  $region15: #{smallnet_forward.1} parent=0 // pred_check_branch
    %19 = sbr.rel (0) target = $region17
  $region16: #{smallnet_forward.1} parent=0 // pred_region
    _
  $region17: #{smallnet_forward.1} parent=0 // pred_fallthru
    _
  // Predicated region
  $region18: #{smallnet_forward.1} parent=0 // pred_check
    _
  $region19: #{smallnet_forward.1} parent=0 // pred_check_branch
    %21 = sbr.rel (0) target = $region21
  $region20: #{smallnet_forward.1} parent=0 // pred_region
    _
  $region21: #{smallnet_forward.1} parent=0 // pred_fallthru
    _
  // Predicated region
  $region22: #{smallnet_forward.1} parent=0 // pred_check
    _
  $region23: #{smallnet_forward.1} parent=0 // pred_check_branch
    %23 = sbr.rel (0) target = $region25
  $region24: #{smallnet_forward.1} parent=0 // pred_region
    _
  $region25: #{smallnet_forward.1} parent=0 // pred_fallthru
    _
  // Predicated region
  $region26: #{smallnet_forward.1} parent=0 // pred_check
    _
  $region27: #{smallnet_forward.1} parent=0 // pred_check_branch
    %25 = sbr.rel (0) target = $region29
  $region28: #{smallnet_forward.1} parent=0 // pred_region
    _
  $region29: #{smallnet_forward.1} parent=0 // pred_fallthru
    _
  %v27 = vld [vmem:[%s0] sm:$0xff]
  %v28 = vld [vmem:[%s0 + $0x8] sm:$0xf]
  %v29 = vld [vmem:[%s1] sm:$0xff]
  %v30 = vld [vmem:[%s1 + $0x8] sm:$0xff]
  %v31 = vld [vmem:[%s1 + $0x10] sm:$0xff]
  %v32 = vld [vmem:[%s1 + $0x18] sm:$0xff]
  %v33 = vld [vmem:[%s1 + $0x20] sm:$0xff]
  %v34 = vld [vmem:[%s1 + $0x28] sm:$0xff]
  %v35 = vld [vmem:[%s1 + $0x30] sm:$0xff]
  %v36 = vld [vmem:[%s1 + $0x38] sm:$0xff]
  %v37 = vld [vmem:[%s1 + $0x40] sm:$0xff]
  %v38 = vld [vmem:[%s1 + $0x48] sm:$0xff]
  %v39 = vld [vmem:[%s1 + $0x50] sm:$0xff]
  %v40 = vld [vmem:[%s1 + $0x58] sm:$0xff]
  %v41 = vld [vmem:[%s1 + $0x60] sm:$0xff]
  %v42 = vld [vmem:[%s1 + $0x68] sm:$0xff]
  %v43 = vld [vmem:[%s1 + $0x70] sm:$0xff]
  %v44 = vld [vmem:[%s1 + $0x78] sm:$0xff]
  %v45 = vld [vmem:[%s1 + $0x80] sm:$0xff]
  %v46 = vld [vmem:[%s1 + $0x88] sm:$0xff]
  %v47 = vld [vmem:[%s1 + $0x90] sm:$0xff]
  %v48 = vld [vmem:[%s1 + $0x98] sm:$0xff]
  %v49 = vld [vmem:[%s1 + $0xa0] sm:$0xff]
  %v50 = vld [vmem:[%s1 + $0xa8] sm:$0xff]
  %v51 = vld [vmem:[%s1 + $0xb0] sm:$0xff]
  %v52 = vld [vmem:[%s1 + $0xb8] sm:$0xff]
  %v53 = vld [vmem:[%s1 + $0xc0] sm:$0xff]
  %v54 = vld [vmem:[%s1 + $0xc8] sm:$0xff]
  %v55 = vld [vmem:[%s1 + $0xd0] sm:$0xff]
  %v56 = vld [vmem:[%s1 + $0xd8] sm:$0xff]
  %v57 = vld [vmem:[%s1 + $0xe0] sm:$0xff]
  %v58 = vld [vmem:[%s1 + $0xe8] sm:$0xff]
  %v59 = vld [vmem:[%s1 + $0xf0] sm:$0xff]
  %v60 = vld [vmem:[%s1 + $0xf8] sm:$0xff]
  %v61 = vld [vmem:[%s1 + $0x100] sm:$0xff]
  %v62 = vld [vmem:[%s1 + $0x108] sm:$0xff]
  %v63 = vld [vmem:[%s1 + $0x110] sm:$0xff]
  %v64 = vld [vmem:[%s1 + $0x118] sm:$0xff]
  %v65 = vld [vmem:[%s1 + $0x120] sm:$0xff]
  %v66 = vld [vmem:[%s1 + $0x128] sm:$0xff]
  %v67 = vld [vmem:[%s1 + $0x130] sm:$0xff]
  %v68 = vld [vmem:[%s1 + $0x138] sm:$0xff]
  %v69 = vld [vmem:[%s1 + $0x140] sm:$0xff]
  %v70 = vld [vmem:[%s1 + $0x148] sm:$0xff]
  %v71 = vld [vmem:[%s1 + $0x150] sm:$0xff]
  %v72 = vld [vmem:[%s1 + $0x158] sm:$0xff]
  %v73 = vld [vmem:[%s1 + $0x160] sm:$0xff]
  %v74 = vld [vmem:[%s1 + $0x168] sm:$0xff]
  %v75 = vld [vmem:[%s1 + $0x170] sm:$0xff]
  %v76 = vld [vmem:[%s1 + $0x178] sm:$0xff]
  %v77 = vld [vmem:[%s1 + $0x180] sm:$0xff]
  %v78 = vld [vmem:[%s1 + $0x188] sm:$0xff]
  %v79 = vld [vmem:[%s1 + $0x190] sm:$0xff]
  %v80 = vld [vmem:[%s1 + $0x198] sm:$0xff]
  %v81 = vld [vmem:[%s1 + $0x1a0] sm:$0xff]
  %v82 = vld [vmem:[%s1 + $0x1a8] sm:$0xff]
  %v83 = vld [vmem:[%s1 + $0x1b0] sm:$0xff]
  %v84 = vld [vmem:[%s1 + $0x1b8] sm:$0xff]
  %v85 = vld [vmem:[%s1 + $0x1c0] sm:$0xff]
  %v86 = vld [vmem:[%s1 + $0x1c8] sm:$0xff]
  %v87 = vld [vmem:[%s1 + $0x1d0] sm:$0xff]
  %v88 = vld [vmem:[%s1 + $0x1d8] sm:$0xff]
  %v89 = vld [vmem:[%s1 + $0x1e0] sm:$0xff]
  %v90 = vld [vmem:[%s1 + $0x1e8] sm:$0xff]
  %v91 = vld [vmem:[%s1 + $0x1f0] sm:$0xff]
  %v92 = vld [vmem:[%s1 + $0x1f8] sm:$0xff]
  %v93 = vld [vmem:[%s1 + $0x200] sm:$0xff]
  %v94 = vld [vmem:[%s1 + $0x208] sm:$0xff]
  %v95 = vld [vmem:[%s1 + $0x210] sm:$0xff]
  %v96 = vld [vmem:[%s1 + $0x218] sm:$0xff]
  %v97 = vld [vmem:[%s1 + $0x220] sm:$0xff]
  %v98 = vld [vmem:[%s1 + $0x228] sm:$0xff]
  %v99 = vld [vmem:[%s1 + $0x230] sm:$0xff]
  %v100 = vld [vmem:[%s1 + $0x238] sm:$0xff]
  %v101 = vld [vmem:[%s1 + $0x240] sm:$0xff]
  %v102 = vld [vmem:[%s1 + $0x248] sm:$0xff]
  %v103 = vld [vmem:[%s1 + $0x250] sm:$0xff]
  %v104 = vld [vmem:[%s1 + $0x258] sm:$0xff]
  %v105 = vld [vmem:[%s1 + $0x260] sm:$0xff]
  %v106 = vld [vmem:[%s1 + $0x268] sm:$0xff]
  %v107 = vld [vmem:[%s1 + $0x270] sm:$0xff]
  %v108 = vld [vmem:[%s1 + $0x278] sm:$0xff]
  %v109 = vld [vmem:[%s1 + $0x280] sm:$0xff]
  %v110 = vld [vmem:[%s1 + $0x288] sm:$0xff]
  %v111 = vld [vmem:[%s1 + $0x290] sm:$0xff]
  %v112 = vld [vmem:[%s1 + $0x298] sm:$0xff]
  %v113 = vld [vmem:[%s1 + $0x2a0] sm:$0x11]
  %v114 = vld [vmem:[%s1 + $0x2a8] sm:$0x11]
  %v115 = vld [vmem:[%s2] sm:$0xf]
  %v117 = vlaneseq
  %v118 = vshrl.u32 %v117, 7
  %v119 = vsub.s32 0, %v118
  %v120 = vrot.slane %v115, %v119
  %v121 = vlaneseq
  %v122 = vshrl.u32 %v121, 7
  %v123 = vsub.s32 1, %v122
  %v124 = vrot.slane %v115, %v123
  %v125 = vlaneseq
  %v126 = vshrl.u32 %v125, 7
  %v127 = vsub.s32 2, %v126
  %v128 = vrot.slane %v115, %v127
  %v129 = vlaneseq
  %v130 = vshrl.u32 %v129, 7
  %v131 = vsub.s32 3, %v130
  %v132 = vrot.slane %v115, %v131
  %v139 = vunpack.c.l.b16 %v27
  %v140 = vunpack.c.h.b16 %v27
  %v141 = vunpack.c.l.b16 %v28
  %v142 = vpack.c.b16 %v139, %v139
  %v143 = vpack.c.b16 %v140, %v140
  %v144 = vpack.c.b16 %v141, %v141
  %v233 = vunpack.c.l.b16 %v29
  %v234 = vunpack.c.h.b16 %v29
  %v235 = vunpack.c.l.b16 %v30
  %v236 = vunpack.c.h.b16 %v30
  %v237 = vunpack.c.l.b16 %v31
  %v238 = vunpack.c.h.b16 %v31
  %v239 = vunpack.c.l.b16 %v32
  %v240 = vunpack.c.h.b16 %v32
  %v241 = vunpack.c.l.b16 %v33
  %v242 = vunpack.c.h.b16 %v33
  %v243 = vunpack.c.l.b16 %v34
  %v244 = vunpack.c.h.b16 %v34
  %v245 = vunpack.c.l.b16 %v35
  %v246 = vunpack.c.h.b16 %v35
  %v247 = vunpack.c.l.b16 %v36
  %v248 = vunpack.c.h.b16 %v36
  %v249 = vunpack.c.l.b16 %v37
  %v250 = vunpack.c.h.b16 %v37
  %v251 = vunpack.c.l.b16 %v38
  %v252 = vunpack.c.h.b16 %v38
  %v253 = vunpack.c.l.b16 %v39
  %v254 = vunpack.c.h.b16 %v39
  %v255 = vunpack.c.l.b16 %v40
  %v256 = vunpack.c.h.b16 %v40
  %v257 = vunpack.c.l.b16 %v41
  %v258 = vunpack.c.h.b16 %v41
  %v259 = vunpack.c.l.b16 %v42
  %v260 = vunpack.c.h.b16 %v42
  %v261 = vunpack.c.l.b16 %v43
  %v262 = vunpack.c.h.b16 %v43
  %v263 = vunpack.c.l.b16 %v44
  %v264 = vunpack.c.h.b16 %v44
  %v265 = vunpack.c.l.b16 %v45
  %v266 = vunpack.c.h.b16 %v45
  %v267 = vunpack.c.l.b16 %v46
  %v268 = vunpack.c.h.b16 %v46
  %v269 = vunpack.c.l.b16 %v47
  %v270 = vunpack.c.h.b16 %v47
  %v271 = vunpack.c.l.b16 %v48
  %v272 = vunpack.c.h.b16 %v48
  %v273 = vunpack.c.l.b16 %v49
  %v274 = vunpack.c.h.b16 %v49
  %v275 = vunpack.c.l.b16 %v50
  %v276 = vunpack.c.h.b16 %v50
  %v277 = vunpack.c.l.b16 %v51
  %v278 = vunpack.c.h.b16 %v51
  %v279 = vunpack.c.l.b16 %v52
  %v280 = vunpack.c.h.b16 %v52
  %v281 = vunpack.c.l.b16 %v53
  %v282 = vunpack.c.h.b16 %v53
  %v283 = vunpack.c.l.b16 %v54
  %v284 = vunpack.c.h.b16 %v54
  %v285 = vunpack.c.l.b16 %v55
  %v286 = vunpack.c.h.b16 %v55
  %v287 = vunpack.c.l.b16 %v56
  %v288 = vunpack.c.h.b16 %v56
  %v289 = vunpack.c.l.b16 %v57
  %v290 = vunpack.c.h.b16 %v57
  %v291 = vunpack.c.l.b16 %v58
  %v292 = vunpack.c.h.b16 %v58
  %v293 = vunpack.c.l.b16 %v59
  %v294 = vunpack.c.h.b16 %v59
  %v295 = vunpack.c.l.b16 %v60
  %v296 = vunpack.c.h.b16 %v60
  %v297 = vunpack.c.l.b16 %v61
  %v298 = vunpack.c.h.b16 %v61
  %v299 = vunpack.c.l.b16 %v62
  %v300 = vunpack.c.h.b16 %v62
  %v301 = vunpack.c.l.b16 %v63
  %v302 = vunpack.c.h.b16 %v63
  %v303 = vunpack.c.l.b16 %v64
  %v304 = vunpack.c.h.b16 %v64
  %v305 = vunpack.c.l.b16 %v65
  %v306 = vunpack.c.h.b16 %v65
  %v307 = vunpack.c.l.b16 %v66
  %v308 = vunpack.c.h.b16 %v66
  %v309 = vunpack.c.l.b16 %v67
  %v310 = vunpack.c.h.b16 %v67
  %v311 = vunpack.c.l.b16 %v68
  %v312 = vunpack.c.h.b16 %v68
  %v313 = vunpack.c.l.b16 %v69
  %v314 = vunpack.c.h.b16 %v69
  %v315 = vunpack.c.l.b16 %v70
  %v316 = vunpack.c.h.b16 %v70
  %v317 = vunpack.c.l.b16 %v71
  %v318 = vunpack.c.h.b16 %v71
  %v319 = vunpack.c.l.b16 %v72
  %v320 = vunpack.c.h.b16 %v72
  %v321 = vunpack.c.l.b16 %v73
  %v322 = vunpack.c.h.b16 %v73
  %v323 = vunpack.c.l.b16 %v74
  %v324 = vunpack.c.h.b16 %v74
  %v325 = vunpack.c.l.b16 %v75
  %v326 = vunpack.c.h.b16 %v75
  %v327 = vunpack.c.l.b16 %v76
  %v328 = vunpack.c.h.b16 %v76
  %v329 = vunpack.c.l.b16 %v77
  %v330 = vunpack.c.h.b16 %v77
  %v331 = vunpack.c.l.b16 %v78
  %v332 = vunpack.c.h.b16 %v78
  %v333 = vunpack.c.l.b16 %v79
  %v334 = vunpack.c.h.b16 %v79
  %v335 = vunpack.c.l.b16 %v80
  %v336 = vunpack.c.h.b16 %v80
  %v337 = vunpack.c.l.b16 %v81
  %v338 = vunpack.c.h.b16 %v81
  %v339 = vunpack.c.l.b16 %v82
  %v340 = vunpack.c.h.b16 %v82
  %v341 = vunpack.c.l.b16 %v83
  %v342 = vunpack.c.h.b16 %v83
  %v343 = vunpack.c.l.b16 %v84
  %v344 = vunpack.c.h.b16 %v84
  %v345 = vunpack.c.l.b16 %v85
  %v346 = vunpack.c.h.b16 %v85
  %v347 = vunpack.c.l.b16 %v86
  %v348 = vunpack.c.h.b16 %v86
  %v349 = vunpack.c.l.b16 %v87
  %v350 = vunpack.c.h.b16 %v87
  %v351 = vunpack.c.l.b16 %v88
  %v352 = vunpack.c.h.b16 %v88
  %v353 = vunpack.c.l.b16 %v89
  %v354 = vunpack.c.h.b16 %v89
  %v355 = vunpack.c.l.b16 %v90
  %v356 = vunpack.c.h.b16 %v90
  %v357 = vunpack.c.l.b16 %v91
  %v358 = vunpack.c.h.b16 %v91
  %v359 = vunpack.c.l.b16 %v92
  %v360 = vunpack.c.h.b16 %v92
  %v361 = vunpack.c.l.b16 %v93
  %v362 = vunpack.c.h.b16 %v93
  %v363 = vunpack.c.l.b16 %v94
  %v364 = vunpack.c.h.b16 %v94
  %v365 = vunpack.c.l.b16 %v95
  %v366 = vunpack.c.h.b16 %v95
  %v367 = vunpack.c.l.b16 %v96
  %v368 = vunpack.c.h.b16 %v96
  %v369 = vunpack.c.l.b16 %v97
  %v370 = vunpack.c.h.b16 %v97
  %v371 = vunpack.c.l.b16 %v98
  %v372 = vunpack.c.h.b16 %v98
  %v373 = vunpack.c.l.b16 %v99
  %v374 = vunpack.c.h.b16 %v99
  %v375 = vunpack.c.l.b16 %v100
  %v376 = vunpack.c.h.b16 %v100
  %v377 = vunpack.c.l.b16 %v101
  %v378 = vunpack.c.h.b16 %v101
  %v379 = vunpack.c.l.b16 %v102
  %v380 = vunpack.c.h.b16 %v102
  %v381 = vunpack.c.l.b16 %v103
  %v382 = vunpack.c.h.b16 %v103
  %v383 = vunpack.c.l.b16 %v104
  %v384 = vunpack.c.h.b16 %v104
  %v385 = vunpack.c.l.b16 %v105
  %v386 = vunpack.c.h.b16 %v105
  %v387 = vunpack.c.l.b16 %v106
  %v388 = vunpack.c.h.b16 %v106
  %v389 = vunpack.c.l.b16 %v107
  %v390 = vunpack.c.h.b16 %v107
  %v391 = vunpack.c.l.b16 %v108
  %v392 = vunpack.c.h.b16 %v108
  %v393 = vunpack.c.l.b16 %v109
  %v394 = vunpack.c.h.b16 %v109
  %v395 = vunpack.c.l.b16 %v110
  %v396 = vunpack.c.h.b16 %v110
  %v397 = vunpack.c.l.b16 %v111
  %v398 = vunpack.c.h.b16 %v111
  %v399 = vunpack.c.l.b16 %v112
  %v400 = vunpack.c.h.b16 %v112
  %v401 = vunpack.c.l.b16 %v113
  %v402 = vunpack.c.h.b16 %v113
  %v403 = vunpack.c.l.b16 %v114
  %v404 = vunpack.c.h.b16 %v114
  %v405 = vpack.c.b16 %v237, %v233
  %v406 = vpack.c.b16 %v238, %v234
  %v407 = vpack.c.b16 %v239, %v235
  %v408 = vpack.c.b16 %v240, %v236
  %v409 = vpack.c.b16 %v245, %v241
  %v410 = vpack.c.b16 %v246, %v242
  %v411 = vpack.c.b16 %v247, %v243
  %v412 = vpack.c.b16 %v248, %v244
  %v413 = vpack.c.b16 %v253, %v249
  %v414 = vpack.c.b16 %v254, %v250
  %v415 = vpack.c.b16 %v255, %v251
  %v416 = vpack.c.b16 %v256, %v252
  %v417 = vpack.c.b16 %v261, %v257
  %v418 = vpack.c.b16 %v262, %v258
  %v419 = vpack.c.b16 %v263, %v259
  %v420 = vpack.c.b16 %v264, %v260
  %v421 = vpack.c.b16 %v269, %v265
  %v422 = vpack.c.b16 %v270, %v266
  %v423 = vpack.c.b16 %v271, %v267
  %v424 = vpack.c.b16 %v272, %v268
  %v425 = vpack.c.b16 %v277, %v273
  %v426 = vpack.c.b16 %v278, %v274
  %v427 = vpack.c.b16 %v279, %v275
  %v428 = vpack.c.b16 %v280, %v276
  %v429 = vpack.c.b16 %v285, %v281
  %v430 = vpack.c.b16 %v286, %v282
  %v431 = vpack.c.b16 %v287, %v283
  %v432 = vpack.c.b16 %v288, %v284
  %v433 = vpack.c.b16 %v293, %v289
  %v434 = vpack.c.b16 %v294, %v290
  %v435 = vpack.c.b16 %v295, %v291
  %v436 = vpack.c.b16 %v296, %v292
  %v437 = vpack.c.b16 %v301, %v297
  %v438 = vpack.c.b16 %v302, %v298
  %v439 = vpack.c.b16 %v303, %v299
  %v440 = vpack.c.b16 %v304, %v300
  %v441 = vpack.c.b16 %v309, %v305
  %v442 = vpack.c.b16 %v310, %v306
  %v443 = vpack.c.b16 %v311, %v307
  %v444 = vpack.c.b16 %v312, %v308
  %v445 = vpack.c.b16 %v317, %v313
  %v446 = vpack.c.b16 %v318, %v314
  %v447 = vpack.c.b16 %v319, %v315
  %v448 = vpack.c.b16 %v320, %v316
  %v449 = vpack.c.b16 %v325, %v321
  %v450 = vpack.c.b16 %v326, %v322
  %v451 = vpack.c.b16 %v327, %v323
  %v452 = vpack.c.b16 %v328, %v324
  %v453 = vpack.c.b16 %v333, %v329
  %v454 = vpack.c.b16 %v334, %v330
  %v455 = vpack.c.b16 %v335, %v331
  %v456 = vpack.c.b16 %v336, %v332
  %v457 = vpack.c.b16 %v341, %v337
  %v458 = vpack.c.b16 %v342, %v338
  %v459 = vpack.c.b16 %v343, %v339
  %v460 = vpack.c.b16 %v344, %v340
  %v461 = vpack.c.b16 %v349, %v345
  %v462 = vpack.c.b16 %v350, %v346
  %v463 = vpack.c.b16 %v351, %v347
  %v464 = vpack.c.b16 %v352, %v348
  %v465 = vpack.c.b16 %v357, %v353
  %v466 = vpack.c.b16 %v358, %v354
  %v467 = vpack.c.b16 %v359, %v355
  %v468 = vpack.c.b16 %v360, %v356
  %v469 = vpack.c.b16 %v365, %v361
  %v470 = vpack.c.b16 %v366, %v362
  %v471 = vpack.c.b16 %v367, %v363
  %v472 = vpack.c.b16 %v368, %v364
  %v473 = vpack.c.b16 %v373, %v369
  %v474 = vpack.c.b16 %v374, %v370
  %v475 = vpack.c.b16 %v375, %v371
  %v476 = vpack.c.b16 %v376, %v372
  %v477 = vpack.c.b16 %v381, %v377
  %v478 = vpack.c.b16 %v382, %v378
  %v479 = vpack.c.b16 %v383, %v379
  %v480 = vpack.c.b16 %v384, %v380
  %v481 = vpack.c.b16 %v389, %v385
  %v482 = vpack.c.b16 %v390, %v386
  %v483 = vpack.c.b16 %v391, %v387
  %v484 = vpack.c.b16 %v392, %v388
  %v485 = vpack.c.b16 %v397, %v393
  %v486 = vpack.c.b16 %v398, %v394
  %v487 = vpack.c.b16 %v399, %v395
  %v488 = vpack.c.b16 %v400, %v396
  %v489 = vpack.c.b16 %v401, %v401
  %v490 = vpack.c.b16 %v402, %v402
  %v491 = vpack.c.b16 %v403, %v403
  %v492 = vpack.c.b16 %v404, %v404
  %vm577 = vcmask 670720
  %v579 = vsel %vm577, %v144, 0
  %vm581 = vcmask 1040384
  %v583 = vsel %vm581, %v489, 0
  %v586 = vsel %vm581, %v490, 0
  %v589 = vsel %vm581, %v491, 0
  %v592 = vsel %vm581, %v492, 0
  %594 = vmatprep.subr.bf16.mxu0 %v434
  %595 = vmatpush1.bf16.msra.mxu0 %v433
  %596 = vmatprep.subr.bf16.mxu0 %v430
  %597 = vmatpush1.bf16.msra.mxu0 %v429
  %598 = vmatprep.subr.bf16.mxu0 %v426
  %599 = vmatpush1.bf16.msra.mxu0 %v425
  %600 = vmatprep.subr.bf16.mxu0 %v422
  %601 = vmatpush1.bf16.msra.mxu0 %v421
  %602 = vmatprep.subr.bf16.mxu0 %v418
  %603 = vmatpush1.bf16.msra.mxu0 %v417
  %604 = vmatprep.subr.bf16.mxu0 %v414
  %605 = vmatpush1.bf16.msra.mxu0 %v413
  %606 = vmatprep.subr.bf16.mxu0 %v410
  %607 = vmatpush1.bf16.msra.mxu0 %v409
  %608 = vmatprep.subr.bf16.mxu0 %v406
  %609 = vmatpush1.bf16.msra.mxu0 %v405
  %610 = vmatprep.subr.bf16.mxu0 %v466
  %611 = vmatpush2.bf16.msra.mxu0 %v465
  %612 = vmatprep.subr.bf16.mxu0 %v462
  %613 = vmatpush2.bf16.msra.mxu0 %v461
  %614 = vmatprep.subr.bf16.mxu0 %v458
  %615 = vmatpush2.bf16.msra.mxu0 %v457
  %616 = vmatprep.subr.bf16.mxu0 %v454
  %617 = vmatpush2.bf16.msra.mxu0 %v453
  %618 = vmatprep.subr.bf16.mxu0 %v450
  %619 = vmatpush2.bf16.msra.mxu0 %v449
  %620 = vmatprep.subr.bf16.mxu0 %v446
  %621 = vmatpush2.bf16.msra.mxu0 %v445
  %622 = vmatprep.subr.bf16.mxu0 %v442
  %623 = vmatpush2.bf16.msra.mxu0 %v441
  %624 = vmatprep.subr.bf16.mxu0 %v438
  %625 = vmatpush2.bf16.msra.mxu0 %v437
  %626 = vmatprep.mubr.bf16.mxu0 %v143
  %627 = vmatmul.mubr.bf16.gmra.mxu0 %v142
  %v628 = vpop.f32.mrf.mxu0
  %v629 = vadd.f32 %v120, %v628
  %v630 = vpop.f32.mrf.mxu0
  %v631 = vadd.f32 %v124, %v630
  %v632 = vpop.f32.mrf.mxu0
  %v633 = vpop.f32.mrf.mxu0
  %634 = vdwg.mxu0
  %635 = vmatprep.subr.bf16.mxu0 0
  %636 = vmatpush1.bf16.msra.mxu0 0
  %637 = vmatprep.subr.bf16.mxu0 0
  %638 = vmatpush1.bf16.msra.mxu0 0
  %639 = vmatprep.subr.bf16.mxu0 %v586
  %640 = vmatpush1.bf16.msra.mxu0 %v583
  %641 = vmatprep.subr.bf16.mxu0 %v486
  %642 = vmatpush1.bf16.msra.mxu0 %v485
  %643 = vmatprep.subr.bf16.mxu0 %v482
  %644 = vmatpush1.bf16.msra.mxu0 %v481
  %645 = vmatprep.subr.bf16.mxu0 %v478
  %646 = vmatpush1.bf16.msra.mxu0 %v477
  %647 = vmatprep.subr.bf16.mxu0 %v474
  %648 = vmatpush1.bf16.msra.mxu0 %v473
  %649 = vmatprep.subr.bf16.mxu0 %v470
  %650 = vmatpush1.bf16.msra.mxu0 %v469
  %651 = vmatprep.subr.bf16.mxu0 0
  %652 = vmatpush2.bf16.msra.mxu0 0
  %653 = vmatprep.subr.bf16.mxu0 0
  %654 = vmatpush2.bf16.msra.mxu0 0
  %655 = vmatprep.subr.bf16.mxu0 0
  %656 = vmatpush2.bf16.msra.mxu0 0
  %657 = vmatprep.subr.bf16.mxu0 0
  %658 = vmatpush2.bf16.msra.mxu0 0
  %659 = vmatprep.subr.bf16.mxu0 0
  %660 = vmatpush2.bf16.msra.mxu0 0
  %661 = vmatprep.subr.bf16.mxu0 0
  %662 = vmatpush2.bf16.msra.mxu0 0
  %663 = vmatprep.subr.bf16.mxu0 0
  %664 = vmatpush2.bf16.msra.mxu0 0
  %665 = vmatprep.subr.bf16.mxu0 0
  %666 = vmatpush2.bf16.msra.mxu0 0
  %667 = vmatprep.mubr.bf16.mxu0 0
  %668 = vmatmul.mubr.bf16.gmra.mxu0 %v579
  %v669 = vpop.f32.mrf.mxu0
  %v670 = vadd.f32 %v629, %v669
  %v671 = vpop.f32.mrf.mxu0
  %v672 = vadd.f32 %v631, %v671
  %v673 = vpop.f32.mrf.mxu0
  %v674 = vpop.f32.mrf.mxu0
  %675 = vdwg.mxu0
  %676 = vmatprep.subr.bf16.mxu0 %v436
  %677 = vmatpush1.bf16.msra.mxu0 %v435
  %678 = vmatprep.subr.bf16.mxu0 %v432
  %679 = vmatpush1.bf16.msra.mxu0 %v431
  %680 = vmatprep.subr.bf16.mxu0 %v428
  %681 = vmatpush1.bf16.msra.mxu0 %v427
  %682 = vmatprep.subr.bf16.mxu0 %v424
  %683 = vmatpush1.bf16.msra.mxu0 %v423
  %684 = vmatprep.subr.bf16.mxu0 %v420
  %685 = vmatpush1.bf16.msra.mxu0 %v419
  %686 = vmatprep.subr.bf16.mxu0 %v416
  %687 = vmatpush1.bf16.msra.mxu0 %v415
  %688 = vmatprep.subr.bf16.mxu0 %v412
  %689 = vmatpush1.bf16.msra.mxu0 %v411
  %690 = vmatprep.subr.bf16.mxu0 %v408
  %691 = vmatpush1.bf16.msra.mxu0 %v407
  %692 = vmatprep.subr.bf16.mxu0 %v468
  %693 = vmatpush2.bf16.msra.mxu0 %v467
  %694 = vmatprep.subr.bf16.mxu0 %v464
  %695 = vmatpush2.bf16.msra.mxu0 %v463
  %696 = vmatprep.subr.bf16.mxu0 %v460
  %697 = vmatpush2.bf16.msra.mxu0 %v459
  %698 = vmatprep.subr.bf16.mxu0 %v456
  %699 = vmatpush2.bf16.msra.mxu0 %v455
  %700 = vmatprep.subr.bf16.mxu0 %v452
  %701 = vmatpush2.bf16.msra.mxu0 %v451
  %702 = vmatprep.subr.bf16.mxu0 %v448
  %703 = vmatpush2.bf16.msra.mxu0 %v447
  %704 = vmatprep.subr.bf16.mxu0 %v444
  %705 = vmatpush2.bf16.msra.mxu0 %v443
  %706 = vmatprep.subr.bf16.mxu0 %v440
  %707 = vmatpush2.bf16.msra.mxu0 %v439
  %708 = vmatprep.mubr.bf16.mxu0 %v143
  %709 = vmatmul.mubr.bf16.gmra.mxu0 %v142
  %v710 = vpop.f32.mrf.mxu0
  %v711 = vadd.f32 %v128, %v710
  %v712 = vpop.f32.mrf.mxu0
  %v713 = vadd.f32 %v132, %v712
  %v714 = vpop.f32.mrf.mxu0
  %v715 = vpop.f32.mrf.mxu0
  %716 = vdwg.mxu0
  %717 = vmatprep.subr.bf16.mxu0 0
  %718 = vmatpush1.bf16.msra.mxu0 0
  %719 = vmatprep.subr.bf16.mxu0 0
  %720 = vmatpush1.bf16.msra.mxu0 0
  %721 = vmatprep.subr.bf16.mxu0 %v592
  %722 = vmatpush1.bf16.msra.mxu0 %v589
  %723 = vmatprep.subr.bf16.mxu0 %v488
  %724 = vmatpush1.bf16.msra.mxu0 %v487
  %725 = vmatprep.subr.bf16.mxu0 %v484
  %726 = vmatpush1.bf16.msra.mxu0 %v483
  %727 = vmatprep.subr.bf16.mxu0 %v480
  %728 = vmatpush1.bf16.msra.mxu0 %v479
  %729 = vmatprep.subr.bf16.mxu0 %v476
  %730 = vmatpush1.bf16.msra.mxu0 %v475
  %731 = vmatprep.subr.bf16.mxu0 %v472
  %732 = vmatpush1.bf16.msra.mxu0 %v471
  %733 = vmatprep.subr.bf16.mxu0 0
  %734 = vmatpush2.bf16.msra.mxu0 0
  %735 = vmatprep.subr.bf16.mxu0 0
  %736 = vmatpush2.bf16.msra.mxu0 0
  %737 = vmatprep.subr.bf16.mxu0 0
  %738 = vmatpush2.bf16.msra.mxu0 0
  %739 = vmatprep.subr.bf16.mxu0 0
  %740 = vmatpush2.bf16.msra.mxu0 0
  %741 = vmatprep.subr.bf16.mxu0 0
  %742 = vmatpush2.bf16.msra.mxu0 0
  %743 = vmatprep.subr.bf16.mxu0 0
  %744 = vmatpush2.bf16.msra.mxu0 0
  %745 = vmatprep.subr.bf16.mxu0 0
  %746 = vmatpush2.bf16.msra.mxu0 0
  %747 = vmatprep.subr.bf16.mxu0 0
  %748 = vmatpush2.bf16.msra.mxu0 0
  %749 = vmatprep.mubr.bf16.mxu0 0
  %750 = vmatmul.mubr.bf16.gmra.mxu0 %v579
  %v751 = vpop.f32.mrf.mxu0
  %v752 = vadd.f32 %v711, %v751
  %v753 = vpop.f32.mrf.mxu0
  %v754 = vadd.f32 %v713, %v753
  %v755 = vpop.f32.mrf.mxu0
  %v756 = vpop.f32.mrf.mxu0
  %757 = vdwg.mxu0
  %v758 = vmax.f32 %v670, 0.0
  %v759 = vmax.f32 %v672, 0.0
  %v760 = vmax.f32 %v752, 0.0
  %v761 = vmax.f32 %v754, 0.0
  %v762 = vpack.c.bf16 %v758, %v758
  %v763 = vpack.c.bf16 %v759, %v759
  %v764 = vpack.c.bf16 %v760, %v760
  %v765 = vpack.c.bf16 %v761, %v761
  %v766 = vld [vmem:[%s3] sm:$0xff]
  %v767 = vld [vmem:[%s3 + $0x8] sm:$0xff]
  %v768 = vld [vmem:[%s3 + $0x10] sm:$0xff]
  %v769 = vld [vmem:[%s3 + $0x18] sm:$0xf]
  %v770 = vld [vmem:[%s3 + $0x1c] sm:$0xff]
  %v771 = vld [vmem:[%s3 + $0x24] sm:$0xff]
  %v772 = vld [vmem:[%s3 + $0x2c] sm:$0xff]
  %v773 = vld [vmem:[%s3 + $0x34] sm:$0xf]
  %v774 = vld [vmem:[%s3 + $0x38] sm:$0xff]
  %v775 = vld [vmem:[%s3 + $0x40] sm:$0xff]
  %v776 = vld [vmem:[%s3 + $0x48] sm:$0xff]
  %v777 = vld [vmem:[%s3 + $0x50] sm:$0xf]
  %v778 = vld [vmem:[%s3 + $0x54] sm:$0xff]
  %v779 = vld [vmem:[%s3 + $0x5c] sm:$0xff]
  %v780 = vld [vmem:[%s3 + $0x64] sm:$0xff]
  %v781 = vld [vmem:[%s3 + $0x6c] sm:$0xf]
  %v782 = vld [vmem:[%s3 + $0x70] sm:$0xff]
  %v783 = vld [vmem:[%s3 + $0x78] sm:$0xff]
  %v784 = vld [vmem:[%s3 + $0x80] sm:$0xff]
  %v785 = vld [vmem:[%s3 + $0x88] sm:$0xf]
  %v786 = vld [vmem:[%s3 + $0x8c] sm:$0xff]
  %v787 = vld [vmem:[%s3 + $0x94] sm:$0xff]
  %v788 = vld [vmem:[%s3 + $0x9c] sm:$0xff]
  %v789 = vld [vmem:[%s3 + $0xa4] sm:$0xf]
  %v790 = vld [vmem:[%s3 + $0xa8] sm:$0xff]
  %v791 = vld [vmem:[%s3 + $0xb0] sm:$0xff]
  %v792 = vld [vmem:[%s3 + $0xb8] sm:$0xff]
  %v793 = vld [vmem:[%s3 + $0xc0] sm:$0xf]
  %v794 = vld [vmem:[%s3 + $0xc4] sm:$0xff]
  %v795 = vld [vmem:[%s3 + $0xcc] sm:$0xff]
  %v796 = vld [vmem:[%s3 + $0xd4] sm:$0xff]
  %v797 = vld [vmem:[%s3 + $0xdc] sm:$0xf]
  %v798 = vld [vmem:[%s3 + $0xe0] sm:$0xff]
  %v799 = vld [vmem:[%s3 + $0xe8] sm:$0xff]
  %v800 = vld [vmem:[%s3 + $0xf0] sm:$0xff]
  %v801 = vld [vmem:[%s3 + $0xf8] sm:$0xf]
  %v802 = vld [vmem:[%s3 + $0xfc] sm:$0xff]
  %v803 = vld [vmem:[%s3 + $0x104] sm:$0xff]
  %v804 = vld [vmem:[%s3 + $0x10c] sm:$0xff]
  %v805 = vld [vmem:[%s3 + $0x114] sm:$0xf]
  %v806 = vld [vmem:[%s3 + $0x118] sm:$0xff]
  %v807 = vld [vmem:[%s3 + $0x120] sm:$0xff]
  %v808 = vld [vmem:[%s3 + $0x128] sm:$0xff]
  %v809 = vld [vmem:[%s3 + $0x130] sm:$0xf]
  %v810 = vld [vmem:[%s3 + $0x134] sm:$0xff]
  %v811 = vld [vmem:[%s3 + $0x13c] sm:$0xff]
  %v812 = vld [vmem:[%s3 + $0x144] sm:$0xff]
  %v813 = vld [vmem:[%s3 + $0x14c] sm:$0xf]
  %v814 = vld [vmem:[%s3 + $0x150] sm:$0xff]
  %v815 = vld [vmem:[%s3 + $0x158] sm:$0xff]
  %v816 = vld [vmem:[%s3 + $0x160] sm:$0xff]
  %v817 = vld [vmem:[%s3 + $0x168] sm:$0xf]
  %v818 = vld [vmem:[%s3 + $0x16c] sm:$0xff]
  %v819 = vld [vmem:[%s3 + $0x174] sm:$0xff]
  %v820 = vld [vmem:[%s3 + $0x17c] sm:$0xff]
  %v821 = vld [vmem:[%s3 + $0x184] sm:$0xf]
  %v822 = vld [vmem:[%s3 + $0x188] sm:$0xff]
  %v823 = vld [vmem:[%s3 + $0x190] sm:$0xff]
  %v824 = vld [vmem:[%s3 + $0x198] sm:$0xff]
  %v825 = vld [vmem:[%s3 + $0x1a0] sm:$0xf]
  %v826 = vld [vmem:[%s3 + $0x1a4] sm:$0xff]
  %v827 = vld [vmem:[%s3 + $0x1ac] sm:$0xff]
  %v828 = vld [vmem:[%s3 + $0x1b4] sm:$0xff]
  %v829 = vld [vmem:[%s3 + $0x1bc] sm:$0xf]
  %v830 = vld [vmem:[%s3 + $0x1c0] sm:$0xff]
  %v831 = vld [vmem:[%s3 + $0x1c8] sm:$0xff]
  %v832 = vld [vmem:[%s3 + $0x1d0] sm:$0xff]
  %v833 = vld [vmem:[%s3 + $0x1d8] sm:$0xf]
  %v834 = vld [vmem:[%s3 + $0x1dc] sm:$0xff]
  %v835 = vld [vmem:[%s3 + $0x1e4] sm:$0xff]
  %v836 = vld [vmem:[%s3 + $0x1ec] sm:$0xff]
  %v837 = vld [vmem:[%s3 + $0x1f4] sm:$0xf]
  %v838 = vld [vmem:[%s3 + $0x1f8] sm:$0xff]
  %v839 = vld [vmem:[%s3 + $0x200] sm:$0xff]
  %v840 = vld [vmem:[%s3 + $0x208] sm:$0xff]
  %v841 = vld [vmem:[%s3 + $0x210] sm:$0xf]
  %v842 = vld [vmem:[%s3 + $0x214] sm:$0xff]
  %v843 = vld [vmem:[%s3 + $0x21c] sm:$0xff]
  %v844 = vld [vmem:[%s3 + $0x224] sm:$0xff]
  %v845 = vld [vmem:[%s3 + $0x22c] sm:$0xf]
  %v846 = vld [vmem:[%s3 + $0x230] sm:$0xff]
  %v847 = vld [vmem:[%s3 + $0x238] sm:$0xff]
  %v848 = vld [vmem:[%s3 + $0x240] sm:$0xff]
  %v849 = vld [vmem:[%s3 + $0x248] sm:$0xf]
  %v850 = vld [vmem:[%s3 + $0x24c] sm:$0xff]
  %v851 = vld [vmem:[%s3 + $0x254] sm:$0xff]
  %v852 = vld [vmem:[%s3 + $0x25c] sm:$0xff]
  %v853 = vld [vmem:[%s3 + $0x264] sm:$0xf]
  %v854 = vld [vmem:[%s3 + $0x268] sm:$0xff]
  %v855 = vld [vmem:[%s3 + $0x270] sm:$0xff]
  %v856 = vld [vmem:[%s3 + $0x278] sm:$0xff]
  %v857 = vld [vmem:[%s3 + $0x280] sm:$0xf]
  %v858 = vld [vmem:[%s3 + $0x284] sm:$0xff]
  %v859 = vld [vmem:[%s3 + $0x28c] sm:$0xff]
  %v860 = vld [vmem:[%s3 + $0x294] sm:$0xff]
  %v861 = vld [vmem:[%s3 + $0x29c] sm:$0xf]
  %v862 = vld [vmem:[%s3 + $0x2a0] sm:$0xff]
  %v863 = vld [vmem:[%s3 + $0x2a8] sm:$0xff]
  %v864 = vld [vmem:[%s3 + $0x2b0] sm:$0xff]
  %v865 = vld [vmem:[%s3 + $0x2b8] sm:$0xf]
  %v866 = vld [vmem:[%s3 + $0x2bc] sm:$0xff]
  %v867 = vld [vmem:[%s3 + $0x2c4] sm:$0xff]
  %v868 = vld [vmem:[%s3 + $0x2cc] sm:$0xff]
  %v869 = vld [vmem:[%s3 + $0x2d4] sm:$0xf]
  %v870 = vld [vmem:[%s3 + $0x2d8] sm:$0xff]
  %v871 = vld [vmem:[%s3 + $0x2e0] sm:$0xff]
  %v872 = vld [vmem:[%s3 + $0x2e8] sm:$0xff]
  %v873 = vld [vmem:[%s3 + $0x2f0] sm:$0xf]
  %v874 = vld [vmem:[%s3 + $0x2f4] sm:$0xff]
  %v875 = vld [vmem:[%s3 + $0x2fc] sm:$0xff]
  %v876 = vld [vmem:[%s3 + $0x304] sm:$0xff]
  %v877 = vld [vmem:[%s3 + $0x30c] sm:$0xf]
  %v878 = vld [vmem:[%s3 + $0x310] sm:$0xff]
  %v879 = vld [vmem:[%s3 + $0x318] sm:$0xff]
  %v880 = vld [vmem:[%s3 + $0x320] sm:$0xff]
  %v881 = vld [vmem:[%s3 + $0x328] sm:$0xf]
  %v882 = vld [vmem:[%s3 + $0x32c] sm:$0xff]
  %v883 = vld [vmem:[%s3 + $0x334] sm:$0xff]
  %v884 = vld [vmem:[%s3 + $0x33c] sm:$0xff]
  %v885 = vld [vmem:[%s3 + $0x344] sm:$0xf]
  %v886 = vld [vmem:[%s3 + $0x348] sm:$0xff]
  %v887 = vld [vmem:[%s3 + $0x350] sm:$0xff]
  %v888 = vld [vmem:[%s3 + $0x358] sm:$0xff]
  %v889 = vld [vmem:[%s3 + $0x360] sm:$0xf]
  %v890 = vld [vmem:[%s3 + $0x364] sm:$0xff]
  %v891 = vld [vmem:[%s3 + $0x36c] sm:$0xff]
  %v892 = vld [vmem:[%s3 + $0x374] sm:$0xff]
  %v893 = vld [vmem:[%s3 + $0x37c] sm:$0xf]
  %v894 = vld [vmem:[%s3 + $0x380] sm:$0xff]
  %v895 = vld [vmem:[%s3 + $0x388] sm:$0xff]
  %v896 = vld [vmem:[%s3 + $0x390] sm:$0xff]
  %v897 = vld [vmem:[%s3 + $0x398] sm:$0xf]
  %v898 = vld [vmem:[%s3 + $0x39c] sm:$0xff]
  %v899 = vld [vmem:[%s3 + $0x3a4] sm:$0xff]
  %v900 = vld [vmem:[%s3 + $0x3ac] sm:$0xff]
  %v901 = vld [vmem:[%s3 + $0x3b4] sm:$0xf]
  %v902 = vld [vmem:[%s3 + $0x3b8] sm:$0xff]
  %v903 = vld [vmem:[%s3 + $0x3c0] sm:$0xff]
  %v904 = vld [vmem:[%s3 + $0x3c8] sm:$0xff]
  %v905 = vld [vmem:[%s3 + $0x3d0] sm:$0xf]
  %v906 = vld [vmem:[%s3 + $0x3d4] sm:$0xff]
  %v907 = vld [vmem:[%s3 + $0x3dc] sm:$0xff]
  %v908 = vld [vmem:[%s3 + $0x3e4] sm:$0xff]
  %v909 = vld [vmem:[%s3 + $0x3ec] sm:$0xf]
  %v910 = vld [vmem:[%s3 + $0x3f0] sm:$0xff]
  %v911 = vld [vmem:[%s3 + $0x3f8] sm:$0xff]
  %v912 = vld [vmem:[%s3 + $0x400] sm:$0xff]
  %v913 = vld [vmem:[%s3 + $0x408] sm:$0xf]
  %v914 = vld [vmem:[%s3 + $0x40c] sm:$0xff]
  %v915 = vld [vmem:[%s3 + $0x414] sm:$0xff]
  %v916 = vld [vmem:[%s3 + $0x41c] sm:$0xff]
  %v917 = vld [vmem:[%s3 + $0x424] sm:$0xf]
  %v918 = vld [vmem:[%s3 + $0x428] sm:$0xff]
  %v919 = vld [vmem:[%s3 + $0x430] sm:$0xff]
  %v920 = vld [vmem:[%s3 + $0x438] sm:$0xff]
  %v921 = vld [vmem:[%s3 + $0x440] sm:$0xf]
  %v922 = vld [vmem:[%s3 + $0x444] sm:$0xff]
  %v923 = vld [vmem:[%s3 + $0x44c] sm:$0xff]
  %v924 = vld [vmem:[%s3 + $0x454] sm:$0xff]
  %v925 = vld [vmem:[%s3 + $0x45c] sm:$0xf]
  %v926 = vld [vmem:[%s3 + $0x460] sm:$0xff]
  %v927 = vld [vmem:[%s3 + $0x468] sm:$0xff]
  %v928 = vld [vmem:[%s3 + $0x470] sm:$0xff]
  %v929 = vld [vmem:[%s3 + $0x478] sm:$0xf]
  %v930 = vld [vmem:[%s3 + $0x47c] sm:$0xff]
  %v931 = vld [vmem:[%s3 + $0x484] sm:$0xff]
  %v932 = vld [vmem:[%s3 + $0x48c] sm:$0xff]
  %v933 = vld [vmem:[%s3 + $0x494] sm:$0xf]
  %v934 = vld [vmem:[%s3 + $0x498] sm:$0xff]
  %v935 = vld [vmem:[%s3 + $0x4a0] sm:$0xff]
  %v936 = vld [vmem:[%s3 + $0x4a8] sm:$0xff]
  %v937 = vld [vmem:[%s3 + $0x4b0] sm:$0xf]
  %v938 = vld [vmem:[%s3 + $0x4b4] sm:$0xff]
  %v939 = vld [vmem:[%s3 + $0x4bc] sm:$0xff]
  %v940 = vld [vmem:[%s3 + $0x4c4] sm:$0xff]
  %v941 = vld [vmem:[%s3 + $0x4cc] sm:$0xf]
  %v942 = vld [vmem:[%s3 + $0x4d0] sm:$0xff]
  %v943 = vld [vmem:[%s3 + $0x4d8] sm:$0xff]
  %v944 = vld [vmem:[%s3 + $0x4e0] sm:$0xff]
  %v945 = vld [vmem:[%s3 + $0x4e8] sm:$0xf]
  %v946 = vld [vmem:[%s3 + $0x4ec] sm:$0xff]
  %v947 = vld [vmem:[%s3 + $0x4f4] sm:$0xff]
  %v948 = vld [vmem:[%s3 + $0x4fc] sm:$0xff]
  %v949 = vld [vmem:[%s3 + $0x504] sm:$0xf]
  %v950 = vld [vmem:[%s3 + $0x508] sm:$0xff]
  %v951 = vld [vmem:[%s3 + $0x510] sm:$0xff]
  %v952 = vld [vmem:[%s3 + $0x518] sm:$0xff]
  %v953 = vld [vmem:[%s3 + $0x520] sm:$0xf]
  %v954 = vld [vmem:[%s3 + $0x524] sm:$0xff]
  %v955 = vld [vmem:[%s3 + $0x52c] sm:$0xff]
  %v956 = vld [vmem:[%s3 + $0x534] sm:$0xff]
  %v957 = vld [vmem:[%s3 + $0x53c] sm:$0xf]
  %v958 = vld [vmem:[%s3 + $0x540] sm:$0xff]
  %v959 = vld [vmem:[%s3 + $0x548] sm:$0xff]
  %v960 = vld [vmem:[%s3 + $0x550] sm:$0xff]
  %v961 = vld [vmem:[%s3 + $0x558] sm:$0xf]
  %v962 = vld [vmem:[%s3 + $0x55c] sm:$0xff]
  %v963 = vld [vmem:[%s3 + $0x564] sm:$0xff]
  %v964 = vld [vmem:[%s3 + $0x56c] sm:$0xff]
  %v965 = vld [vmem:[%s3 + $0x574] sm:$0xf]
  %v966 = vld [vmem:[%s3 + $0x578] sm:$0xff]
  %v967 = vld [vmem:[%s3 + $0x580] sm:$0xff]
  %v968 = vld [vmem:[%s3 + $0x588] sm:$0xff]
  %v969 = vld [vmem:[%s3 + $0x590] sm:$0xf]
  %v970 = vld [vmem:[%s3 + $0x594] sm:$0xff]
  %v971 = vld [vmem:[%s3 + $0x59c] sm:$0xff]
  %v972 = vld [vmem:[%s3 + $0x5a4] sm:$0xff]
  %v973 = vld [vmem:[%s3 + $0x5ac] sm:$0xf]
  %v974 = vld [vmem:[%s3 + $0x5b0] sm:$0xff]
  %v975 = vld [vmem:[%s3 + $0x5b8] sm:$0xff]
  %v976 = vld [vmem:[%s3 + $0x5c0] sm:$0xff]
  %v977 = vld [vmem:[%s3 + $0x5c8] sm:$0xf]
  %v978 = vld [vmem:[%s3 + $0x5cc] sm:$0xff]
  %v979 = vld [vmem:[%s3 + $0x5d4] sm:$0xff]
  %v980 = vld [vmem:[%s3 + $0x5dc] sm:$0xff]
  %v981 = vld [vmem:[%s3 + $0x5e4] sm:$0xf]
  %v982 = vld [vmem:[%s3 + $0x5e8] sm:$0xff]
  %v983 = vld [vmem:[%s3 + $0x5f0] sm:$0xff]
  %v984 = vld [vmem:[%s3 + $0x5f8] sm:$0xff]
  %v985 = vld [vmem:[%s3 + $0x600] sm:$0xf]
  %v986 = vld [vmem:[%s3 + $0x604] sm:$0xff]
  %v987 = vld [vmem:[%s3 + $0x60c] sm:$0xff]
  %v988 = vld [vmem:[%s3 + $0x614] sm:$0xff]
  %v989 = vld [vmem:[%s3 + $0x61c] sm:$0xf]
  %v990 = vld [vmem:[%s3 + $0x620] sm:$0xff]
  %v991 = vld [vmem:[%s3 + $0x628] sm:$0xff]
  %v992 = vld [vmem:[%s3 + $0x630] sm:$0xff]
  %v993 = vld [vmem:[%s3 + $0x638] sm:$0xf]
  %v994 = vld [vmem:[%s3 + $0x63c] sm:$0xff]
  %v995 = vld [vmem:[%s3 + $0x644] sm:$0xff]
  %v996 = vld [vmem:[%s3 + $0x64c] sm:$0xff]
  %v997 = vld [vmem:[%s3 + $0x654] sm:$0xf]
  %v998 = vld [vmem:[%s3 + $0x658] sm:$0xff]
  %v999 = vld [vmem:[%s3 + $0x660] sm:$0xff]
  %v1000 = vld [vmem:[%s3 + $0x668] sm:$0xff]
  %v1001 = vld [vmem:[%s3 + $0x670] sm:$0xf]
  %v1002 = vld [vmem:[%s3 + $0x674] sm:$0xff]
  %v1003 = vld [vmem:[%s3 + $0x67c] sm:$0xff]
  %v1004 = vld [vmem:[%s3 + $0x684] sm:$0xff]
  %v1005 = vld [vmem:[%s3 + $0x68c] sm:$0xf]
  %v1006 = vld [vmem:[%s3 + $0x690] sm:$0x77]
  %v1007 = vld [vmem:[%s3 + $0x698] sm:$0x77]
  %v1008 = vld [vmem:[%s3 + $0x6a0] sm:$0x77]
  %v1009 = vld [vmem:[%s3 + $0x6a8] sm:$0x7]
  %v1010 = vld [vmem:[%s4] sm:$0x7f]
  %v1012 = vlaneseq
  %v1013 = vshrl.u32 %v1012, 7
  %v1014 = vsub.s32 0, %v1013
  %v1015 = vrot.slane %v1010, %v1014
  %v1016 = vlaneseq
  %v1017 = vshrl.u32 %v1016, 7
  %v1018 = vsub.s32 1, %v1017
  %v1019 = vrot.slane %v1010, %v1018
  %v1020 = vlaneseq
  %v1021 = vshrl.u32 %v1020, 7
  %v1022 = vsub.s32 2, %v1021
  %v1023 = vrot.slane %v1010, %v1022
  %v1024 = vlaneseq
  %v1025 = vshrl.u32 %v1024, 7
  %v1026 = vsub.s32 3, %v1025
  %v1027 = vrot.slane %v1010, %v1026
  %v1028 = vlaneseq
  %v1029 = vshrl.u32 %v1028, 7
  %v1030 = vsub.s32 4, %v1029
  %v1031 = vrot.slane %v1010, %v1030
  %v1032 = vlaneseq
  %v1033 = vshrl.u32 %v1032, 7
  %v1034 = vsub.s32 5, %v1033
  %v1035 = vrot.slane %v1010, %v1034
  %v1036 = vlaneseq
  %v1037 = vshrl.u32 %v1036, 7
  %v1038 = vsub.s32 6, %v1037
  %v1039 = vrot.slane %v1010, %v1038
  %v1291 = vunpack.c.l.b16 %v766
  %v1292 = vunpack.c.h.b16 %v766
  %v1293 = vunpack.c.l.b16 %v767
  %v1294 = vunpack.c.h.b16 %v767
  %v1295 = vunpack.c.l.b16 %v768
  %v1296 = vunpack.c.h.b16 %v768
  %v1297 = vunpack.c.l.b16 %v769
  %v1298 = vunpack.c.l.b16 %v770
  %v1299 = vunpack.c.h.b16 %v770
  %v1300 = vunpack.c.l.b16 %v771
  %v1301 = vunpack.c.h.b16 %v771
  %v1302 = vunpack.c.l.b16 %v772
  %v1303 = vunpack.c.h.b16 %v772
  %v1304 = vunpack.c.l.b16 %v773
  %v1305 = vunpack.c.l.b16 %v774
  %v1306 = vunpack.c.h.b16 %v774
  %v1307 = vunpack.c.l.b16 %v775
  %v1308 = vunpack.c.h.b16 %v775
  %v1309 = vunpack.c.l.b16 %v776
  %v1310 = vunpack.c.h.b16 %v776
  %v1311 = vunpack.c.l.b16 %v777
  %v1312 = vunpack.c.l.b16 %v778
  %v1313 = vunpack.c.h.b16 %v778
  %v1314 = vunpack.c.l.b16 %v779
  %v1315 = vunpack.c.h.b16 %v779
  %v1316 = vunpack.c.l.b16 %v780
  %v1317 = vunpack.c.h.b16 %v780
  %v1318 = vunpack.c.l.b16 %v781
  %v1319 = vunpack.c.l.b16 %v782
  %v1320 = vunpack.c.h.b16 %v782
  %v1321 = vunpack.c.l.b16 %v783
  %v1322 = vunpack.c.h.b16 %v783
  %v1323 = vunpack.c.l.b16 %v784
  %v1324 = vunpack.c.h.b16 %v784
  %v1325 = vunpack.c.l.b16 %v785
  %v1326 = vunpack.c.l.b16 %v786
  %v1327 = vunpack.c.h.b16 %v786
  %v1328 = vunpack.c.l.b16 %v787
  %v1329 = vunpack.c.h.b16 %v787
  %v1330 = vunpack.c.l.b16 %v788
  %v1331 = vunpack.c.h.b16 %v788
  %v1332 = vunpack.c.l.b16 %v789
  %v1333 = vunpack.c.l.b16 %v790
  %v1334 = vunpack.c.h.b16 %v790
  %v1335 = vunpack.c.l.b16 %v791
  %v1336 = vunpack.c.h.b16 %v791
  %v1337 = vunpack.c.l.b16 %v792
  %v1338 = vunpack.c.h.b16 %v792
  %v1339 = vunpack.c.l.b16 %v793
  %v1340 = vunpack.c.l.b16 %v794
  %v1341 = vunpack.c.h.b16 %v794
  %v1342 = vunpack.c.l.b16 %v795
  %v1343 = vunpack.c.h.b16 %v795
  %v1344 = vunpack.c.l.b16 %v796
  %v1345 = vunpack.c.h.b16 %v796
  %v1346 = vunpack.c.l.b16 %v797
  %v1347 = vunpack.c.l.b16 %v798
  %v1348 = vunpack.c.h.b16 %v798
  %v1349 = vunpack.c.l.b16 %v799
  %v1350 = vunpack.c.h.b16 %v799
  %v1351 = vunpack.c.l.b16 %v800
  %v1352 = vunpack.c.h.b16 %v800
  %v1353 = vunpack.c.l.b16 %v801
  %v1354 = vunpack.c.l.b16 %v802
  %v1355 = vunpack.c.h.b16 %v802
  %v1356 = vunpack.c.l.b16 %v803
  %v1357 = vunpack.c.h.b16 %v803
  %v1358 = vunpack.c.l.b16 %v804
  %v1359 = vunpack.c.h.b16 %v804
  %v1360 = vunpack.c.l.b16 %v805
  %v1361 = vunpack.c.l.b16 %v806
  %v1362 = vunpack.c.h.b16 %v806
  %v1363 = vunpack.c.l.b16 %v807
  %v1364 = vunpack.c.h.b16 %v807
  %v1365 = vunpack.c.l.b16 %v808
  %v1366 = vunpack.c.h.b16 %v808
  %v1367 = vunpack.c.l.b16 %v809
  %v1368 = vunpack.c.l.b16 %v810
  %v1369 = vunpack.c.h.b16 %v810
  %v1370 = vunpack.c.l.b16 %v811
  %v1371 = vunpack.c.h.b16 %v811
  %v1372 = vunpack.c.l.b16 %v812
  %v1373 = vunpack.c.h.b16 %v812
  %v1374 = vunpack.c.l.b16 %v813
  %v1375 = vunpack.c.l.b16 %v814
  %v1376 = vunpack.c.h.b16 %v814
  %v1377 = vunpack.c.l.b16 %v815
  %v1378 = vunpack.c.h.b16 %v815
  %v1379 = vunpack.c.l.b16 %v816
  %v1380 = vunpack.c.h.b16 %v816
  %v1381 = vunpack.c.l.b16 %v817
  %v1382 = vunpack.c.l.b16 %v818
  %v1383 = vunpack.c.h.b16 %v818
  %v1384 = vunpack.c.l.b16 %v819
  %v1385 = vunpack.c.h.b16 %v819
  %v1386 = vunpack.c.l.b16 %v820
  %v1387 = vunpack.c.h.b16 %v820
  %v1388 = vunpack.c.l.b16 %v821
  %v1389 = vunpack.c.l.b16 %v822
  %v1390 = vunpack.c.h.b16 %v822
  %v1391 = vunpack.c.l.b16 %v823
  %v1392 = vunpack.c.h.b16 %v823
  %v1393 = vunpack.c.l.b16 %v824
  %v1394 = vunpack.c.h.b16 %v824
  %v1395 = vunpack.c.l.b16 %v825
  %v1396 = vunpack.c.l.b16 %v826
  %v1397 = vunpack.c.h.b16 %v826
  %v1398 = vunpack.c.l.b16 %v827
  %v1399 = vunpack.c.h.b16 %v827
  %v1400 = vunpack.c.l.b16 %v828
  %v1401 = vunpack.c.h.b16 %v828
  %v1402 = vunpack.c.l.b16 %v829
  %v1403 = vunpack.c.l.b16 %v830
  %v1404 = vunpack.c.h.b16 %v830
  %v1405 = vunpack.c.l.b16 %v831
  %v1406 = vunpack.c.h.b16 %v831
  %v1407 = vunpack.c.l.b16 %v832
  %v1408 = vunpack.c.h.b16 %v832
  %v1409 = vunpack.c.l.b16 %v833
  %v1410 = vunpack.c.l.b16 %v834
  %v1411 = vunpack.c.h.b16 %v834
  %v1412 = vunpack.c.l.b16 %v835
  %v1413 = vunpack.c.h.b16 %v835
  %v1414 = vunpack.c.l.b16 %v836
  %v1415 = vunpack.c.h.b16 %v836
  %v1416 = vunpack.c.l.b16 %v837
  %v1417 = vunpack.c.l.b16 %v838
  %v1418 = vunpack.c.h.b16 %v838
  %v1419 = vunpack.c.l.b16 %v839
  %v1420 = vunpack.c.h.b16 %v839
  %v1421 = vunpack.c.l.b16 %v840
  %v1422 = vunpack.c.h.b16 %v840
  %v1423 = vunpack.c.l.b16 %v841
  %v1424 = vunpack.c.l.b16 %v842
  %v1425 = vunpack.c.h.b16 %v842
  %v1426 = vunpack.c.l.b16 %v843
  %v1427 = vunpack.c.h.b16 %v843
  %v1428 = vunpack.c.l.b16 %v844
  %v1429 = vunpack.c.h.b16 %v844
  %v1430 = vunpack.c.l.b16 %v845
  %v1431 = vunpack.c.l.b16 %v846
  %v1432 = vunpack.c.h.b16 %v846
  %v1433 = vunpack.c.l.b16 %v847
  %v1434 = vunpack.c.h.b16 %v847
  %v1435 = vunpack.c.l.b16 %v848
  %v1436 = vunpack.c.h.b16 %v848
  %v1437 = vunpack.c.l.b16 %v849
  %v1438 = vunpack.c.l.b16 %v850
  %v1439 = vunpack.c.h.b16 %v850
  %v1440 = vunpack.c.l.b16 %v851
  %v1441 = vunpack.c.h.b16 %v851
  %v1442 = vunpack.c.l.b16 %v852
  %v1443 = vunpack.c.h.b16 %v852
  %v1444 = vunpack.c.l.b16 %v853
  %v1445 = vunpack.c.l.b16 %v854
  %v1446 = vunpack.c.h.b16 %v854
  %v1447 = vunpack.c.l.b16 %v855
  %v1448 = vunpack.c.h.b16 %v855
  %v1449 = vunpack.c.l.b16 %v856
  %v1450 = vunpack.c.h.b16 %v856
  %v1451 = vunpack.c.l.b16 %v857
  %v1452 = vunpack.c.l.b16 %v858
  %v1453 = vunpack.c.h.b16 %v858
  %v1454 = vunpack.c.l.b16 %v859
  %v1455 = vunpack.c.h.b16 %v859
  %v1456 = vunpack.c.l.b16 %v860
  %v1457 = vunpack.c.h.b16 %v860
  %v1458 = vunpack.c.l.b16 %v861
  %v1459 = vunpack.c.l.b16 %v862
  %v1460 = vunpack.c.h.b16 %v862
  %v1461 = vunpack.c.l.b16 %v863
  %v1462 = vunpack.c.h.b16 %v863
  %v1463 = vunpack.c.l.b16 %v864
  %v1464 = vunpack.c.h.b16 %v864
  %v1465 = vunpack.c.l.b16 %v865
  %v1466 = vunpack.c.l.b16 %v866
  %v1467 = vunpack.c.h.b16 %v866
  %v1468 = vunpack.c.l.b16 %v867
  %v1469 = vunpack.c.h.b16 %v867
  %v1470 = vunpack.c.l.b16 %v868
  %v1471 = vunpack.c.h.b16 %v868
  %v1472 = vunpack.c.l.b16 %v869
  %v1473 = vunpack.c.l.b16 %v870
  %v1474 = vunpack.c.h.b16 %v870
  %v1475 = vunpack.c.l.b16 %v871
  %v1476 = vunpack.c.h.b16 %v871
  %v1477 = vunpack.c.l.b16 %v872
  %v1478 = vunpack.c.h.b16 %v872
  %v1479 = vunpack.c.l.b16 %v873
  %v1480 = vunpack.c.l.b16 %v874
  %v1481 = vunpack.c.h.b16 %v874
  %v1482 = vunpack.c.l.b16 %v875
  %v1483 = vunpack.c.h.b16 %v875
  %v1484 = vunpack.c.l.b16 %v876
  %v1485 = vunpack.c.h.b16 %v876
  %v1486 = vunpack.c.l.b16 %v877
  %v1487 = vunpack.c.l.b16 %v878
  %v1488 = vunpack.c.h.b16 %v878
  %v1489 = vunpack.c.l.b16 %v879
  %v1490 = vunpack.c.h.b16 %v879
  %v1491 = vunpack.c.l.b16 %v880
  %v1492 = vunpack.c.h.b16 %v880
  %v1493 = vunpack.c.l.b16 %v881
  %v1494 = vunpack.c.l.b16 %v882
  %v1495 = vunpack.c.h.b16 %v882
  %v1496 = vunpack.c.l.b16 %v883
  %v1497 = vunpack.c.h.b16 %v883
  %v1498 = vunpack.c.l.b16 %v884
  %v1499 = vunpack.c.h.b16 %v884
  %v1500 = vunpack.c.l.b16 %v885
  %v1501 = vunpack.c.l.b16 %v886
  %v1502 = vunpack.c.h.b16 %v886
  %v1503 = vunpack.c.l.b16 %v887
  %v1504 = vunpack.c.h.b16 %v887
  %v1505 = vunpack.c.l.b16 %v888
  %v1506 = vunpack.c.h.b16 %v888
  %v1507 = vunpack.c.l.b16 %v889
  %v1508 = vunpack.c.l.b16 %v890
  %v1509 = vunpack.c.h.b16 %v890
  %v1510 = vunpack.c.l.b16 %v891
  %v1511 = vunpack.c.h.b16 %v891
  %v1512 = vunpack.c.l.b16 %v892
  %v1513 = vunpack.c.h.b16 %v892
  %v1514 = vunpack.c.l.b16 %v893
  %v1515 = vunpack.c.l.b16 %v894
  %v1516 = vunpack.c.h.b16 %v894
  %v1517 = vunpack.c.l.b16 %v895
  %v1518 = vunpack.c.h.b16 %v895
  %v1519 = vunpack.c.l.b16 %v896
  %v1520 = vunpack.c.h.b16 %v896
  %v1521 = vunpack.c.l.b16 %v897
  %v1522 = vunpack.c.l.b16 %v898
  %v1523 = vunpack.c.h.b16 %v898
  %v1524 = vunpack.c.l.b16 %v899
  %v1525 = vunpack.c.h.b16 %v899
  %v1526 = vunpack.c.l.b16 %v900
  %v1527 = vunpack.c.h.b16 %v900
  %v1528 = vunpack.c.l.b16 %v901
  %v1529 = vunpack.c.l.b16 %v902
  %v1530 = vunpack.c.h.b16 %v902
  %v1531 = vunpack.c.l.b16 %v903
  %v1532 = vunpack.c.h.b16 %v903
  %v1533 = vunpack.c.l.b16 %v904
  %v1534 = vunpack.c.h.b16 %v904
  %v1535 = vunpack.c.l.b16 %v905
  %v1536 = vunpack.c.l.b16 %v906
  %v1537 = vunpack.c.h.b16 %v906
  %v1538 = vunpack.c.l.b16 %v907
  %v1539 = vunpack.c.h.b16 %v907
  %v1540 = vunpack.c.l.b16 %v908
  %v1541 = vunpack.c.h.b16 %v908
  %v1542 = vunpack.c.l.b16 %v909
  %v1543 = vunpack.c.l.b16 %v910
  %v1544 = vunpack.c.h.b16 %v910
  %v1545 = vunpack.c.l.b16 %v911
  %v1546 = vunpack.c.h.b16 %v911
  %v1547 = vunpack.c.l.b16 %v912
  %v1548 = vunpack.c.h.b16 %v912
  %v1549 = vunpack.c.l.b16 %v913
  %v1550 = vunpack.c.l.b16 %v914
  %v1551 = vunpack.c.h.b16 %v914
  %v1552 = vunpack.c.l.b16 %v915
  %v1553 = vunpack.c.h.b16 %v915
  %v1554 = vunpack.c.l.b16 %v916
  %v1555 = vunpack.c.h.b16 %v916
  %v1556 = vunpack.c.l.b16 %v917
  %v1557 = vunpack.c.l.b16 %v918
  %v1558 = vunpack.c.h.b16 %v918
  %v1559 = vunpack.c.l.b16 %v919
  %v1560 = vunpack.c.h.b16 %v919
  %v1561 = vunpack.c.l.b16 %v920
  %v1562 = vunpack.c.h.b16 %v920
  %v1563 = vunpack.c.l.b16 %v921
  %v1564 = vunpack.c.l.b16 %v922
  %v1565 = vunpack.c.h.b16 %v922
  %v1566 = vunpack.c.l.b16 %v923
  %v1567 = vunpack.c.h.b16 %v923
  %v1568 = vunpack.c.l.b16 %v924
  %v1569 = vunpack.c.h.b16 %v924
  %v1570 = vunpack.c.l.b16 %v925
  %v1571 = vunpack.c.l.b16 %v926
  %v1572 = vunpack.c.h.b16 %v926
  %v1573 = vunpack.c.l.b16 %v927
  %v1574 = vunpack.c.h.b16 %v927
  %v1575 = vunpack.c.l.b16 %v928
  %v1576 = vunpack.c.h.b16 %v928
  %v1577 = vunpack.c.l.b16 %v929
  %v1578 = vunpack.c.l.b16 %v930
  %v1579 = vunpack.c.h.b16 %v930
  %v1580 = vunpack.c.l.b16 %v931
  %v1581 = vunpack.c.h.b16 %v931
  %v1582 = vunpack.c.l.b16 %v932
  %v1583 = vunpack.c.h.b16 %v932
  %v1584 = vunpack.c.l.b16 %v933
  %v1585 = vunpack.c.l.b16 %v934
  %v1586 = vunpack.c.h.b16 %v934
  %v1587 = vunpack.c.l.b16 %v935
  %v1588 = vunpack.c.h.b16 %v935
  %v1589 = vunpack.c.l.b16 %v936
  %v1590 = vunpack.c.h.b16 %v936
  %v1591 = vunpack.c.l.b16 %v937
  %v1592 = vunpack.c.l.b16 %v938
  %v1593 = vunpack.c.h.b16 %v938
  %v1594 = vunpack.c.l.b16 %v939
  %v1595 = vunpack.c.h.b16 %v939
  %v1596 = vunpack.c.l.b16 %v940
  %v1597 = vunpack.c.h.b16 %v940
  %v1598 = vunpack.c.l.b16 %v941
  %v1599 = vunpack.c.l.b16 %v942
  %v1600 = vunpack.c.h.b16 %v942
  %v1601 = vunpack.c.l.b16 %v943
  %v1602 = vunpack.c.h.b16 %v943
  %v1603 = vunpack.c.l.b16 %v944
  %v1604 = vunpack.c.h.b16 %v944
  %v1605 = vunpack.c.l.b16 %v945
  %v1606 = vunpack.c.l.b16 %v946
  %v1607 = vunpack.c.h.b16 %v946
  %v1608 = vunpack.c.l.b16 %v947
  %v1609 = vunpack.c.h.b16 %v947
  %v1610 = vunpack.c.l.b16 %v948
  %v1611 = vunpack.c.h.b16 %v948
  %v1612 = vunpack.c.l.b16 %v949
  %v1613 = vunpack.c.l.b16 %v950
  %v1614 = vunpack.c.h.b16 %v950
  %v1615 = vunpack.c.l.b16 %v951
  %v1616 = vunpack.c.h.b16 %v951
  %v1617 = vunpack.c.l.b16 %v952
  %v1618 = vunpack.c.h.b16 %v952
  %v1619 = vunpack.c.l.b16 %v953
  %v1620 = vunpack.c.l.b16 %v954
  %v1621 = vunpack.c.h.b16 %v954
  %v1622 = vunpack.c.l.b16 %v955
  %v1623 = vunpack.c.h.b16 %v955
  %v1624 = vunpack.c.l.b16 %v956
  %v1625 = vunpack.c.h.b16 %v956
  %v1626 = vunpack.c.l.b16 %v957
  %v1627 = vunpack.c.l.b16 %v958
  %v1628 = vunpack.c.h.b16 %v958
  %v1629 = vunpack.c.l.b16 %v959
  %v1630 = vunpack.c.h.b16 %v959
  %v1631 = vunpack.c.l.b16 %v960
  %v1632 = vunpack.c.h.b16 %v960
  %v1633 = vunpack.c.l.b16 %v961
  %v1634 = vunpack.c.l.b16 %v962
  %v1635 = vunpack.c.h.b16 %v962
  %v1636 = vunpack.c.l.b16 %v963
  %v1637 = vunpack.c.h.b16 %v963
  %v1638 = vunpack.c.l.b16 %v964
  %v1639 = vunpack.c.h.b16 %v964
  %v1640 = vunpack.c.l.b16 %v965
  %v1641 = vunpack.c.l.b16 %v966
  %v1642 = vunpack.c.h.b16 %v966
  %v1643 = vunpack.c.l.b16 %v967
  %v1644 = vunpack.c.h.b16 %v967
  %v1645 = vunpack.c.l.b16 %v968
  %v1646 = vunpack.c.h.b16 %v968
  %v1647 = vunpack.c.l.b16 %v969
  %v1648 = vunpack.c.l.b16 %v970
  %v1649 = vunpack.c.h.b16 %v970
  %v1650 = vunpack.c.l.b16 %v971
  %v1651 = vunpack.c.h.b16 %v971
  %v1652 = vunpack.c.l.b16 %v972
  %v1653 = vunpack.c.h.b16 %v972
  %v1654 = vunpack.c.l.b16 %v973
  %v1655 = vunpack.c.l.b16 %v974
  %v1656 = vunpack.c.h.b16 %v974
  %v1657 = vunpack.c.l.b16 %v975
  %v1658 = vunpack.c.h.b16 %v975
  %v1659 = vunpack.c.l.b16 %v976
  %v1660 = vunpack.c.h.b16 %v976
  %v1661 = vunpack.c.l.b16 %v977
  %v1662 = vunpack.c.l.b16 %v978
  %v1663 = vunpack.c.h.b16 %v978
  %v1664 = vunpack.c.l.b16 %v979
  %v1665 = vunpack.c.h.b16 %v979
  %v1666 = vunpack.c.l.b16 %v980
  %v1667 = vunpack.c.h.b16 %v980
  %v1668 = vunpack.c.l.b16 %v981
  %v1669 = vunpack.c.l.b16 %v982
  %v1670 = vunpack.c.h.b16 %v982
  %v1671 = vunpack.c.l.b16 %v983
  %v1672 = vunpack.c.h.b16 %v983
  %v1673 = vunpack.c.l.b16 %v984
  %v1674 = vunpack.c.h.b16 %v984
  %v1675 = vunpack.c.l.b16 %v985
  %v1676 = vunpack.c.l.b16 %v986
  %v1677 = vunpack.c.h.b16 %v986
  %v1678 = vunpack.c.l.b16 %v987
  %v1679 = vunpack.c.h.b16 %v987
  %v1680 = vunpack.c.l.b16 %v988
  %v1681 = vunpack.c.h.b16 %v988
  %v1682 = vunpack.c.l.b16 %v989
  %v1683 = vunpack.c.l.b16 %v990
  %v1684 = vunpack.c.h.b16 %v990
  %v1685 = vunpack.c.l.b16 %v991
  %v1686 = vunpack.c.h.b16 %v991
  %v1687 = vunpack.c.l.b16 %v992
  %v1688 = vunpack.c.h.b16 %v992
  %v1689 = vunpack.c.l.b16 %v993
  %v1690 = vunpack.c.l.b16 %v994
  %v1691 = vunpack.c.h.b16 %v994
  %v1692 = vunpack.c.l.b16 %v995
  %v1693 = vunpack.c.h.b16 %v995
  %v1694 = vunpack.c.l.b16 %v996
  %v1695 = vunpack.c.h.b16 %v996
  %v1696 = vunpack.c.l.b16 %v997
  %v1697 = vunpack.c.l.b16 %v998
  %v1698 = vunpack.c.h.b16 %v998
  %v1699 = vunpack.c.l.b16 %v999
  %v1700 = vunpack.c.h.b16 %v999
  %v1701 = vunpack.c.l.b16 %v1000
  %v1702 = vunpack.c.h.b16 %v1000
  %v1703 = vunpack.c.l.b16 %v1001
  %v1704 = vunpack.c.l.b16 %v1002
  %v1705 = vunpack.c.h.b16 %v1002
  %v1706 = vunpack.c.l.b16 %v1003
  %v1707 = vunpack.c.h.b16 %v1003
  %v1708 = vunpack.c.l.b16 %v1004
  %v1709 = vunpack.c.h.b16 %v1004
  %v1710 = vunpack.c.l.b16 %v1005
  %v1711 = vunpack.c.l.b16 %v1006
  %v1712 = vunpack.c.h.b16 %v1006
  %v1713 = vunpack.c.l.b16 %v1007
  %v1714 = vunpack.c.h.b16 %v1007
  %v1715 = vunpack.c.l.b16 %v1008
  %v1716 = vunpack.c.h.b16 %v1008
  %v1717 = vunpack.c.l.b16 %v1009
  %v1718 = vpack.c.b16 %v1298, %v1291
  %v1719 = vpack.c.b16 %v1299, %v1292
  %v1720 = vpack.c.b16 %v1300, %v1293
  %v1721 = vpack.c.b16 %v1301, %v1294
  %v1722 = vpack.c.b16 %v1302, %v1295
  %v1723 = vpack.c.b16 %v1303, %v1296
  %v1724 = vpack.c.b16 %v1304, %v1297
  %v1725 = vpack.c.b16 %v1312, %v1305
  %v1726 = vpack.c.b16 %v1313, %v1306
  %v1727 = vpack.c.b16 %v1314, %v1307
  %v1728 = vpack.c.b16 %v1315, %v1308
  %v1729 = vpack.c.b16 %v1316, %v1309
  %v1730 = vpack.c.b16 %v1317, %v1310
  %v1731 = vpack.c.b16 %v1318, %v1311
  %v1732 = vpack.c.b16 %v1326, %v1319
  %v1733 = vpack.c.b16 %v1327, %v1320
  %v1734 = vpack.c.b16 %v1328, %v1321
  %v1735 = vpack.c.b16 %v1329, %v1322
  %v1736 = vpack.c.b16 %v1330, %v1323
  %v1737 = vpack.c.b16 %v1331, %v1324
  %v1738 = vpack.c.b16 %v1332, %v1325
  %v1739 = vpack.c.b16 %v1340, %v1333
  %v1740 = vpack.c.b16 %v1341, %v1334
  %v1741 = vpack.c.b16 %v1342, %v1335
  %v1742 = vpack.c.b16 %v1343, %v1336
  %v1743 = vpack.c.b16 %v1344, %v1337
  %v1744 = vpack.c.b16 %v1345, %v1338
  %v1745 = vpack.c.b16 %v1346, %v1339
  %v1746 = vpack.c.b16 %v1354, %v1347
  %v1747 = vpack.c.b16 %v1355, %v1348
  %v1748 = vpack.c.b16 %v1356, %v1349
  %v1749 = vpack.c.b16 %v1357, %v1350
  %v1750 = vpack.c.b16 %v1358, %v1351
  %v1751 = vpack.c.b16 %v1359, %v1352
  %v1752 = vpack.c.b16 %v1360, %v1353
  %v1753 = vpack.c.b16 %v1368, %v1361
  %v1754 = vpack.c.b16 %v1369, %v1362
  %v1755 = vpack.c.b16 %v1370, %v1363
  %v1756 = vpack.c.b16 %v1371, %v1364
  %v1757 = vpack.c.b16 %v1372, %v1365
  %v1758 = vpack.c.b16 %v1373, %v1366
  %v1759 = vpack.c.b16 %v1374, %v1367
  %v1760 = vpack.c.b16 %v1382, %v1375
  %v1761 = vpack.c.b16 %v1383, %v1376
  %v1762 = vpack.c.b16 %v1384, %v1377
  %v1763 = vpack.c.b16 %v1385, %v1378
  %v1764 = vpack.c.b16 %v1386, %v1379
  %v1765 = vpack.c.b16 %v1387, %v1380
  %v1766 = vpack.c.b16 %v1388, %v1381
  %v1767 = vpack.c.b16 %v1396, %v1389
  %v1768 = vpack.c.b16 %v1397, %v1390
  %v1769 = vpack.c.b16 %v1398, %v1391
  %v1770 = vpack.c.b16 %v1399, %v1392
  %v1771 = vpack.c.b16 %v1400, %v1393
  %v1772 = vpack.c.b16 %v1401, %v1394
  %v1773 = vpack.c.b16 %v1402, %v1395
  %v1774 = vpack.c.b16 %v1410, %v1403
  %v1775 = vpack.c.b16 %v1411, %v1404
  %v1776 = vpack.c.b16 %v1412, %v1405
  %v1777 = vpack.c.b16 %v1413, %v1406
  %v1778 = vpack.c.b16 %v1414, %v1407
  %v1779 = vpack.c.b16 %v1415, %v1408
  %v1780 = vpack.c.b16 %v1416, %v1409
  %v1781 = vpack.c.b16 %v1424, %v1417
  %v1782 = vpack.c.b16 %v1425, %v1418
  %v1783 = vpack.c.b16 %v1426, %v1419
  %v1784 = vpack.c.b16 %v1427, %v1420
  %v1785 = vpack.c.b16 %v1428, %v1421
  %v1786 = vpack.c.b16 %v1429, %v1422
  %v1787 = vpack.c.b16 %v1430, %v1423
  %v1788 = vpack.c.b16 %v1438, %v1431
  %v1789 = vpack.c.b16 %v1439, %v1432
  %v1790 = vpack.c.b16 %v1440, %v1433
  %v1791 = vpack.c.b16 %v1441, %v1434
  %v1792 = vpack.c.b16 %v1442, %v1435
  %v1793 = vpack.c.b16 %v1443, %v1436
  %v1794 = vpack.c.b16 %v1444, %v1437
  %v1795 = vpack.c.b16 %v1452, %v1445
  %v1796 = vpack.c.b16 %v1453, %v1446
  %v1797 = vpack.c.b16 %v1454, %v1447
  %v1798 = vpack.c.b16 %v1455, %v1448
  %v1799 = vpack.c.b16 %v1456, %v1449
  %v1800 = vpack.c.b16 %v1457, %v1450
  %v1801 = vpack.c.b16 %v1458, %v1451
  %v1802 = vpack.c.b16 %v1466, %v1459
  %v1803 = vpack.c.b16 %v1467, %v1460
  %v1804 = vpack.c.b16 %v1468, %v1461
  %v1805 = vpack.c.b16 %v1469, %v1462
  %v1806 = vpack.c.b16 %v1470, %v1463
  %v1807 = vpack.c.b16 %v1471, %v1464
  %v1808 = vpack.c.b16 %v1472, %v1465
  %v1809 = vpack.c.b16 %v1480, %v1473
  %v1810 = vpack.c.b16 %v1481, %v1474
  %v1811 = vpack.c.b16 %v1482, %v1475
  %v1812 = vpack.c.b16 %v1483, %v1476
  %v1813 = vpack.c.b16 %v1484, %v1477
  %v1814 = vpack.c.b16 %v1485, %v1478
  %v1815 = vpack.c.b16 %v1486, %v1479
  %v1816 = vpack.c.b16 %v1494, %v1487
  %v1817 = vpack.c.b16 %v1495, %v1488
  %v1818 = vpack.c.b16 %v1496, %v1489
  %v1819 = vpack.c.b16 %v1497, %v1490
  %v1820 = vpack.c.b16 %v1498, %v1491
  %v1821 = vpack.c.b16 %v1499, %v1492
  %v1822 = vpack.c.b16 %v1500, %v1493
  %v1823 = vpack.c.b16 %v1508, %v1501
  %v1824 = vpack.c.b16 %v1509, %v1502
  %v1825 = vpack.c.b16 %v1510, %v1503
  %v1826 = vpack.c.b16 %v1511, %v1504
  %v1827 = vpack.c.b16 %v1512, %v1505
  %v1828 = vpack.c.b16 %v1513, %v1506
  %v1829 = vpack.c.b16 %v1514, %v1507
  %v1830 = vpack.c.b16 %v1522, %v1515
  %v1831 = vpack.c.b16 %v1523, %v1516
  %v1832 = vpack.c.b16 %v1524, %v1517
  %v1833 = vpack.c.b16 %v1525, %v1518
  %v1834 = vpack.c.b16 %v1526, %v1519
  %v1835 = vpack.c.b16 %v1527, %v1520
  %v1836 = vpack.c.b16 %v1528, %v1521
  %v1837 = vpack.c.b16 %v1536, %v1529
  %v1838 = vpack.c.b16 %v1537, %v1530
  %v1839 = vpack.c.b16 %v1538, %v1531
  %v1840 = vpack.c.b16 %v1539, %v1532
  %v1841 = vpack.c.b16 %v1540, %v1533
  %v1842 = vpack.c.b16 %v1541, %v1534
  %v1843 = vpack.c.b16 %v1542, %v1535
  %v1844 = vpack.c.b16 %v1550, %v1543
  %v1845 = vpack.c.b16 %v1551, %v1544
  %v1846 = vpack.c.b16 %v1552, %v1545
  %v1847 = vpack.c.b16 %v1553, %v1546
  %v1848 = vpack.c.b16 %v1554, %v1547
  %v1849 = vpack.c.b16 %v1555, %v1548
  %v1850 = vpack.c.b16 %v1556, %v1549
  %v1851 = vpack.c.b16 %v1564, %v1557
  %v1852 = vpack.c.b16 %v1565, %v1558
  %v1853 = vpack.c.b16 %v1566, %v1559
  %v1854 = vpack.c.b16 %v1567, %v1560
  %v1855 = vpack.c.b16 %v1568, %v1561
  %v1856 = vpack.c.b16 %v1569, %v1562
  %v1857 = vpack.c.b16 %v1570, %v1563
  %v1858 = vpack.c.b16 %v1578, %v1571
  %v1859 = vpack.c.b16 %v1579, %v1572
  %v1860 = vpack.c.b16 %v1580, %v1573
  %v1861 = vpack.c.b16 %v1581, %v1574
  %v1862 = vpack.c.b16 %v1582, %v1575
  %v1863 = vpack.c.b16 %v1583, %v1576
  %v1864 = vpack.c.b16 %v1584, %v1577
  %v1865 = vpack.c.b16 %v1592, %v1585
  %v1866 = vpack.c.b16 %v1593, %v1586
  %v1867 = vpack.c.b16 %v1594, %v1587
  %v1868 = vpack.c.b16 %v1595, %v1588
  %v1869 = vpack.c.b16 %v1596, %v1589
  %v1870 = vpack.c.b16 %v1597, %v1590
  %v1871 = vpack.c.b16 %v1598, %v1591
  %v1872 = vpack.c.b16 %v1606, %v1599
  %v1873 = vpack.c.b16 %v1607, %v1600
  %v1874 = vpack.c.b16 %v1608, %v1601
  %v1875 = vpack.c.b16 %v1609, %v1602
  %v1876 = vpack.c.b16 %v1610, %v1603
  %v1877 = vpack.c.b16 %v1611, %v1604
  %v1878 = vpack.c.b16 %v1612, %v1605
  %v1879 = vpack.c.b16 %v1620, %v1613
  %v1880 = vpack.c.b16 %v1621, %v1614
  %v1881 = vpack.c.b16 %v1622, %v1615
  %v1882 = vpack.c.b16 %v1623, %v1616
  %v1883 = vpack.c.b16 %v1624, %v1617
  %v1884 = vpack.c.b16 %v1625, %v1618
  %v1885 = vpack.c.b16 %v1626, %v1619
  %v1886 = vpack.c.b16 %v1634, %v1627
  %v1887 = vpack.c.b16 %v1635, %v1628
  %v1888 = vpack.c.b16 %v1636, %v1629
  %v1889 = vpack.c.b16 %v1637, %v1630
  %v1890 = vpack.c.b16 %v1638, %v1631
  %v1891 = vpack.c.b16 %v1639, %v1632
  %v1892 = vpack.c.b16 %v1640, %v1633
  %v1893 = vpack.c.b16 %v1648, %v1641
  %v1894 = vpack.c.b16 %v1649, %v1642
  %v1895 = vpack.c.b16 %v1650, %v1643
  %v1896 = vpack.c.b16 %v1651, %v1644
  %v1897 = vpack.c.b16 %v1652, %v1645
  %v1898 = vpack.c.b16 %v1653, %v1646
  %v1899 = vpack.c.b16 %v1654, %v1647
  %v1900 = vpack.c.b16 %v1662, %v1655
  %v1901 = vpack.c.b16 %v1663, %v1656
  %v1902 = vpack.c.b16 %v1664, %v1657
  %v1903 = vpack.c.b16 %v1665, %v1658
  %v1904 = vpack.c.b16 %v1666, %v1659
  %v1905 = vpack.c.b16 %v1667, %v1660
  %v1906 = vpack.c.b16 %v1668, %v1661
  %v1907 = vpack.c.b16 %v1676, %v1669
  %v1908 = vpack.c.b16 %v1677, %v1670
  %v1909 = vpack.c.b16 %v1678, %v1671
  %v1910 = vpack.c.b16 %v1679, %v1672
  %v1911 = vpack.c.b16 %v1680, %v1673
  %v1912 = vpack.c.b16 %v1681, %v1674
  %v1913 = vpack.c.b16 %v1682, %v1675
  %v1914 = vpack.c.b16 %v1690, %v1683
  %v1915 = vpack.c.b16 %v1691, %v1684
  %v1916 = vpack.c.b16 %v1692, %v1685
  %v1917 = vpack.c.b16 %v1693, %v1686
  %v1918 = vpack.c.b16 %v1694, %v1687
  %v1919 = vpack.c.b16 %v1695, %v1688
  %v1920 = vpack.c.b16 %v1696, %v1689
  %v1921 = vpack.c.b16 %v1704, %v1697
  %v1922 = vpack.c.b16 %v1705, %v1698
  %v1923 = vpack.c.b16 %v1706, %v1699
  %v1924 = vpack.c.b16 %v1707, %v1700
  %v1925 = vpack.c.b16 %v1708, %v1701
  %v1926 = vpack.c.b16 %v1709, %v1702
  %v1927 = vpack.c.b16 %v1710, %v1703
  %v1928 = vpack.c.b16 %v1711, %v1711
  %v1929 = vpack.c.b16 %v1712, %v1712
  %v1930 = vpack.c.b16 %v1713, %v1713
  %v1931 = vpack.c.b16 %v1714, %v1714
  %v1932 = vpack.c.b16 %v1715, %v1715
  %v1933 = vpack.c.b16 %v1716, %v1716
  %v1934 = vpack.c.b16 %v1717, %v1717
  %vm2145 = vcmask 834560
  %v2147 = vsel %vm2145, %v765, 0
  %vm2149 = vcmask 1042432
  %v2151 = vsel %vm2149, %v1928, 0
  %v2154 = vsel %vm2149, %v1929, 0
  %v2157 = vsel %vm2149, %v1930, 0
  %v2160 = vsel %vm2149, %v1931, 0
  %v2163 = vsel %vm2149, %v1932, 0
  %v2166 = vsel %vm2149, %v1933, 0
  %v2169 = vsel %vm2149, %v1934, 0
  %2171 = vmatprep.subr.bf16.mxu0 %v1768
  %2172 = vmatpush1.bf16.msra.mxu0 %v1767
  %2173 = vmatprep.subr.bf16.mxu0 %v1761
  %2174 = vmatpush1.bf16.msra.mxu0 %v1760
  %2175 = vmatprep.subr.bf16.mxu0 %v1754
  %2176 = vmatpush1.bf16.msra.mxu0 %v1753
  %2177 = vmatprep.subr.bf16.mxu0 %v1747
  %2178 = vmatpush1.bf16.msra.mxu0 %v1746
  %2179 = vmatprep.subr.bf16.mxu0 %v1740
  %2180 = vmatpush1.bf16.msra.mxu0 %v1739
  %2181 = vmatprep.subr.bf16.mxu0 %v1733
  %2182 = vmatpush1.bf16.msra.mxu0 %v1732
  %2183 = vmatprep.subr.bf16.mxu0 %v1726
  %2184 = vmatpush1.bf16.msra.mxu0 %v1725
  %2185 = vmatprep.subr.bf16.mxu0 %v1719
  %2186 = vmatpush1.bf16.msra.mxu0 %v1718
  %2187 = vmatprep.subr.bf16.mxu0 %v1824
  %2188 = vmatpush2.bf16.msra.mxu0 %v1823
  %2189 = vmatprep.subr.bf16.mxu0 %v1817
  %2190 = vmatpush2.bf16.msra.mxu0 %v1816
  %2191 = vmatprep.subr.bf16.mxu0 %v1810
  %2192 = vmatpush2.bf16.msra.mxu0 %v1809
  %2193 = vmatprep.subr.bf16.mxu0 %v1803
  %2194 = vmatpush2.bf16.msra.mxu0 %v1802
  %2195 = vmatprep.subr.bf16.mxu0 %v1796
  %2196 = vmatpush2.bf16.msra.mxu0 %v1795
  %2197 = vmatprep.subr.bf16.mxu0 %v1789
  %2198 = vmatpush2.bf16.msra.mxu0 %v1788
  %2199 = vmatprep.subr.bf16.mxu0 %v1782
  %2200 = vmatpush2.bf16.msra.mxu0 %v1781
  %2201 = vmatprep.subr.bf16.mxu0 %v1775
  %2202 = vmatpush2.bf16.msra.mxu0 %v1774
  %2203 = vmatprep.mubr.bf16.mxu0 %v763
  %2204 = vmatmul.mubr.bf16.gmra.mxu0 %v762
  %v2205 = vpop.f32.mrf.mxu0
  %v2206 = vadd.f32 %v1015, %v2205
  %v2207 = vpop.f32.mrf.mxu0
  %v2208 = vadd.f32 %v1019, %v2207
  %v2209 = vpop.f32.mrf.mxu0
  %v2210 = vpop.f32.mrf.mxu0
  %2211 = vdwg.mxu0
  %2212 = vmatprep.subr.bf16.mxu0 %v1880
  %2213 = vmatpush1.bf16.msra.mxu0 %v1879
  %2214 = vmatprep.subr.bf16.mxu0 %v1873
  %2215 = vmatpush1.bf16.msra.mxu0 %v1872
  %2216 = vmatprep.subr.bf16.mxu0 %v1866
  %2217 = vmatpush1.bf16.msra.mxu0 %v1865
  %2218 = vmatprep.subr.bf16.mxu0 %v1859
  %2219 = vmatpush1.bf16.msra.mxu0 %v1858
  %2220 = vmatprep.subr.bf16.mxu0 %v1852
  %2221 = vmatpush1.bf16.msra.mxu0 %v1851
  %2222 = vmatprep.subr.bf16.mxu0 %v1845
  %2223 = vmatpush1.bf16.msra.mxu0 %v1844
  %2224 = vmatprep.subr.bf16.mxu0 %v1838
  %2225 = vmatpush1.bf16.msra.mxu0 %v1837
  %2226 = vmatprep.subr.bf16.mxu0 %v1831
  %2227 = vmatpush1.bf16.msra.mxu0 %v1830
  %2228 = vmatprep.subr.bf16.mxu0 0
  %2229 = vmatpush2.bf16.msra.mxu0 0
  %2230 = vmatprep.subr.bf16.mxu0 %v2154
  %2231 = vmatpush2.bf16.msra.mxu0 %v2151
  %2232 = vmatprep.subr.bf16.mxu0 %v1922
  %2233 = vmatpush2.bf16.msra.mxu0 %v1921
  %2234 = vmatprep.subr.bf16.mxu0 %v1915
  %2235 = vmatpush2.bf16.msra.mxu0 %v1914
  %2236 = vmatprep.subr.bf16.mxu0 %v1908
  %2237 = vmatpush2.bf16.msra.mxu0 %v1907
  %2238 = vmatprep.subr.bf16.mxu0 %v1901
  %2239 = vmatpush2.bf16.msra.mxu0 %v1900
  %2240 = vmatprep.subr.bf16.mxu0 %v1894
  %2241 = vmatpush2.bf16.msra.mxu0 %v1893
  %2242 = vmatprep.subr.bf16.mxu0 %v1887
  %2243 = vmatpush2.bf16.msra.mxu0 %v1886
  %2244 = vmatprep.mubr.bf16.mxu0 %v2147
  %2245 = vmatmul.mubr.bf16.gmra.mxu0 %v764
  %v2246 = vpop.f32.mrf.mxu0
  %v2247 = vadd.f32 %v2206, %v2246
  %v2248 = vpop.f32.mrf.mxu0
  %v2249 = vadd.f32 %v2208, %v2248
  %v2250 = vpop.f32.mrf.mxu0
  %v2251 = vpop.f32.mrf.mxu0
  %2252 = vdwg.mxu0
  %2253 = vmatprep.subr.bf16.mxu0 %v1770
  %2254 = vmatpush1.bf16.msra.mxu0 %v1769
  %2255 = vmatprep.subr.bf16.mxu0 %v1763
  %2256 = vmatpush1.bf16.msra.mxu0 %v1762
  %2257 = vmatprep.subr.bf16.mxu0 %v1756
  %2258 = vmatpush1.bf16.msra.mxu0 %v1755
  %2259 = vmatprep.subr.bf16.mxu0 %v1749
  %2260 = vmatpush1.bf16.msra.mxu0 %v1748
  %2261 = vmatprep.subr.bf16.mxu0 %v1742
  %2262 = vmatpush1.bf16.msra.mxu0 %v1741
  %2263 = vmatprep.subr.bf16.mxu0 %v1735
  %2264 = vmatpush1.bf16.msra.mxu0 %v1734
  %2265 = vmatprep.subr.bf16.mxu0 %v1728
  %2266 = vmatpush1.bf16.msra.mxu0 %v1727
  %2267 = vmatprep.subr.bf16.mxu0 %v1721
  %2268 = vmatpush1.bf16.msra.mxu0 %v1720
  %2269 = vmatprep.subr.bf16.mxu0 %v1826
  %2270 = vmatpush2.bf16.msra.mxu0 %v1825
  %2271 = vmatprep.subr.bf16.mxu0 %v1819
  %2272 = vmatpush2.bf16.msra.mxu0 %v1818
  %2273 = vmatprep.subr.bf16.mxu0 %v1812
  %2274 = vmatpush2.bf16.msra.mxu0 %v1811
  %2275 = vmatprep.subr.bf16.mxu0 %v1805
  %2276 = vmatpush2.bf16.msra.mxu0 %v1804
  %2277 = vmatprep.subr.bf16.mxu0 %v1798
  %2278 = vmatpush2.bf16.msra.mxu0 %v1797
  %2279 = vmatprep.subr.bf16.mxu0 %v1791
  %2280 = vmatpush2.bf16.msra.mxu0 %v1790
  %2281 = vmatprep.subr.bf16.mxu0 %v1784
  %2282 = vmatpush2.bf16.msra.mxu0 %v1783
  %2283 = vmatprep.subr.bf16.mxu0 %v1777
  %2284 = vmatpush2.bf16.msra.mxu0 %v1776
  %2285 = vmatprep.mubr.bf16.mxu0 %v763
  %2286 = vmatmul.mubr.bf16.gmra.mxu0 %v762
  %v2287 = vpop.f32.mrf.mxu0
  %v2288 = vadd.f32 %v1023, %v2287
  %v2289 = vpop.f32.mrf.mxu0
  %v2290 = vadd.f32 %v1027, %v2289
  %v2291 = vpop.f32.mrf.mxu0
  %v2292 = vpop.f32.mrf.mxu0
  %2293 = vdwg.mxu0
  %2294 = vmatprep.subr.bf16.mxu0 %v1882
  %2295 = vmatpush1.bf16.msra.mxu0 %v1881
  %2296 = vmatprep.subr.bf16.mxu0 %v1875
  %2297 = vmatpush1.bf16.msra.mxu0 %v1874
  %2298 = vmatprep.subr.bf16.mxu0 %v1868
  %2299 = vmatpush1.bf16.msra.mxu0 %v1867
  %2300 = vmatprep.subr.bf16.mxu0 %v1861
  %2301 = vmatpush1.bf16.msra.mxu0 %v1860
  %2302 = vmatprep.subr.bf16.mxu0 %v1854
  %2303 = vmatpush1.bf16.msra.mxu0 %v1853
  %2304 = vmatprep.subr.bf16.mxu0 %v1847
  %2305 = vmatpush1.bf16.msra.mxu0 %v1846
  %2306 = vmatprep.subr.bf16.mxu0 %v1840
  %2307 = vmatpush1.bf16.msra.mxu0 %v1839
  %2308 = vmatprep.subr.bf16.mxu0 %v1833
  %2309 = vmatpush1.bf16.msra.mxu0 %v1832
  %2310 = vmatprep.subr.bf16.mxu0 0
  %2311 = vmatpush2.bf16.msra.mxu0 0
  %2312 = vmatprep.subr.bf16.mxu0 %v2160
  %2313 = vmatpush2.bf16.msra.mxu0 %v2157
  %2314 = vmatprep.subr.bf16.mxu0 %v1924
  %2315 = vmatpush2.bf16.msra.mxu0 %v1923
  %2316 = vmatprep.subr.bf16.mxu0 %v1917
  %2317 = vmatpush2.bf16.msra.mxu0 %v1916
  %2318 = vmatprep.subr.bf16.mxu0 %v1910
  %2319 = vmatpush2.bf16.msra.mxu0 %v1909
  %2320 = vmatprep.subr.bf16.mxu0 %v1903
  %2321 = vmatpush2.bf16.msra.mxu0 %v1902
  %2322 = vmatprep.subr.bf16.mxu0 %v1896
  %2323 = vmatpush2.bf16.msra.mxu0 %v1895
  %2324 = vmatprep.subr.bf16.mxu0 %v1889
  %2325 = vmatpush2.bf16.msra.mxu0 %v1888
  %2326 = vmatprep.mubr.bf16.mxu0 %v2147
  %2327 = vmatmul.mubr.bf16.gmra.mxu0 %v764
  %v2328 = vpop.f32.mrf.mxu0
  %v2329 = vadd.f32 %v2288, %v2328
  %v2330 = vpop.f32.mrf.mxu0
  %v2331 = vadd.f32 %v2290, %v2330
  %v2332 = vpop.f32.mrf.mxu0
  %v2333 = vpop.f32.mrf.mxu0
  %2334 = vdwg.mxu0
  %2335 = vmatprep.subr.bf16.mxu0 %v1772
  %2336 = vmatpush1.bf16.msra.mxu0 %v1771
  %2337 = vmatprep.subr.bf16.mxu0 %v1765
  %2338 = vmatpush1.bf16.msra.mxu0 %v1764
  %2339 = vmatprep.subr.bf16.mxu0 %v1758
  %2340 = vmatpush1.bf16.msra.mxu0 %v1757
  %2341 = vmatprep.subr.bf16.mxu0 %v1751
  %2342 = vmatpush1.bf16.msra.mxu0 %v1750
  %2343 = vmatprep.subr.bf16.mxu0 %v1744
  %2344 = vmatpush1.bf16.msra.mxu0 %v1743
  %2345 = vmatprep.subr.bf16.mxu0 %v1737
  %2346 = vmatpush1.bf16.msra.mxu0 %v1736
  %2347 = vmatprep.subr.bf16.mxu0 %v1730
  %2348 = vmatpush1.bf16.msra.mxu0 %v1729
  %2349 = vmatprep.subr.bf16.mxu0 %v1723
  %2350 = vmatpush1.bf16.msra.mxu0 %v1722
  %2351 = vmatprep.subr.bf16.mxu0 %v1828
  %2352 = vmatpush2.bf16.msra.mxu0 %v1827
  %2353 = vmatprep.subr.bf16.mxu0 %v1821
  %2354 = vmatpush2.bf16.msra.mxu0 %v1820
  %2355 = vmatprep.subr.bf16.mxu0 %v1814
  %2356 = vmatpush2.bf16.msra.mxu0 %v1813
  %2357 = vmatprep.subr.bf16.mxu0 %v1807
  %2358 = vmatpush2.bf16.msra.mxu0 %v1806
  %2359 = vmatprep.subr.bf16.mxu0 %v1800
  %2360 = vmatpush2.bf16.msra.mxu0 %v1799
  %2361 = vmatprep.subr.bf16.mxu0 %v1793
  %2362 = vmatpush2.bf16.msra.mxu0 %v1792
  %2363 = vmatprep.subr.bf16.mxu0 %v1786
  %2364 = vmatpush2.bf16.msra.mxu0 %v1785
  %2365 = vmatprep.subr.bf16.mxu0 %v1779
  %2366 = vmatpush2.bf16.msra.mxu0 %v1778
  %2367 = vmatprep.mubr.bf16.mxu0 %v763
  %2368 = vmatmul.mubr.bf16.gmra.mxu0 %v762
  %v2369 = vpop.f32.mrf.mxu0
  %v2370 = vadd.f32 %v1031, %v2369
  %v2371 = vpop.f32.mrf.mxu0
  %v2372 = vadd.f32 %v1035, %v2371
  %v2373 = vpop.f32.mrf.mxu0
  %v2374 = vpop.f32.mrf.mxu0
  %2375 = vdwg.mxu0
  %2376 = vmatprep.subr.bf16.mxu0 %v1884
  %2377 = vmatpush1.bf16.msra.mxu0 %v1883
  %2378 = vmatprep.subr.bf16.mxu0 %v1877
  %2379 = vmatpush1.bf16.msra.mxu0 %v1876
  %2380 = vmatprep.subr.bf16.mxu0 %v1870
  %2381 = vmatpush1.bf16.msra.mxu0 %v1869
  %2382 = vmatprep.subr.bf16.mxu0 %v1863
  %2383 = vmatpush1.bf16.msra.mxu0 %v1862
  %2384 = vmatprep.subr.bf16.mxu0 %v1856
  %2385 = vmatpush1.bf16.msra.mxu0 %v1855
  %2386 = vmatprep.subr.bf16.mxu0 %v1849
  %2387 = vmatpush1.bf16.msra.mxu0 %v1848
  %2388 = vmatprep.subr.bf16.mxu0 %v1842
  %2389 = vmatpush1.bf16.msra.mxu0 %v1841
  %2390 = vmatprep.subr.bf16.mxu0 %v1835
  %2391 = vmatpush1.bf16.msra.mxu0 %v1834
  %2392 = vmatprep.subr.bf16.mxu0 0
  %2393 = vmatpush2.bf16.msra.mxu0 0
  %2394 = vmatprep.subr.bf16.mxu0 %v2166
  %2395 = vmatpush2.bf16.msra.mxu0 %v2163
  %2396 = vmatprep.subr.bf16.mxu0 %v1926
  %2397 = vmatpush2.bf16.msra.mxu0 %v1925
  %2398 = vmatprep.subr.bf16.mxu0 %v1919
  %2399 = vmatpush2.bf16.msra.mxu0 %v1918
  %2400 = vmatprep.subr.bf16.mxu0 %v1912
  %2401 = vmatpush2.bf16.msra.mxu0 %v1911
  %2402 = vmatprep.subr.bf16.mxu0 %v1905
  %2403 = vmatpush2.bf16.msra.mxu0 %v1904
  %2404 = vmatprep.subr.bf16.mxu0 %v1898
  %2405 = vmatpush2.bf16.msra.mxu0 %v1897
  %2406 = vmatprep.subr.bf16.mxu0 %v1891
  %2407 = vmatpush2.bf16.msra.mxu0 %v1890
  %2408 = vmatprep.mubr.bf16.mxu0 %v2147
  %2409 = vmatmul.mubr.bf16.gmra.mxu0 %v764
  %v2410 = vpop.f32.mrf.mxu0
  %v2411 = vadd.f32 %v2370, %v2410
  %v2412 = vpop.f32.mrf.mxu0
  %v2413 = vadd.f32 %v2372, %v2412
  %v2414 = vpop.f32.mrf.mxu0
  %v2415 = vpop.f32.mrf.mxu0
  %2416 = vdwg.mxu0
  %2417 = vmatprep.subr.bf16.mxu0 0
  %2418 = vmatpush1.bf16.msra.mxu0 %v1773
  %2419 = vmatprep.subr.bf16.mxu0 0
  %2420 = vmatpush1.bf16.msra.mxu0 %v1766
  %2421 = vmatprep.subr.bf16.mxu0 0
  %2422 = vmatpush1.bf16.msra.mxu0 %v1759
  %2423 = vmatprep.subr.bf16.mxu0 0
  %2424 = vmatpush1.bf16.msra.mxu0 %v1752
  %2425 = vmatprep.subr.bf16.mxu0 0
  %2426 = vmatpush1.bf16.msra.mxu0 %v1745
  %2427 = vmatprep.subr.bf16.mxu0 0
  %2428 = vmatpush1.bf16.msra.mxu0 %v1738
  %2429 = vmatprep.subr.bf16.mxu0 0
  %2430 = vmatpush1.bf16.msra.mxu0 %v1731
  %2431 = vmatprep.subr.bf16.mxu0 0
  %2432 = vmatpush1.bf16.msra.mxu0 %v1724
  %2433 = vmatprep.subr.bf16.mxu0 0
  %2434 = vmatpush2.bf16.msra.mxu0 %v1829
  %2435 = vmatprep.subr.bf16.mxu0 0
  %2436 = vmatpush2.bf16.msra.mxu0 %v1822
  %2437 = vmatprep.subr.bf16.mxu0 0
  %2438 = vmatpush2.bf16.msra.mxu0 %v1815
  %2439 = vmatprep.subr.bf16.mxu0 0
  %2440 = vmatpush2.bf16.msra.mxu0 %v1808
  %2441 = vmatprep.subr.bf16.mxu0 0
  %2442 = vmatpush2.bf16.msra.mxu0 %v1801
  %2443 = vmatprep.subr.bf16.mxu0 0
  %2444 = vmatpush2.bf16.msra.mxu0 %v1794
  %2445 = vmatprep.subr.bf16.mxu0 0
  %2446 = vmatpush2.bf16.msra.mxu0 %v1787
  %2447 = vmatprep.subr.bf16.mxu0 0
  %2448 = vmatpush2.bf16.msra.mxu0 %v1780
  %2449 = vmatprep.mubr.bf16.mxu0 %v763
  %2450 = vmatmul.mubr.bf16.gmra.mxu0 %v762
  %v2451 = vpop.f32.mrf.mxu0
  %v2452 = vadd.f32 %v1039, %v2451
  %v2453 = vpop.f32.mrf.mxu0
  %v2454 = vpop.f32.mrf.mxu0
  %v2455 = vpop.f32.mrf.mxu0
  %2456 = vdwg.mxu0
  %2457 = vmatprep.subr.bf16.mxu0 0
  %2458 = vmatpush1.bf16.msra.mxu0 %v1885
  %2459 = vmatprep.subr.bf16.mxu0 0
  %2460 = vmatpush1.bf16.msra.mxu0 %v1878
  %2461 = vmatprep.subr.bf16.mxu0 0
  %2462 = vmatpush1.bf16.msra.mxu0 %v1871
  %2463 = vmatprep.subr.bf16.mxu0 0
  %2464 = vmatpush1.bf16.msra.mxu0 %v1864
  %2465 = vmatprep.subr.bf16.mxu0 0
  %2466 = vmatpush1.bf16.msra.mxu0 %v1857
  %2467 = vmatprep.subr.bf16.mxu0 0
  %2468 = vmatpush1.bf16.msra.mxu0 %v1850
  %2469 = vmatprep.subr.bf16.mxu0 0
  %2470 = vmatpush1.bf16.msra.mxu0 %v1843
  %2471 = vmatprep.subr.bf16.mxu0 0
  %2472 = vmatpush1.bf16.msra.mxu0 %v1836
  %2473 = vmatprep.subr.bf16.mxu0 0
  %2474 = vmatpush2.bf16.msra.mxu0 0
  %2475 = vmatprep.subr.bf16.mxu0 0
  %2476 = vmatpush2.bf16.msra.mxu0 %v2169
  %2477 = vmatprep.subr.bf16.mxu0 0
  %2478 = vmatpush2.bf16.msra.mxu0 %v1927
  %2479 = vmatprep.subr.bf16.mxu0 0
  %2480 = vmatpush2.bf16.msra.mxu0 %v1920
  %2481 = vmatprep.subr.bf16.mxu0 0
  %2482 = vmatpush2.bf16.msra.mxu0 %v1913
  %2483 = vmatprep.subr.bf16.mxu0 0
  %2484 = vmatpush2.bf16.msra.mxu0 %v1906
  %2485 = vmatprep.subr.bf16.mxu0 0
  %2486 = vmatpush2.bf16.msra.mxu0 %v1899
  %2487 = vmatprep.subr.bf16.mxu0 0
  %2488 = vmatpush2.bf16.msra.mxu0 %v1892
  %2489 = vmatprep.mubr.bf16.mxu0 %v2147
  %2490 = vmatmul.mubr.bf16.gmra.mxu0 %v764
  %v2491 = vpop.f32.mrf.mxu0
  %v2492 = vadd.f32 %v2452, %v2491
  %v2493 = vpop.f32.mrf.mxu0
  %v2494 = vpop.f32.mrf.mxu0
  %v2495 = vpop.f32.mrf.mxu0
  %2496 = vdwg.mxu0
  %v2497 = vmax.f32 %v2247, 0.0
  %v2498 = vmax.f32 %v2249, 0.0
  %v2499 = vmax.f32 %v2329, 0.0
  %v2500 = vmax.f32 %v2331, 0.0
  %v2501 = vmax.f32 %v2411, 0.0
  %v2502 = vmax.f32 %v2413, 0.0
  %v2503 = vmax.f32 %v2492, 0.0
  %v2504 = vpack.c.bf16 %v2497, %v2497
  %v2505 = vpack.c.bf16 %v2498, %v2498
  %v2506 = vpack.c.bf16 %v2499, %v2499
  %v2507 = vpack.c.bf16 %v2500, %v2500
  %v2508 = vpack.c.bf16 %v2501, %v2501
  %v2509 = vpack.c.bf16 %v2502, %v2502
  %v2510 = vpack.c.bf16 %v2503, %v2503
  %v2511 = vld [vmem:[%s5] sm:$0xff]
  %v2512 = vld [vmem:[%s5 + $0x8] sm:$0xff]
  %v2513 = vld [vmem:[%s5 + $0x10] sm:$0xff]
  %v2514 = vld [vmem:[%s5 + $0x18] sm:$0xff]
  %v2515 = vld [vmem:[%s5 + $0x20] sm:$0xff]
  %v2516 = vld [vmem:[%s5 + $0x28] sm:$0xff]
  %v2517 = vld [vmem:[%s5 + $0x30] sm:$0xff]
  %v2518 = vld [vmem:[%s5 + $0x38] sm:$0xff]
  %v2519 = vld [vmem:[%s5 + $0x40] sm:$0xff]
  %v2520 = vld [vmem:[%s5 + $0x48] sm:$0xff]
  %v2521 = vld [vmem:[%s5 + $0x50] sm:$0xff]
  %v2522 = vld [vmem:[%s5 + $0x58] sm:$0xff]
  %v2523 = vld [vmem:[%s5 + $0x60] sm:$0xff]
  %v2524 = vld [vmem:[%s5 + $0x68] sm:$0xff]
  %v2525 = vld [vmem:[%s5 + $0x70] sm:$0xff]
  %v2526 = vld [vmem:[%s5 + $0x78] sm:$0xff]
  %v2527 = vld [vmem:[%s5 + $0x80] sm:$0xff]
  %v2528 = vld [vmem:[%s5 + $0x88] sm:$0xff]
  %v2529 = vld [vmem:[%s5 + $0x90] sm:$0xff]
  %v2530 = vld [vmem:[%s5 + $0x98] sm:$0xff]
  %v2531 = vld [vmem:[%s5 + $0xa0] sm:$0xff]
  %v2532 = vld [vmem:[%s5 + $0xa8] sm:$0xff]
  %v2533 = vld [vmem:[%s5 + $0xb0] sm:$0xff]
  %v2534 = vld [vmem:[%s5 + $0xb8] sm:$0xff]
  %v2535 = vld [vmem:[%s5 + $0xc0] sm:$0xff]
  %v2536 = vld [vmem:[%s5 + $0xc8] sm:$0xff]
  %v2537 = vld [vmem:[%s5 + $0xd0] sm:$0xff]
  %v2538 = vld [vmem:[%s5 + $0xd8] sm:$0xff]
  %v2539 = vld [vmem:[%s5 + $0xe0] sm:$0xff]
  %v2540 = vld [vmem:[%s5 + $0xe8] sm:$0xff]
  %v2541 = vld [vmem:[%s5 + $0xf0] sm:$0xff]
  %v2542 = vld [vmem:[%s5 + $0xf8] sm:$0xff]
  %v2543 = vld [vmem:[%s5 + $0x100] sm:$0xff]
  %v2544 = vld [vmem:[%s5 + $0x108] sm:$0xff]
  %v2545 = vld [vmem:[%s5 + $0x110] sm:$0xff]
  %v2546 = vld [vmem:[%s5 + $0x118] sm:$0xff]
  %v2547 = vld [vmem:[%s5 + $0x120] sm:$0xff]
  %v2548 = vld [vmem:[%s5 + $0x128] sm:$0xff]
  %v2549 = vld [vmem:[%s5 + $0x130] sm:$0xff]
  %v2550 = vld [vmem:[%s5 + $0x138] sm:$0xff]
  %v2551 = vld [vmem:[%s5 + $0x140] sm:$0xff]
  %v2552 = vld [vmem:[%s5 + $0x148] sm:$0xff]
  %v2553 = vld [vmem:[%s5 + $0x150] sm:$0xff]
  %v2554 = vld [vmem:[%s5 + $0x158] sm:$0xff]
  %v2555 = vld [vmem:[%s5 + $0x160] sm:$0xff]
  %v2556 = vld [vmem:[%s5 + $0x168] sm:$0xff]
  %v2557 = vld [vmem:[%s5 + $0x170] sm:$0xff]
  %v2558 = vld [vmem:[%s5 + $0x178] sm:$0xff]
  %v2559 = vld [vmem:[%s5 + $0x180] sm:$0xff]
  %v2560 = vld [vmem:[%s5 + $0x188] sm:$0xff]
  %v2561 = vld [vmem:[%s5 + $0x190] sm:$0xff]
  %v2562 = vld [vmem:[%s5 + $0x198] sm:$0xff]
  %v2563 = vld [vmem:[%s5 + $0x1a0] sm:$0xff]
  %v2564 = vld [vmem:[%s5 + $0x1a8] sm:$0xff]
  %v2565 = vld [vmem:[%s5 + $0x1b0] sm:$0xff]
  %v2566 = vld [vmem:[%s5 + $0x1b8] sm:$0xff]
  %v2567 = vld [vmem:[%s5 + $0x1c0] sm:$0xff]
  %v2568 = vld [vmem:[%s5 + $0x1c8] sm:$0xff]
  %v2569 = vld [vmem:[%s5 + $0x1d0] sm:$0xff]
  %v2570 = vld [vmem:[%s5 + $0x1d8] sm:$0xff]
  %v2571 = vld [vmem:[%s5 + $0x1e0] sm:$0xff]
  %v2572 = vld [vmem:[%s5 + $0x1e8] sm:$0xff]
  %v2573 = vld [vmem:[%s5 + $0x1f0] sm:$0xff]
  %v2574 = vld [vmem:[%s5 + $0x1f8] sm:$0xff]
  %v2575 = vld [vmem:[%s5 + $0x200] sm:$0xff]
  %v2576 = vld [vmem:[%s5 + $0x208] sm:$0xff]
  %v2577 = vld [vmem:[%s5 + $0x210] sm:$0xff]
  %v2578 = vld [vmem:[%s5 + $0x218] sm:$0xff]
  %v2579 = vld [vmem:[%s5 + $0x220] sm:$0xff]
  %v2580 = vld [vmem:[%s5 + $0x228] sm:$0xff]
  %v2581 = vld [vmem:[%s5 + $0x230] sm:$0xff]
  %v2582 = vld [vmem:[%s5 + $0x238] sm:$0xff]
  %v2583 = vld [vmem:[%s5 + $0x240] sm:$0xff]
  %v2584 = vld [vmem:[%s5 + $0x248] sm:$0xff]
  %v2585 = vld [vmem:[%s5 + $0x250] sm:$0xff]
  %v2586 = vld [vmem:[%s5 + $0x258] sm:$0xff]
  %v2587 = vld [vmem:[%s5 + $0x260] sm:$0xff]
  %v2588 = vld [vmem:[%s5 + $0x268] sm:$0xff]
  %v2589 = vld [vmem:[%s5 + $0x270] sm:$0xff]
  %v2590 = vld [vmem:[%s5 + $0x278] sm:$0xff]
  %v2591 = vld [vmem:[%s5 + $0x280] sm:$0xff]
  %v2592 = vld [vmem:[%s5 + $0x288] sm:$0xff]
  %v2593 = vld [vmem:[%s5 + $0x290] sm:$0xff]
  %v2594 = vld [vmem:[%s5 + $0x298] sm:$0xff]
  %v2595 = vld [vmem:[%s5 + $0x2a0] sm:$0xff]
  %v2596 = vld [vmem:[%s5 + $0x2a8] sm:$0xff]
  %v2597 = vld [vmem:[%s5 + $0x2b0] sm:$0xff]
  %v2598 = vld [vmem:[%s5 + $0x2b8] sm:$0xff]
  %v2599 = vld [vmem:[%s5 + $0x2c0] sm:$0xff]
  %v2600 = vld [vmem:[%s5 + $0x2c8] sm:$0xff]
  %v2601 = vld [vmem:[%s5 + $0x2d0] sm:$0xff]
  %v2602 = vld [vmem:[%s5 + $0x2d8] sm:$0xff]
  %v2603 = vld [vmem:[%s5 + $0x2e0] sm:$0xff]
  %v2604 = vld [vmem:[%s5 + $0x2e8] sm:$0xff]
  %v2605 = vld [vmem:[%s5 + $0x2f0] sm:$0xff]
  %v2606 = vld [vmem:[%s5 + $0x2f8] sm:$0xff]
  %v2607 = vld [vmem:[%s5 + $0x300] sm:$0xff]
  %v2608 = vld [vmem:[%s5 + $0x308] sm:$0xff]
  %v2609 = vld [vmem:[%s6] sm:$0x3]
  %v2611 = vlaneseq
  %v2612 = vshrl.u32 %v2611, 7
  %v2613 = vsub.s32 0, %v2612
  %v2614 = vrot.slane %v2609, %v2613
  %v2615 = vlaneseq
  %v2616 = vshrl.u32 %v2615, 7
  %v2617 = vsub.s32 1, %v2616
  %v2618 = vrot.slane %v2609, %v2617
  %v2719 = vunpack.c.l.b16 %v2511
  %v2720 = vunpack.c.h.b16 %v2511
  %v2721 = vunpack.c.l.b16 %v2512
  %v2722 = vunpack.c.h.b16 %v2512
  %v2723 = vunpack.c.l.b16 %v2513
  %v2724 = vunpack.c.h.b16 %v2513
  %v2725 = vunpack.c.l.b16 %v2514
  %v2726 = vunpack.c.h.b16 %v2514
  %v2727 = vunpack.c.l.b16 %v2515
  %v2728 = vunpack.c.h.b16 %v2515
  %v2729 = vunpack.c.l.b16 %v2516
  %v2730 = vunpack.c.h.b16 %v2516
  %v2731 = vunpack.c.l.b16 %v2517
  %v2732 = vunpack.c.h.b16 %v2517
  %v2733 = vunpack.c.l.b16 %v2518
  %v2734 = vunpack.c.h.b16 %v2518
  %v2735 = vunpack.c.l.b16 %v2519
  %v2736 = vunpack.c.h.b16 %v2519
  %v2737 = vunpack.c.l.b16 %v2520
  %v2738 = vunpack.c.h.b16 %v2520
  %v2739 = vunpack.c.l.b16 %v2521
  %v2740 = vunpack.c.h.b16 %v2521
  %v2741 = vunpack.c.l.b16 %v2522
  %v2742 = vunpack.c.h.b16 %v2522
  %v2743 = vunpack.c.l.b16 %v2523
  %v2744 = vunpack.c.h.b16 %v2523
  %v2745 = vunpack.c.l.b16 %v2524
  %v2746 = vunpack.c.h.b16 %v2524
  %v2747 = vunpack.c.l.b16 %v2525
  %v2748 = vunpack.c.h.b16 %v2525
  %v2749 = vunpack.c.l.b16 %v2526
  %v2750 = vunpack.c.h.b16 %v2526
  %v2751 = vunpack.c.l.b16 %v2527
  %v2752 = vunpack.c.h.b16 %v2527
  %v2753 = vunpack.c.l.b16 %v2528
  %v2754 = vunpack.c.h.b16 %v2528
  %v2755 = vunpack.c.l.b16 %v2529
  %v2756 = vunpack.c.h.b16 %v2529
  %v2757 = vunpack.c.l.b16 %v2530
  %v2758 = vunpack.c.h.b16 %v2530
  %v2759 = vunpack.c.l.b16 %v2531
  %v2760 = vunpack.c.h.b16 %v2531
  %v2761 = vunpack.c.l.b16 %v2532
  %v2762 = vunpack.c.h.b16 %v2532
  %v2763 = vunpack.c.l.b16 %v2533
  %v2764 = vunpack.c.h.b16 %v2533
  %v2765 = vunpack.c.l.b16 %v2534
  %v2766 = vunpack.c.h.b16 %v2534
  %v2767 = vunpack.c.l.b16 %v2535
  %v2768 = vunpack.c.h.b16 %v2535
  %v2769 = vunpack.c.l.b16 %v2536
  %v2770 = vunpack.c.h.b16 %v2536
  %v2771 = vunpack.c.l.b16 %v2537
  %v2772 = vunpack.c.h.b16 %v2537
  %v2773 = vunpack.c.l.b16 %v2538
  %v2774 = vunpack.c.h.b16 %v2538
  %v2775 = vunpack.c.l.b16 %v2539
  %v2776 = vunpack.c.h.b16 %v2539
  %v2777 = vunpack.c.l.b16 %v2540
  %v2778 = vunpack.c.h.b16 %v2540
  %v2779 = vunpack.c.l.b16 %v2541
  %v2780 = vunpack.c.h.b16 %v2541
  %v2781 = vunpack.c.l.b16 %v2542
  %v2782 = vunpack.c.h.b16 %v2542
  %v2783 = vunpack.c.l.b16 %v2543
  %v2784 = vunpack.c.h.b16 %v2543
  %v2785 = vunpack.c.l.b16 %v2544
  %v2786 = vunpack.c.h.b16 %v2544
  %v2787 = vunpack.c.l.b16 %v2545
  %v2788 = vunpack.c.h.b16 %v2545
  %v2789 = vunpack.c.l.b16 %v2546
  %v2790 = vunpack.c.h.b16 %v2546
  %v2791 = vunpack.c.l.b16 %v2547
  %v2792 = vunpack.c.h.b16 %v2547
  %v2793 = vunpack.c.l.b16 %v2548
  %v2794 = vunpack.c.h.b16 %v2548
  %v2795 = vunpack.c.l.b16 %v2549
  %v2796 = vunpack.c.h.b16 %v2549
  %v2797 = vunpack.c.l.b16 %v2550
  %v2798 = vunpack.c.h.b16 %v2550
  %v2799 = vunpack.c.l.b16 %v2551
  %v2800 = vunpack.c.h.b16 %v2551
  %v2801 = vunpack.c.l.b16 %v2552
  %v2802 = vunpack.c.h.b16 %v2552
  %v2803 = vunpack.c.l.b16 %v2553
  %v2804 = vunpack.c.h.b16 %v2553
  %v2805 = vunpack.c.l.b16 %v2554
  %v2806 = vunpack.c.h.b16 %v2554
  %v2807 = vunpack.c.l.b16 %v2555
  %v2808 = vunpack.c.h.b16 %v2555
  %v2809 = vunpack.c.l.b16 %v2556
  %v2810 = vunpack.c.h.b16 %v2556
  %v2811 = vunpack.c.l.b16 %v2557
  %v2812 = vunpack.c.h.b16 %v2557
  %v2813 = vunpack.c.l.b16 %v2558
  %v2814 = vunpack.c.h.b16 %v2558
  %v2815 = vunpack.c.l.b16 %v2559
  %v2816 = vunpack.c.h.b16 %v2559
  %v2817 = vunpack.c.l.b16 %v2560
  %v2818 = vunpack.c.h.b16 %v2560
  %v2819 = vunpack.c.l.b16 %v2561
  %v2820 = vunpack.c.h.b16 %v2561
  %v2821 = vunpack.c.l.b16 %v2562
  %v2822 = vunpack.c.h.b16 %v2562
  %v2823 = vunpack.c.l.b16 %v2563
  %v2824 = vunpack.c.h.b16 %v2563
  %v2825 = vunpack.c.l.b16 %v2564
  %v2826 = vunpack.c.h.b16 %v2564
  %v2827 = vunpack.c.l.b16 %v2565
  %v2828 = vunpack.c.h.b16 %v2565
  %v2829 = vunpack.c.l.b16 %v2566
  %v2830 = vunpack.c.h.b16 %v2566
  %v2831 = vunpack.c.l.b16 %v2567
  %v2832 = vunpack.c.h.b16 %v2567
  %v2833 = vunpack.c.l.b16 %v2568
  %v2834 = vunpack.c.h.b16 %v2568
  %v2835 = vunpack.c.l.b16 %v2569
  %v2836 = vunpack.c.h.b16 %v2569
  %v2837 = vunpack.c.l.b16 %v2570
  %v2838 = vunpack.c.h.b16 %v2570
  %v2839 = vunpack.c.l.b16 %v2571
  %v2840 = vunpack.c.h.b16 %v2571
  %v2841 = vunpack.c.l.b16 %v2572
  %v2842 = vunpack.c.h.b16 %v2572
  %v2843 = vunpack.c.l.b16 %v2573
  %v2844 = vunpack.c.h.b16 %v2573
  %v2845 = vunpack.c.l.b16 %v2574
  %v2846 = vunpack.c.h.b16 %v2574
  %v2847 = vunpack.c.l.b16 %v2575
  %v2848 = vunpack.c.h.b16 %v2575
  %v2849 = vunpack.c.l.b16 %v2576
  %v2850 = vunpack.c.h.b16 %v2576
  %v2851 = vunpack.c.l.b16 %v2577
  %v2852 = vunpack.c.h.b16 %v2577
  %v2853 = vunpack.c.l.b16 %v2578
  %v2854 = vunpack.c.h.b16 %v2578
  %v2855 = vunpack.c.l.b16 %v2579
  %v2856 = vunpack.c.h.b16 %v2579
  %v2857 = vunpack.c.l.b16 %v2580
  %v2858 = vunpack.c.h.b16 %v2580
  %v2859 = vunpack.c.l.b16 %v2581
  %v2860 = vunpack.c.h.b16 %v2581
  %v2861 = vunpack.c.l.b16 %v2582
  %v2862 = vunpack.c.h.b16 %v2582
  %v2863 = vunpack.c.l.b16 %v2583
  %v2864 = vunpack.c.h.b16 %v2583
  %v2865 = vunpack.c.l.b16 %v2584
  %v2866 = vunpack.c.h.b16 %v2584
  %v2867 = vunpack.c.l.b16 %v2585
  %v2868 = vunpack.c.h.b16 %v2585
  %v2869 = vunpack.c.l.b16 %v2586
  %v2870 = vunpack.c.h.b16 %v2586
  %v2871 = vunpack.c.l.b16 %v2587
  %v2872 = vunpack.c.h.b16 %v2587
  %v2873 = vunpack.c.l.b16 %v2588
  %v2874 = vunpack.c.h.b16 %v2588
  %v2875 = vunpack.c.l.b16 %v2589
  %v2876 = vunpack.c.h.b16 %v2589
  %v2877 = vunpack.c.l.b16 %v2590
  %v2878 = vunpack.c.h.b16 %v2590
  %v2879 = vunpack.c.l.b16 %v2591
  %v2880 = vunpack.c.h.b16 %v2591
  %v2881 = vunpack.c.l.b16 %v2592
  %v2882 = vunpack.c.h.b16 %v2592
  %v2883 = vunpack.c.l.b16 %v2593
  %v2884 = vunpack.c.h.b16 %v2593
  %v2885 = vunpack.c.l.b16 %v2594
  %v2886 = vunpack.c.h.b16 %v2594
  %v2887 = vunpack.c.l.b16 %v2595
  %v2888 = vunpack.c.h.b16 %v2595
  %v2889 = vunpack.c.l.b16 %v2596
  %v2890 = vunpack.c.h.b16 %v2596
  %v2891 = vunpack.c.l.b16 %v2597
  %v2892 = vunpack.c.h.b16 %v2597
  %v2893 = vunpack.c.l.b16 %v2598
  %v2894 = vunpack.c.h.b16 %v2598
  %v2895 = vunpack.c.l.b16 %v2599
  %v2896 = vunpack.c.h.b16 %v2599
  %v2897 = vunpack.c.l.b16 %v2600
  %v2898 = vunpack.c.h.b16 %v2600
  %v2899 = vunpack.c.l.b16 %v2601
  %v2900 = vunpack.c.h.b16 %v2601
  %v2901 = vunpack.c.l.b16 %v2602
  %v2902 = vunpack.c.h.b16 %v2602
  %v2903 = vunpack.c.l.b16 %v2603
  %v2904 = vunpack.c.h.b16 %v2603
  %v2905 = vunpack.c.l.b16 %v2604
  %v2906 = vunpack.c.h.b16 %v2604
  %v2907 = vunpack.c.l.b16 %v2605
  %v2908 = vunpack.c.h.b16 %v2605
  %v2909 = vunpack.c.l.b16 %v2606
  %v2910 = vunpack.c.h.b16 %v2606
  %v2911 = vunpack.c.l.b16 %v2607
  %v2912 = vunpack.c.h.b16 %v2607
  %v2913 = vunpack.c.l.b16 %v2608
  %v2914 = vunpack.c.h.b16 %v2608
  %v2915 = vpack.c.b16 %v2721, %v2719
  %v2916 = vpack.c.b16 %v2722, %v2720
  %v2917 = vpack.c.b16 %v2725, %v2723
  %v2918 = vpack.c.b16 %v2726, %v2724
  %v2919 = vpack.c.b16 %v2729, %v2727
  %v2920 = vpack.c.b16 %v2730, %v2728
  %v2921 = vpack.c.b16 %v2733, %v2731
  %v2922 = vpack.c.b16 %v2734, %v2732
  %v2923 = vpack.c.b16 %v2737, %v2735
  %v2924 = vpack.c.b16 %v2738, %v2736
  %v2925 = vpack.c.b16 %v2741, %v2739
  %v2926 = vpack.c.b16 %v2742, %v2740
  %v2927 = vpack.c.b16 %v2745, %v2743
  %v2928 = vpack.c.b16 %v2746, %v2744
  %v2929 = vpack.c.b16 %v2749, %v2747
  %v2930 = vpack.c.b16 %v2750, %v2748
  %v2931 = vpack.c.b16 %v2753, %v2751
  %v2932 = vpack.c.b16 %v2754, %v2752
  %v2933 = vpack.c.b16 %v2757, %v2755
  %v2934 = vpack.c.b16 %v2758, %v2756
  %v2935 = vpack.c.b16 %v2761, %v2759
  %v2936 = vpack.c.b16 %v2762, %v2760
  %v2937 = vpack.c.b16 %v2765, %v2763
  %v2938 = vpack.c.b16 %v2766, %v2764
  %v2939 = vpack.c.b16 %v2769, %v2767
  %v2940 = vpack.c.b16 %v2770, %v2768
  %v2941 = vpack.c.b16 %v2773, %v2771
  %v2942 = vpack.c.b16 %v2774, %v2772
  %v2943 = vpack.c.b16 %v2777, %v2775
  %v2944 = vpack.c.b16 %v2778, %v2776
  %v2945 = vpack.c.b16 %v2781, %v2779
  %v2946 = vpack.c.b16 %v2782, %v2780
  %v2947 = vpack.c.b16 %v2785, %v2783
  %v2948 = vpack.c.b16 %v2786, %v2784
  %v2949 = vpack.c.b16 %v2789, %v2787
  %v2950 = vpack.c.b16 %v2790, %v2788
  %v2951 = vpack.c.b16 %v2793, %v2791
  %v2952 = vpack.c.b16 %v2794, %v2792
  %v2953 = vpack.c.b16 %v2797, %v2795
  %v2954 = vpack.c.b16 %v2798, %v2796
  %v2955 = vpack.c.b16 %v2801, %v2799
  %v2956 = vpack.c.b16 %v2802, %v2800
  %v2957 = vpack.c.b16 %v2805, %v2803
  %v2958 = vpack.c.b16 %v2806, %v2804
  %v2959 = vpack.c.b16 %v2809, %v2807
  %v2960 = vpack.c.b16 %v2810, %v2808
  %v2961 = vpack.c.b16 %v2813, %v2811
  %v2962 = vpack.c.b16 %v2814, %v2812
  %v2963 = vpack.c.b16 %v2817, %v2815
  %v2964 = vpack.c.b16 %v2818, %v2816
  %v2965 = vpack.c.b16 %v2821, %v2819
  %v2966 = vpack.c.b16 %v2822, %v2820
  %v2967 = vpack.c.b16 %v2825, %v2823
  %v2968 = vpack.c.b16 %v2826, %v2824
  %v2969 = vpack.c.b16 %v2829, %v2827
  %v2970 = vpack.c.b16 %v2830, %v2828
  %v2971 = vpack.c.b16 %v2833, %v2831
  %v2972 = vpack.c.b16 %v2834, %v2832
  %v2973 = vpack.c.b16 %v2837, %v2835
  %v2974 = vpack.c.b16 %v2838, %v2836
  %v2975 = vpack.c.b16 %v2841, %v2839
  %v2976 = vpack.c.b16 %v2842, %v2840
  %v2977 = vpack.c.b16 %v2845, %v2843
  %v2978 = vpack.c.b16 %v2846, %v2844
  %v2979 = vpack.c.b16 %v2849, %v2847
  %v2980 = vpack.c.b16 %v2850, %v2848
  %v2981 = vpack.c.b16 %v2853, %v2851
  %v2982 = vpack.c.b16 %v2854, %v2852
  %v2983 = vpack.c.b16 %v2857, %v2855
  %v2984 = vpack.c.b16 %v2858, %v2856
  %v2985 = vpack.c.b16 %v2861, %v2859
  %v2986 = vpack.c.b16 %v2862, %v2860
  %v2987 = vpack.c.b16 %v2865, %v2863
  %v2988 = vpack.c.b16 %v2866, %v2864
  %v2989 = vpack.c.b16 %v2869, %v2867
  %v2990 = vpack.c.b16 %v2870, %v2868
  %v2991 = vpack.c.b16 %v2873, %v2871
  %v2992 = vpack.c.b16 %v2874, %v2872
  %v2993 = vpack.c.b16 %v2877, %v2875
  %v2994 = vpack.c.b16 %v2878, %v2876
  %v2995 = vpack.c.b16 %v2881, %v2879
  %v2996 = vpack.c.b16 %v2882, %v2880
  %v2997 = vpack.c.b16 %v2885, %v2883
  %v2998 = vpack.c.b16 %v2886, %v2884
  %v2999 = vpack.c.b16 %v2889, %v2887
  %v3000 = vpack.c.b16 %v2890, %v2888
  %v3001 = vpack.c.b16 %v2893, %v2891
  %v3002 = vpack.c.b16 %v2894, %v2892
  %v3003 = vpack.c.b16 %v2897, %v2895
  %v3004 = vpack.c.b16 %v2898, %v2896
  %v3005 = vpack.c.b16 %v2901, %v2899
  %v3006 = vpack.c.b16 %v2902, %v2900
  %v3007 = vpack.c.b16 %v2905, %v2903
  %v3008 = vpack.c.b16 %v2906, %v2904
  %v3009 = vpack.c.b16 %v2909, %v2907
  %v3010 = vpack.c.b16 %v2910, %v2908
  %v3011 = vpack.c.b16 %v2913, %v2911
  %v3012 = vpack.c.b16 %v2914, %v2912
  %vm3111 = vcmask 130048
  %v3113 = vsel %vm3111, %v2510, 0
  %3115 = vmatprep.subr.bf16.mxu0 %v2930
  %3116 = vmatpush1.bf16.msra.mxu0 %v2929
  %3117 = vmatprep.subr.bf16.mxu0 %v2928
  %3118 = vmatpush1.bf16.msra.mxu0 %v2927
  %3119 = vmatprep.subr.bf16.mxu0 %v2926
  %3120 = vmatpush1.bf16.msra.mxu0 %v2925
  %3121 = vmatprep.subr.bf16.mxu0 %v2924
  %3122 = vmatpush1.bf16.msra.mxu0 %v2923
  %3123 = vmatprep.subr.bf16.mxu0 %v2922
  %3124 = vmatpush1.bf16.msra.mxu0 %v2921
  %3125 = vmatprep.subr.bf16.mxu0 %v2920
  %3126 = vmatpush1.bf16.msra.mxu0 %v2919
  %3127 = vmatprep.subr.bf16.mxu0 %v2918
  %3128 = vmatpush1.bf16.msra.mxu0 %v2917
  %3129 = vmatprep.subr.bf16.mxu0 %v2916
  %3130 = vmatpush1.bf16.msra.mxu0 %v2915
  %3131 = vmatprep.subr.bf16.mxu0 %v2946
  %3132 = vmatpush2.bf16.msra.mxu0 %v2945
  %3133 = vmatprep.subr.bf16.mxu0 %v2944
  %3134 = vmatpush2.bf16.msra.mxu0 %v2943
  %3135 = vmatprep.subr.bf16.mxu0 %v2942
  %3136 = vmatpush2.bf16.msra.mxu0 %v2941
  %3137 = vmatprep.subr.bf16.mxu0 %v2940
  %3138 = vmatpush2.bf16.msra.mxu0 %v2939
  %3139 = vmatprep.subr.bf16.mxu0 %v2938
  %3140 = vmatpush2.bf16.msra.mxu0 %v2937
  %3141 = vmatprep.subr.bf16.mxu0 %v2936
  %3142 = vmatpush2.bf16.msra.mxu0 %v2935
  %3143 = vmatprep.subr.bf16.mxu0 %v2934
  %3144 = vmatpush2.bf16.msra.mxu0 %v2933
  %3145 = vmatprep.subr.bf16.mxu0 %v2932
  %3146 = vmatpush2.bf16.msra.mxu0 %v2931
  %3147 = vmatprep.mubr.bf16.mxu0 %v2505
  %3148 = vmatmul.mubr.bf16.gmra.mxu0 %v2504
  %v3149 = vpop.f32.mrf.mxu0
  %v3150 = vadd.f32 %v2614, %v3149
  %v3151 = vpop.f32.mrf.mxu0
  %v3152 = vadd.f32 %v2618, %v3151
  %v3153 = vpop.f32.mrf.mxu0
  %v3154 = vpop.f32.mrf.mxu0
  %3155 = vdwg.mxu0
  %3156 = vmatprep.subr.bf16.mxu0 %v2962
  %3157 = vmatpush1.bf16.msra.mxu0 %v2961
  %3158 = vmatprep.subr.bf16.mxu0 %v2960
  %3159 = vmatpush1.bf16.msra.mxu0 %v2959
  %3160 = vmatprep.subr.bf16.mxu0 %v2958
  %3161 = vmatpush1.bf16.msra.mxu0 %v2957
  %3162 = vmatprep.subr.bf16.mxu0 %v2956
  %3163 = vmatpush1.bf16.msra.mxu0 %v2955
  %3164 = vmatprep.subr.bf16.mxu0 %v2954
  %3165 = vmatpush1.bf16.msra.mxu0 %v2953
  %3166 = vmatprep.subr.bf16.mxu0 %v2952
  %3167 = vmatpush1.bf16.msra.mxu0 %v2951
  %3168 = vmatprep.subr.bf16.mxu0 %v2950
  %3169 = vmatpush1.bf16.msra.mxu0 %v2949
  %3170 = vmatprep.subr.bf16.mxu0 %v2948
  %3171 = vmatpush1.bf16.msra.mxu0 %v2947
  %3172 = vmatprep.subr.bf16.mxu0 %v2978
  %3173 = vmatpush2.bf16.msra.mxu0 %v2977
  %3174 = vmatprep.subr.bf16.mxu0 %v2976
  %3175 = vmatpush2.bf16.msra.mxu0 %v2975
  %3176 = vmatprep.subr.bf16.mxu0 %v2974
  %3177 = vmatpush2.bf16.msra.mxu0 %v2973
  %3178 = vmatprep.subr.bf16.mxu0 %v2972
  %3179 = vmatpush2.bf16.msra.mxu0 %v2971
  %3180 = vmatprep.subr.bf16.mxu0 %v2970
  %3181 = vmatpush2.bf16.msra.mxu0 %v2969
  %3182 = vmatprep.subr.bf16.mxu0 %v2968
  %3183 = vmatpush2.bf16.msra.mxu0 %v2967
  %3184 = vmatprep.subr.bf16.mxu0 %v2966
  %3185 = vmatpush2.bf16.msra.mxu0 %v2965
  %3186 = vmatprep.subr.bf16.mxu0 %v2964
  %3187 = vmatpush2.bf16.msra.mxu0 %v2963
  %3188 = vmatprep.mubr.bf16.mxu0 %v2507
  %3189 = vmatmul.mubr.bf16.gmra.mxu0 %v2506
  %v3190 = vpop.f32.mrf.mxu0
  %v3191 = vadd.f32 %v3150, %v3190
  %v3192 = vpop.f32.mrf.mxu0
  %v3193 = vadd.f32 %v3152, %v3192
  %v3194 = vpop.f32.mrf.mxu0
  %v3195 = vpop.f32.mrf.mxu0
  %3196 = vdwg.mxu0
  %3197 = vmatprep.subr.bf16.mxu0 %v2994
  %3198 = vmatpush1.bf16.msra.mxu0 %v2993
  %3199 = vmatprep.subr.bf16.mxu0 %v2992
  %3200 = vmatpush1.bf16.msra.mxu0 %v2991
  %3201 = vmatprep.subr.bf16.mxu0 %v2990
  %3202 = vmatpush1.bf16.msra.mxu0 %v2989
  %3203 = vmatprep.subr.bf16.mxu0 %v2988
  %3204 = vmatpush1.bf16.msra.mxu0 %v2987
  %3205 = vmatprep.subr.bf16.mxu0 %v2986
  %3206 = vmatpush1.bf16.msra.mxu0 %v2985
  %3207 = vmatprep.subr.bf16.mxu0 %v2984
  %3208 = vmatpush1.bf16.msra.mxu0 %v2983
  %3209 = vmatprep.subr.bf16.mxu0 %v2982
  %3210 = vmatpush1.bf16.msra.mxu0 %v2981
  %3211 = vmatprep.subr.bf16.mxu0 %v2980
  %3212 = vmatpush1.bf16.msra.mxu0 %v2979
  %3213 = vmatprep.subr.bf16.mxu0 %v3010
  %3214 = vmatpush2.bf16.msra.mxu0 %v3009
  %3215 = vmatprep.subr.bf16.mxu0 %v3008
  %3216 = vmatpush2.bf16.msra.mxu0 %v3007
  %3217 = vmatprep.subr.bf16.mxu0 %v3006
  %3218 = vmatpush2.bf16.msra.mxu0 %v3005
  %3219 = vmatprep.subr.bf16.mxu0 %v3004
  %3220 = vmatpush2.bf16.msra.mxu0 %v3003
  %3221 = vmatprep.subr.bf16.mxu0 %v3002
  %3222 = vmatpush2.bf16.msra.mxu0 %v3001
  %3223 = vmatprep.subr.bf16.mxu0 %v3000
  %3224 = vmatpush2.bf16.msra.mxu0 %v2999
  %3225 = vmatprep.subr.bf16.mxu0 %v2998
  %3226 = vmatpush2.bf16.msra.mxu0 %v2997
  %3227 = vmatprep.subr.bf16.mxu0 %v2996
  %3228 = vmatpush2.bf16.msra.mxu0 %v2995
  %3229 = vmatprep.mubr.bf16.mxu0 %v2509
  %3230 = vmatmul.mubr.bf16.gmra.mxu0 %v2508
  %v3231 = vpop.f32.mrf.mxu0
  %v3232 = vadd.f32 %v3191, %v3231
  %v3233 = vpop.f32.mrf.mxu0
  %v3234 = vadd.f32 %v3193, %v3233
  %v3235 = vpop.f32.mrf.mxu0
  %v3236 = vpop.f32.mrf.mxu0
  %3237 = vdwg.mxu0
  %3238 = vmatprep.subr.bf16.mxu0 0
  %3239 = vmatpush1.bf16.msra.mxu0 0
  %3240 = vmatprep.subr.bf16.mxu0 0
  %3241 = vmatpush1.bf16.msra.mxu0 0
  %3242 = vmatprep.subr.bf16.mxu0 0
  %3243 = vmatpush1.bf16.msra.mxu0 0
  %3244 = vmatprep.subr.bf16.mxu0 0
  %3245 = vmatpush1.bf16.msra.mxu0 0
  %3246 = vmatprep.subr.bf16.mxu0 0
  %3247 = vmatpush1.bf16.msra.mxu0 0
  %3248 = vmatprep.subr.bf16.mxu0 0
  %3249 = vmatpush1.bf16.msra.mxu0 0
  %3250 = vmatprep.subr.bf16.mxu0 0
  %3251 = vmatpush1.bf16.msra.mxu0 0
  %3252 = vmatprep.subr.bf16.mxu0 %v3012
  %3253 = vmatpush1.bf16.msra.mxu0 %v3011
  %3254 = vmatprep.subr.bf16.mxu0 0
  %3255 = vmatpush2.bf16.msra.mxu0 0
  %3256 = vmatprep.subr.bf16.mxu0 0
  %3257 = vmatpush2.bf16.msra.mxu0 0
  %3258 = vmatprep.subr.bf16.mxu0 0
  %3259 = vmatpush2.bf16.msra.mxu0 0
  %3260 = vmatprep.subr.bf16.mxu0 0
  %3261 = vmatpush2.bf16.msra.mxu0 0
  %3262 = vmatprep.subr.bf16.mxu0 0
  %3263 = vmatpush2.bf16.msra.mxu0 0
  %3264 = vmatprep.subr.bf16.mxu0 0
  %3265 = vmatpush2.bf16.msra.mxu0 0
  %3266 = vmatprep.subr.bf16.mxu0 0
  %3267 = vmatpush2.bf16.msra.mxu0 0
  %3268 = vmatprep.subr.bf16.mxu0 0
  %3269 = vmatpush2.bf16.msra.mxu0 0
  %3270 = vmatprep.mubr.bf16.mxu0 0
  %3271 = vmatmul.mubr.bf16.gmra.mxu0 %v3113
  %v3272 = vpop.f32.mrf.mxu0
  %v3273 = vadd.f32 %v3232, %v3272
  %v3274 = vpop.f32.mrf.mxu0
  %v3275 = vadd.f32 %v3234, %v3274
  %v3276 = vpop.f32.mrf.mxu0
  %v3277 = vpop.f32.mrf.mxu0
  %3278 = vdwg.mxu0
  %v3279 = vmax.f32 %v3273, 0.0
  %v3280 = vmax.f32 %v3275, 0.0
  %v3281 = vsub.f32 0.0, %v3279
  %v3282 = vsub.f32 0.0, %v3280
  %v3283 = vmul.f32 %v3281, 1.442695
  %v3284 = vpow.pop %v3283
  %v3285 = vmul.f32 %v3282, 1.442695
  %v3286 = vpow.pop %v3285
  %v3287 = vadd.f32 %v3284, 1.0
  %v3288 = vadd.f32 %v3286, 1.0
  %v3289 = vrcp.pop %v3287
  %v3290 = vrcp.pop %v3288
  %3291 = vst [vmem:[%s7] sm:$0xff] %v3289
  %3292 = vst [vmem:[%s7 + $0x8] sm:$0xff] %v3290
  // Predicated region
  $region30: #{smallnet_forward.1} parent=0 // pred_check
    _
  $region31: #{smallnet_forward.1} parent=0 // pred_check_branch
    %3294 = sbr.rel (0) target = $region33
  $region32: #{smallnet_forward.1} parent=0 // pred_region
    _
  $region33: #{smallnet_forward.1} parent=0 // pred_fallthru
    _
  // Predicated region
  $region34: #{smallnet_forward.1} parent=0 // pred_check
    _
  $region35: #{smallnet_forward.1} parent=0 // pred_check_branch
    %3296 = sbr.rel (0) target = $region37
  $region36: #{smallnet_forward.1} parent=0 // pred_region
    _
  $region37: #{smallnet_forward.1} parent=0 // pred_fallthru
    _

</llo_original>
